<compile_context>
chip_gen: v6e
topology: v6e:2x2x1
jax: 0.10.0
libtpu: 0.0.40
codegen_flags: <defaults>
</compile_context>

<pallas_src>
import functools
import math

import jax
import jax.numpy as jnp
from jax.experimental import pallas as pl
from jax.experimental.pallas import tpu as pltpu


# --------------------------------------------------------------------------
# helpers
# --------------------------------------------------------------------------

def _cparams(semantics):
    return pltpu.CompilerParams(
        dimension_semantics=semantics,
        vmem_limit_bytes=64 * 1024 * 1024,
    )


def _tile_sub(dim, cap):
    """Tile for a second-minor (sublane) dim: full dim, or a multiple-of-8 divisor."""
    if dim <= cap:
        return dim
    t = (cap // 8) * 8
    while t >= 8:
        if dim % t == 0:
            return t
        t -= 8
    return dim


def _tile_lane(dim, cap):
    """Tile for a minor (lane) dim: full dim, or a multiple-of-128 divisor."""
    if dim <= cap:
        return dim
    t = (cap // 128) * 128
    while t >= 128:
        if dim % t == 0:
            return t
        t -= 128
    return dim


# --------------------------------------------------------------------------
# Pallas kernels
# --------------------------------------------------------------------------

def _patch_embed_kernel(p_ref, w_ref, b_ref, pos_ref, o_ref):
    # patches @ W + b + pos, all in one pass
    x = p_ref[0]                                                # (tn, pd) bf16
    y = jnp.dot(x, w_ref[...], preferred_element_type=jnp.float32)
    y = y + b_ref[...] + pos_ref[...]
    o_ref[0] = y.astype(o_ref.dtype)


def _ln_matmul_kernel(x_ref, g_ref, bln_ref, w_ref, bias_ref, o_ref, *, eps):
    # LayerNorm(x) @ W + b  (LN stats in f32, matmul operands bf16)
    x = x_ref[...].astype(jnp.float32)                          # (tm, K)
    mean = jnp.mean(x, axis=-1, keepdims=True)
    xc = x - mean
    var = jnp.mean(xc * xc, axis=-1, keepdims=True)
    h = xc * jax.lax.rsqrt(var + eps) * g_ref[...] + bln_ref[...]
    y = jnp.dot(h.astype(w_ref.dtype), w_ref[...],
                preferred_element_type=jnp.float32) + bias_ref[...]
    o_ref[...] = y.astype(o_ref.dtype)


def _matmul_res_kernel(x_ref, w_ref, bias_ref, res_ref, o_ref):
    # x @ W + b + residual (residual add fused into the epilogue)
    y = jnp.dot(x_ref[...], w_ref[...], preferred_element_type=jnp.float32)
    y = y + bias_ref[...] + res_ref[...].astype(jnp.float32)
    o_ref[...] = y.astype(o_ref.dtype)


def _mlp_kernel(x_ref, g_ref, bln_ref, w1_ref, b1_ref, w2_ref, b2_ref, o_ref, *, eps):
    # residual + W2 @ GELU(W1 @ LN(x) + b1) + b2, single kernel per row tile
    x = x_ref[...].astype(jnp.float32)                          # (tm, D)
    mean = jnp.mean(x, axis=-1, keepdims=True)
    xc = x - mean
    var = jnp.mean(xc * xc, axis=-1, keepdims=True)
    h = xc * jax.lax.rsqrt(var + eps) * g_ref[...] + bln_ref[...]
    u = jnp.dot(h.astype(w1_ref.dtype), w1_ref[...],
                preferred_element_type=jnp.float32) + b1_ref[...]
    # NOTE: PyTorch nn.GELU defaults to exact erf; tanh approximation used here
    # (difference is ~1e-3 relative). TODO(synk): switch to exact erf GELU if the
    # reference Encoder uses the default formulation.
    u = jax.nn.gelu(u, approximate=True)
    y = jnp.dot(u.astype(w2_ref.dtype), w2_ref[...],
                preferred_element_type=jnp.float32) + b2_ref[...]
    o_ref[...] = (x + y).astype(o_ref.dtype)


def _layernorm_kernel(x_ref, g_ref, b_ref, o_ref, *, eps):
    x = x_ref[...].astype(jnp.float32)
    mean = jnp.mean(x, axis=-1, keepdims=True)
    xc = x - mean
    var = jnp.mean(xc * xc, axis=-1, keepdims=True)
    o_ref[...] = (xc * jax.lax.rsqrt(var + eps) * g_ref[...] + b_ref[...]
                  ).astype(o_ref.dtype)


def _attn_kernel(q_ref, k_ref, v_ref, bias_ref, o_ref, m_sc, l_sc, acc_sc, *, scale):
    # flash-style attention: grid = (batch, q-tile, kv-tile), online softmax
    ki = pl.program_id(2)

    @pl.when(ki == 0)
    def _():
        m_sc[...] = jnp.full_like(m_sc, -1e30)
        l_sc[...] = jnp.zeros_like(l_sc)
        acc_sc[...] = jnp.zeros_like(acc_sc)

    q = q_ref[0]                                                # (H, tq, hd) bf16
    k = k_ref[0]                                                # (H, tkv, hd) bf16
    v = v_ref[0]                                                # (H, tkv, hd) bf16

    s = jnp.einsum("hqd,hkd->hqk", q, k,
                   preferred_element_type=jnp.float32) * scale  # (H, tq, tkv) f32
    s = s + bias_ref[0][None, :, :]                             # additive key-mask bias

    m_prev = m_sc[...]
    m_new = jnp.maximum(m_prev, jnp.max(s, axis=-1, keepdims=True))
    alpha = jnp.exp(m_prev - m_new)
    p = jnp.exp(s - m_new)                                      # (H, tq, tkv) f32
    l_sc[...] = alpha * l_sc[...] + jnp.sum(p, axis=-1, keepdims=True)
    acc_sc[...] = alpha * acc_sc[...] + jnp.einsum(
        "hqk,hkd->hqd", p.astype(v.dtype), v, preferred_element_type=jnp.float32)
    m_sc[...] = m_new

    @pl.when(ki == pl.num_programs(2) - 1)
    def _():
        o_ref[0] = (acc_sc[...] * pl.reciprocal(l_sc[...], approx=True)
                    ).astype(o_ref.dtype)


# --------------------------------------------------------------------------
# pallas_call wrappers (tiled)
# --------------------------------------------------------------------------

def patch_embed(patches, w, b, pos, out_dtype=jnp.bfloat16):
    """patches: (B, N, pd) bf16; w: (pd, D) bf16; b: (1, D) f32; pos: (N, D) f32."""
    B, N, pd = patches.shape
    D = w.shape[1]
    tn = _tile_sub(N, 256)
    return pl.pallas_call(
        _patch_embed_kernel,
        out_shape=jax.ShapeDtypeStruct((B, N, D), out_dtype),
        grid=(B, N // tn),
        in_specs=[
            pl.BlockSpec((1, tn, pd), lambda bi, ni: (bi, ni, 0)),
            pl.BlockSpec((pd, D), lambda bi, ni: (0, 0)),
            pl.BlockSpec((1, D), lambda bi, ni: (0, 0)),
            pl.BlockSpec((tn, D), lambda bi, ni: (ni, 0)),
        ],
        out_specs=pl.BlockSpec((1, tn, D), lambda bi, ni: (bi, ni, 0)),
        compiler_params=_cparams(("parallel", "parallel")),
    )(patches, w, b, pos)


def ln_matmul(x, gamma, beta, w, bias, eps=1e-5, out_dtype=jnp.bfloat16):
    """LayerNorm(x) @ w + bias.  x: (M, K) bf16, w: (K, Nout) bf16."""
    M, K = x.shape
    Nout = w.shape[1]
    tm = _tile_sub(M, 256)
    tn = _tile_lane(Nout, 512)
    return pl.pallas_call(
        functools.partial(_ln_matmul_kernel, eps=eps),
        out_shape=jax.ShapeDtypeStruct((M, Nout), out_dtype),
        grid=(M // tm, Nout // tn),
        in_specs=[
            pl.BlockSpec((tm, K), lambda i, j: (i, 0)),
            pl.BlockSpec((1, K), lambda i, j: (0, 0)),
            pl.BlockSpec((1, K), lambda i, j: (0, 0)),
            pl.BlockSpec((K, tn), lambda i, j: (0, j)),
            pl.BlockSpec((1, tn), lambda i, j: (0, j)),
        ],
        out_specs=pl.BlockSpec((tm, tn), lambda i, j: (i, j)),
        compiler_params=_cparams(("parallel", "parallel")),
    )(x, gamma, beta, w, bias)


def matmul_residual(x, w, bias, res, out_dtype=jnp.bfloat16):
    """x @ w + bias + res.  x: (M, K) bf16, res: (M, Nout) bf16."""
    M, K = x.shape
    Nout = w.shape[1]
    tm = _tile_sub(M, 256)
    tn = _tile_lane(Nout, 512)
    return pl.pallas_call(
        _matmul_res_kernel,
        out_shape=jax.ShapeDtypeStruct((M, Nout), out_dtype),
        grid=(M // tm, Nout // tn),
        in_specs=[
            pl.BlockSpec((tm, K), lambda i, j: (i, 0)),
            pl.BlockSpec((K, tn), lambda i, j: (0, j)),
            pl.BlockSpec((1, tn), lambda i, j: (0, j)),
            pl.BlockSpec((tm, tn), lambda i, j: (i, j)),
        ],
        out_specs=pl.BlockSpec((tm, tn), lambda i, j: (i, j)),
        compiler_params=_cparams(("parallel", "parallel")),
    )(x, w, bias, res)


def mlp_block(x, gamma, beta, w1, b1, w2, b2, eps=1e-5, out_dtype=jnp.bfloat16):
    """x + MLP(LayerNorm(x)).  Full weights resident in VMEM; rows tiled."""
    M, D = x.shape
    Dm = w1.shape[1]
    tm = _tile_sub(M, 256)
    return pl.pallas_call(
        functools.partial(_mlp_kernel, eps=eps),
        out_shape=jax.ShapeDtypeStruct((M, D), out_dtype),
        grid=(M // tm,),
        in_specs=[
            pl.BlockSpec((tm, D), lambda i: (i, 0)),
            pl.BlockSpec((1, D), lambda i: (0, 0)),
            pl.BlockSpec((1, D), lambda i: (0, 0)),
            pl.BlockSpec((D, Dm), lambda i: (0, 0)),
            pl.BlockSpec((1, Dm), lambda i: (0, 0)),
            pl.BlockSpec((Dm, D), lambda i: (0, 0)),
            pl.BlockSpec((1, D), lambda i: (0, 0)),
        ],
        out_specs=pl.BlockSpec((tm, D), lambda i: (i, 0)),
        compiler_params=_cparams(("parallel",)),
    )(x, gamma, beta, w1, b1, w2, b2)


def layernorm(x, gamma, beta, eps=1e-5, out_dtype=jnp.float32):
    M, D = x.shape
    tm = _tile_sub(M, 512)
    return pl.pallas_call(
        functools.partial(_layernorm_kernel, eps=eps),
        out_shape=jax.ShapeDtypeStruct((M, D), out_dtype),
        grid=(M // tm,),
        in_specs=[
            pl.BlockSpec((tm, D), lambda i: (i, 0)),
            pl.BlockSpec((1, D), lambda i: (0, 0)),
            pl.BlockSpec((1, D), lambda i: (0, 0)),
        ],
        out_specs=pl.BlockSpec((tm, D), lambda i: (i, 0)),
        compiler_params=_cparams(("parallel",)),
    )(x, gamma, beta)


def attention(q, k, v, attn_bias):
    """q,k,v: (B, H, N, hd) bf16; attn_bias: (B, 1, N) f32 additive key bias."""
    B, H, N, hd = q.shape
    scale = 1.0 / math.sqrt(hd)
    tq = _tile_sub(N, 256)
    tkv = _tile_lane(N, 512)      # lane-dim of the bias block -> 128-mult or full
    # TODO(synk): for realistic configs pad head_dim to a 128 multiple so the
    # output lane dim is dense (hd=8 here only matters at demo scale).
    return pl.pallas_call(
        functools.partial(_attn_kernel, scale=scale),
        out_shape=jax.ShapeDtypeStruct((B, H, N, hd), q.dtype),
        grid=(B, N // tq, N // tkv),
        in_specs=[
            pl.BlockSpec((1, H, tq, hd), lambda b, qi, ki: (b, 0, qi, 0)),
            pl.BlockSpec((1, H, tkv, hd), lambda b, qi, ki: (b, 0, ki, 0)),
            pl.BlockSpec((1, H, tkv, hd), lambda b, qi, ki: (b, 0, ki, 0)),
            pl.BlockSpec((1, 1, tkv), lambda b, qi, ki: (b, 0, ki)),
        ],
        out_specs=pl.BlockSpec((1, H, tq, hd), lambda b, qi, ki: (b, 0, qi, 0)),
        scratch_shapes=[
            pltpu.VMEM((H, tq, 1), jnp.float32),    # running max
            pltpu.VMEM((H, tq, 1), jnp.float32),    # running denom
            pltpu.VMEM((H, tq, hd), jnp.float32),   # output accumulator
        ],
        compiler_params=_cparams(("parallel", "parallel", "arbitrary")),
    )(q, k, v, attn_bias)


# --------------------------------------------------------------------------
# Parameter construction (deterministic)
# --------------------------------------------------------------------------

def init_params(key, *, channels, patch, dim, heads, mlp_dim, layers, n_tokens):
    patch_dim = patch * patch * channels

    def dense(k, fan_in, fan_out):
        w = (jax.random.normal(k, (fan_in, fan_out), jnp.float32)
             * (1.0 / math.sqrt(fan_in))).astype(jnp.bfloat16)
        b = jnp.zeros((1, fan_out), jnp.float32)
        return w, b

    keys = jax.random.split(key, 2 + layers)
    params = {}
    params["patch_w"], params["patch_b"] = dense(keys[0], patch_dim, dim)
    params["pos"] = jax.random.normal(keys[1], (n_tokens, dim), jnp.float32) * 0.02

    blocks = []
    for li in range(layers):
        lk = jax.random.split(keys[2 + li], 4)
        blk = {
            "ln1_g": jnp.ones((1, dim), jnp.float32),
            "ln1_b": jnp.zeros((1, dim), jnp.float32),
            "ln2_g": jnp.ones((1, dim), jnp.float32),
            "ln2_b": jnp.zeros((1, dim), jnp.float32),
        }
        blk["wqkv"], blk["bqkv"] = dense(lk[0], dim, 3 * dim)   # fused q/k/v
        blk["wo"], blk["bo"] = dense(lk[1], dim, dim)
        blk["w1"], blk["b1"] = dense(lk[2], dim, mlp_dim)
        blk["w2"], blk["b2"] = dense(lk[3], mlp_dim, dim)
        blocks.append(blk)
    params["blocks"] = blocks
    params["lnf_g"] = jnp.ones((1, dim), jnp.float32)
    params["lnf_b"] = jnp.zeros((1, dim), jnp.float32)
    return params


# --------------------------------------------------------------------------
# Forward pass (== PerceptionModel.forward -> Encoder(images, masks))
# --------------------------------------------------------------------------

def perception_forward(params, images, masks=None, *, patch, heads):
    B, C, H, W = images.shape
    P = patch
    nh, nw = H // P, W // P
    N = nh * nw
    D = params["patch_w"].shape[1]
    hd = D // heads

    # --- patchify (NCHW -> (B, N, P*P*C)), conv-as-matmul glue ---
    x = images.reshape(B, C, nh, P, nw, P)
    x = jnp.transpose(x, (0, 2, 4, 3, 5, 1))                    # (B, nh, nw, P, P, C)
    patches = x.reshape(B, N, P * P * C).astype(jnp.bfloat16)

    # --- fused patch embedding + bias + positional embedding ---
    tok = patch_embed(patches, params["patch_w"], params["patch_b"], params["pos"])
    tok = tok.reshape(B * N, D)                                  # bf16 residual stream

    # key mask: 1.0 = keep, 0.0 = masked key (matches previous convention).
    # Hoisted additive bias, computed once for all layers.
    if masks is None:
        key_mask = jnp.ones((B, N), jnp.float32)
    else:
        key_mask = masks.astype(jnp.float32)
    attn_bias = ((1.0 - key_mask) * (-1e9)).reshape(B, 1, N)

    for blk in params["blocks"]:
        # --- attention sub-block: LN + fused QKV -> flash attention -> out-proj+res ---
        qkv = ln_matmul(tok, blk["ln1_g"], blk["ln1_b"], blk["wqkv"], blk["bqkv"])
        qkv = qkv.reshape(B, N, 3, heads, hd)
        q = qkv[:, :, 0].transpose(0, 2, 1, 3)                   # (B, H, N, hd)
        k = qkv[:, :, 1].transpose(0, 2, 1, 3)
        v = qkv[:, :, 2].transpose(0, 2, 1, 3)
        attn = attention(q, k, v, attn_bias)                     # (B, H, N, hd)
        attn = attn.transpose(0, 2, 1, 3).reshape(B * N, D)
        tok = matmul_residual(attn, blk["wo"], blk["bo"], tok)   # + residual fused

        # --- MLP sub-block: LN -> w1 -> GELU -> w2 -> +residual, one kernel ---
        tok = mlp_block(tok, blk["ln2_g"], blk["ln2_b"],
                        blk["w1"], blk["b1"], blk["w2"], blk["b2"])

    out = layernorm(tok, params["lnf_g"], params["lnf_b"])       # f32 output
    return out.reshape(B, N, D)


# --------------------------------------------------------------------------
# Demo
# --------------------------------------------------------------------------

if __name__ == "__main__":
    # small config consistent with the module's forward
    B, C, H, W = 2, 4, 16, 16
    PATCH, DIM, HEADS, MLP, LAYERS = 4, 32, 4, 128, 2

    key = jax.random.PRNGKey(0)
    k_img, k_par, k_msk = jax.random.split(key, 3)

    images = jax.random.normal(k_img, (B, C, H, W), jnp.float32)
    n_tokens = (H // PATCH) * (W // PATCH)
    masks = (jax.random.uniform(k_msk, (B, n_tokens)) > 0.2).astype(jnp.float32)

    params = init_params(k_par, channels=C, patch=PATCH, dim=DIM,
                         heads=HEADS, mlp_dim=MLP, layers=LAYERS, n_tokens=n_tokens)

    fwd = jax.jit(functools.partial(perception_forward, patch=PATCH, heads=HEADS))
    out = fwd(params, images, masks)
    jax.block_until_ready(out)

    assert out.shape == (B, n_tokens, DIM)
    assert bool(jnp.all(jnp.isfinite(out)))
    print("KERNEL_OK")
</pallas_src>

<mosaic_0001>
module attributes {stable_mosaic.version = 11 : i64} {
  func.func @_patch_embed_kernel(%arg0: i32, %arg1: i32, %arg2: memref<1x16x64xbf16, #tpu.memory_space<vmem>>, %arg3: memref<64x32xbf16, #tpu.memory_space<vmem>>, %arg4: memref<1x32xf32, #tpu.memory_space<vmem>>, %arg5: memref<16x32xf32, #tpu.memory_space<vmem>>, %arg6: memref<1x16x32xbf16, #tpu.memory_space<vmem>>) attributes {dimension_semantics = [#tpu.dimension_semantics<parallel>, #tpu.dimension_semantics<parallel>], iteration_bounds = array<i64: 2, 1>, scalar_prefetch = 0 : i64, scratch_operands = 0 : i64, tpu.core_type = #tpu.core_type<tc>, window_params = [{transform_indices = @transform_0, window_bounds = array<i64: 1, 16, 64>}, {pipeline_mode = #tpu.pipeline_mode<synchronous>, transform_indices = @transform_1, window_bounds = array<i64: 64, 32>}, {pipeline_mode = #tpu.pipeline_mode<synchronous>, transform_indices = @transform_2, window_bounds = array<i64: 1, 32>}, {transform_indices = @transform_3, window_bounds = array<i64: 16, 32>}, {transform_indices = @transform_4, window_bounds = array<i64: 1, 16, 32>}]} {
    %c0 = arith.constant 0 : index
    %c0_0 = arith.constant 0 : index
    %c0_1 = arith.constant 0 : index
    %0 = vector.load %arg2[%c0, %c0_0, %c0_1] : memref<1x16x64xbf16, #tpu.memory_space<vmem>>, vector<1x16x64xbf16>
    %1 = vector.shape_cast %0 : vector<1x16x64xbf16> to vector<16x64xbf16>
    %c0_2 = arith.constant 0 : index
    %c0_3 = arith.constant 0 : index
    %2 = vector.load %arg3[%c0_2, %c0_3] : memref<64x32xbf16, #tpu.memory_space<vmem>>, vector<64x32xbf16>
    %cst = arith.constant dense<0.000000e+00> : vector<16x32xf32>
    %3 = tpu.matmul %1, %2, %cst {dimension_numbers = #tpu.dot_dimension_numbers<[1], [0], [0], [1], [0, 0, 1, 1], [], []>} : vector<16x64xbf16>, vector<64x32xbf16>, vector<16x32xf32> -> vector<16x32xf32>
    %c0_4 = arith.constant 0 : index
    %c0_5 = arith.constant 0 : index
    %4 = vector.load %arg4[%c0_4, %c0_5] : memref<1x32xf32, #tpu.memory_space<vmem>>, vector<1x32xf32>
    %5 = vector.broadcast %4 : vector<1x32xf32> to vector<16x32xf32>
    %6 = arith.addf %3, %5 : vector<16x32xf32>
    %c0_6 = arith.constant 0 : index
    %c0_7 = arith.constant 0 : index
    %7 = vector.load %arg5[%c0_6, %c0_7] : memref<16x32xf32, #tpu.memory_space<vmem>>, vector<16x32xf32>
    %8 = arith.addf %6, %7 : vector<16x32xf32>
    %9 = arith.truncf %8 : vector<16x32xf32> to vector<16x32xbf16>
    %c0_8 = arith.constant 0 : index
    %c0_9 = arith.constant 0 : index
    %c0_10 = arith.constant 0 : index
    %10 = vector.load %arg6[%c0_8, %c0_9, %c0_10] : memref<1x16x32xbf16, #tpu.memory_space<vmem>>, vector<1x16x32xbf16>
    %11 = vector.shape_cast %10 : vector<1x16x32xbf16> to vector<16x32xbf16>
    %12 = vector.shape_cast %9 : vector<16x32xbf16> to vector<1x16x32xbf16>
    tpu.vector_store %arg6[%c0_8, %c0_9, %c0_10], %12 {strides = array<i32>} : memref<1x16x32xbf16, #tpu.memory_space<vmem>>, vector<1x16x32xbf16>,
    return
  }
  func.func @transform_0(%arg0: i32, %arg1: i32) -> (i32, i32, i32) {
    %c0_i32 = arith.constant 0 : i32
    %c0_i32_0 = arith.constant 0 : i32
    return %arg0, %arg1, %c0_i32 : i32, i32, i32
  }
  func.func @transform_1(%arg0: i32, %arg1: i32) -> (i32, i32) {
    %c0_i32 = arith.constant 0 : i32
    %c0_i32_0 = arith.constant 0 : i32
    %c0_i32_1 = arith.constant 0 : i32
    return %c0_i32, %c0_i32_0 : i32, i32
  }
  func.func @transform_2(%arg0: i32, %arg1: i32) -> (i32, i32) {
    %c0_i32 = arith.constant 0 : i32
    %c0_i32_0 = arith.constant 0 : i32
    %c0_i32_1 = arith.constant 0 : i32
    return %c0_i32, %c0_i32_0 : i32, i32
  }
  func.func @transform_3(%arg0: i32, %arg1: i32) -> (i32, i32) {
    %c0_i32 = arith.constant 0 : i32
    %c0_i32_0 = arith.constant 0 : i32
    return %arg1, %c0_i32 : i32, i32
  }
  func.func @transform_4(%arg0: i32, %arg1: i32) -> (i32, i32, i32) {
    %c0_i32 = arith.constant 0 : i32
    %c0_i32_0 = arith.constant 0 : i32
    return %arg0, %arg1, %c0_i32 : i32, i32, i32
  }
}

module attributes {stable_mosaic.version = 11 : i64} {
  func.func @_ln_matmul_kernel(%arg0: i32, %arg1: i32, %arg2: memref<32x32xbf16, #tpu.memory_space<vmem>>, %arg3: memref<1x32xf32, #tpu.memory_space<vmem>>, %arg4: memref<1x32xf32, #tpu.memory_space<vmem>>, %arg5: memref<32x96xbf16, #tpu.memory_space<vmem>>, %arg6: memref<1x96xf32, #tpu.memory_space<vmem>>, %arg7: memref<32x96xbf16, #tpu.memory_space<vmem>>) attributes {dimension_semantics = [#tpu.dimension_semantics<parallel>, #tpu.dimension_semantics<parallel>], iteration_bounds = array<i64: 1, 1>, scalar_prefetch = 0 : i64, scratch_operands = 0 : i64, tpu.core_type = #tpu.core_type<tc>, window_params = [{transform_indices = @transform_0, window_bounds = array<i64: 32, 32>}, {pipeline_mode = #tpu.pipeline_mode<synchronous>, transform_indices = @transform_1, window_bounds = array<i64: 1, 32>}, {pipeline_mode = #tpu.pipeline_mode<synchronous>, transform_indices = @transform_2, window_bounds = array<i64: 1, 32>}, {transform_indices = @transform_3, window_bounds = array<i64: 32, 96>}, {transform_indices = @transform_4, window_bounds = array<i64: 1, 96>}, {transform_indices = @transform_5, window_bounds = array<i64: 32, 96>}]} {
    %c0 = arith.constant 0 : index
    %c0_0 = arith.constant 0 : index
    %0 = vector.load %arg2[%c0, %c0_0] : memref<32x32xbf16, #tpu.memory_space<vmem>>, vector<32x32xbf16>
    %1 = arith.extf %0 : vector<32x32xbf16> to vector<32x32xf32>
    %cst = arith.constant dense<0.000000e+00> : vector<32xf32>
    %2 = vector.multi_reduction <add>, %1, %cst [1] : vector<32x32xf32> to vector<32xf32>
    %3 = vector.shape_cast %2 : vector<32xf32> to vector<32x1xf32>
    %cst_1 = arith.constant 3.200000e+01 : f32
    %4 = vector.broadcast %cst_1 : f32 to vector<32x1xf32>
    %5 = arith.divf %3, %4 : vector<32x1xf32>
    %6 = vector.broadcast %5 : vector<32x1xf32> to vector<32x32xf32>
    %7 = arith.subf %1, %6 : vector<32x32xf32>
    %8 = arith.mulf %7, %7 : vector<32x32xf32>
    %cst_2 = arith.constant dense<0.000000e+00> : vector<32xf32>
    %9 = vector.multi_reduction <add>, %8, %cst_2 [1] : vector<32x32xf32> to vector<32xf32>
    %10 = vector.shape_cast %9 : vector<32xf32> to vector<32x1xf32>
    %cst_3 = arith.constant 3.200000e+01 : f32
    %11 = vector.broadcast %cst_3 : f32 to vector<32x1xf32>
    %12 = arith.divf %10, %11 : vector<32x1xf32>
    %cst_4 = arith.constant 9.99999974E-6 : f32
    %13 = vector.broadcast %cst_4 : f32 to vector<32x1xf32>
    %14 = arith.addf %12, %13 : vector<32x1xf32>
    %15 = math.rsqrt %14 : vector<32x1xf32>
    %16 = vector.broadcast %15 : vector<32x1xf32> to vector<32x32xf32>
    %17 = arith.mulf %7, %16 : vector<32x32xf32>
    %c0_5 = arith.constant 0 : index
    %c0_6 = arith.constant 0 : index
    %18 = vector.load %arg3[%c0_5, %c0_6] : memref<1x32xf32, #tpu.memory_space<vmem>>, vector<1x32xf32>
    %19 = vector.broadcast %18 : vector<1x32xf32> to vector<32x32xf32>
    %20 = arith.mulf %17, %19 : vector<32x32xf32>
    %c0_7 = arith.constant 0 : index
    %c0_8 = arith.constant 0 : index
    %21 = vector.load %arg4[%c0_7, %c0_8] : memref<1x32xf32, #tpu.memory_space<vmem>>, vector<1x32xf32>
    %22 = vector.broadcast %21 : vector<1x32xf32> to vector<32x32xf32>
    %23 = arith.addf %20, %22 : vector<32x32xf32>
    %24 = arith.truncf %23 : vector<32x32xf32> to vector<32x32xbf16>
    %c0_9 = arith.constant 0 : index
    %c0_10 = arith.constant 0 : index
    %25 = vector.load %arg5[%c0_9, %c0_10] : memref<32x96xbf16, #tpu.memory_space<vmem>>, vector<32x96xbf16>
    %cst_11 = arith.constant dense<0.000000e+00> : vector<32x96xf32>
    %26 = tpu.matmul %24, %25, %cst_11 {dimension_numbers = #tpu.dot_dimension_numbers<[1], [0], [0], [1], [0, 0, 1, 1], [], []>} : vector<32x32xbf16>, vector<32x96xbf16>, vector<32x96xf32> -> vector<32x96xf32>
    %c0_12 = arith.constant 0 : index
    %c0_13 = arith.constant 0 : index
    %27 = vector.load %arg6[%c0_12, %c0_13] : memref<1x96xf32, #tpu.memory_space<vmem>>, vector<1x96xf32>
    %28 = vector.broadcast %27 : vector<1x96xf32> to vector<32x96xf32>
    %29 = arith.addf %26, %28 : vector<32x96xf32>
    %30 = arith.truncf %29 : vector<32x96xf32> to vector<32x96xbf16>
    %c0_14 = arith.constant 0 : index
    %c0_15 = arith.constant 0 : index
    %31 = vector.load %arg7[%c0_14, %c0_15] : memref<32x96xbf16, #tpu.memory_space<vmem>>, vector<32x96xbf16>
    tpu.vector_store %arg7[%c0_14, %c0_15], %30 {strides = array<i32>} : memref<32x96xbf16, #tpu.memory_space<vmem>>, vector<32x96xbf16>,
    return
  }
  func.func @transform_0(%arg0: i32, %arg1: i32) -> (i32, i32) {
    %c0_i32 = arith.constant 0 : i32
    %c0_i32_0 = arith.constant 0 : i32
    return %arg0, %c0_i32 : i32, i32
  }
  func.func @transform_1(%arg0: i32, %arg1: i32) -> (i32, i32) {
    %c0_i32 = arith.constant 0 : i32
    %c0_i32_0 = arith.constant 0 : i32
    %c0_i32_1 = arith.constant 0 : i32
    return %c0_i32, %c0_i32_0 : i32, i32
  }
  func.func @transform_2(%arg0: i32, %arg1: i32) -> (i32, i32) {
    %c0_i32 = arith.constant 0 : i32
    %c0_i32_0 = arith.constant 0 : i32
    %c0_i32_1 = arith.constant 0 : i32
    return %c0_i32, %c0_i32_0 : i32, i32
  }
  func.func @transform_3(%arg0: i32, %arg1: i32) -> (i32, i32) {
    %c0_i32 = arith.constant 0 : i32
    %c0_i32_0 = arith.constant 0 : i32
    return %c0_i32, %arg1 : i32, i32
  }
  func.func @transform_4(%arg0: i32, %arg1: i32) -> (i32, i32) {
    %c0_i32 = arith.constant 0 : i32
    %c0_i32_0 = arith.constant 0 : i32
    return %c0_i32, %arg1 : i32, i32
  }
  func.func @transform_5(%arg0: i32, %arg1: i32) -> (i32, i32) {
    %c0_i32 = arith.constant 0 : i32
    return %arg0, %arg1 : i32, i32
  }
}

module attributes {stable_mosaic.version = 11 : i64} {
  func.func @_attn_kernel(%arg0: i32, %arg1: i32, %arg2: i32, %arg3: memref<1x4x16x8xbf16, #tpu.memory_space<vmem>>, %arg4: memref<1x4x16x8xbf16, #tpu.memory_space<vmem>>, %arg5: memref<1x4x16x8xbf16, #tpu.memory_space<vmem>>, %arg6: memref<1x1x16xf32, #tpu.memory_space<vmem>>, %arg7: memref<1x4x16x8xbf16, #tpu.memory_space<vmem>>, %arg8: memref<4x16x1xf32, #tpu.memory_space<vmem>>, %arg9: memref<4x16x1xf32, #tpu.memory_space<vmem>>, %arg10: memref<4x16x8xf32, #tpu.memory_space<vmem>>) attributes {dimension_semantics = [#tpu.dimension_semantics<parallel>, #tpu.dimension_semantics<parallel>, #tpu.dimension_semantics<arbitrary>], iteration_bounds = array<i64: 2, 1, 1>, scalar_prefetch = 0 : i64, scratch_operands = 3 : i64, tpu.core_type = #tpu.core_type<tc>, window_params = [{transform_indices = @transform_0, window_bounds = array<i64: 1, 4, 16, 8>}, {transform_indices = @transform_1, window_bounds = array<i64: 1, 4, 16, 8>}, {transform_indices = @transform_2, window_bounds = array<i64: 1, 4, 16, 8>}, {transform_indices = @transform_3, window_bounds = array<i64: 1, 1, 16>}, {transform_indices = @transform_4, window_bounds = array<i64: 1, 4, 16, 8>}]} {
    %c0_i32 = arith.constant 0 : i32
    %0 = arith.cmpi eq, %arg2, %c0_i32 : i32
    %1 = arith.extui %0 : i1 to i32
    %c0_i32_0 = arith.constant 0 : i32
    %2 = arith.cmpi ne, %1, %c0_i32_0 : i32
    scf.if %2 {
      %cst_39 = arith.constant -1.000000e+30 : f32
      %43 = vector.broadcast %cst_39 : f32 to vector<4x16x1xf32>
      %c0_40 = arith.constant 0 : index
      %c0_41 = arith.constant 0 : index
      %c0_42 = arith.constant 0 : index
      %44 = vector.load %arg8[%c0_40, %c0_41, %c0_42] : memref<4x16x1xf32, #tpu.memory_space<vmem>>, vector<4x16x1xf32>
      tpu.vector_store %arg8[%c0_40, %c0_41, %c0_42], %43 {strides = array<i32>} : memref<4x16x1xf32, #tpu.memory_space<vmem>>, vector<4x16x1xf32>,
      %cst_43 = arith.constant 0.000000e+00 : f32
      %45 = vector.broadcast %cst_43 : f32 to vector<4x16x1xf32>
      %c0_44 = arith.constant 0 : index
      %c0_45 = arith.constant 0 : index
      %c0_46 = arith.constant 0 : index
      %46 = vector.load %arg9[%c0_44, %c0_45, %c0_46] : memref<4x16x1xf32, #tpu.memory_space<vmem>>, vector<4x16x1xf32>
      tpu.vector_store %arg9[%c0_44, %c0_45, %c0_46], %45 {strides = array<i32>} : memref<4x16x1xf32, #tpu.memory_space<vmem>>, vector<4x16x1xf32>,
      %cst_47 = arith.constant 0.000000e+00 : f32
      %47 = vector.broadcast %cst_47 : f32 to vector<4x16x8xf32>
      %c0_48 = arith.constant 0 : index
      %c0_49 = arith.constant 0 : index
      %c0_50 = arith.constant 0 : index
      %48 = vector.load %arg10[%c0_48, %c0_49, %c0_50] : memref<4x16x8xf32, #tpu.memory_space<vmem>>, vector<4x16x8xf32>
      tpu.vector_store %arg10[%c0_48, %c0_49, %c0_50], %47 {strides = array<i32>} : memref<4x16x8xf32, #tpu.memory_space<vmem>>, vector<4x16x8xf32>,
    } else {
    }
    %c0 = arith.constant 0 : index
    %c0_1 = arith.constant 0 : index
    %c0_2 = arith.constant 0 : index
    %c0_3 = arith.constant 0 : index
    %3 = vector.load %arg3[%c0, %c0_1, %c0_2, %c0_3] : memref<1x4x16x8xbf16, #tpu.memory_space<vmem>>, vector<1x4x16x8xbf16>
    %4 = vector.shape_cast %3 : vector<1x4x16x8xbf16> to vector<4x16x8xbf16>
    %c0_4 = arith.constant 0 : index
    %c0_5 = arith.constant 0 : index
    %c0_6 = arith.constant 0 : index
    %c0_7 = arith.constant 0 : index
    %5 = vector.load %arg4[%c0_4, %c0_5, %c0_6, %c0_7] : memref<1x4x16x8xbf16, #tpu.memory_space<vmem>>, vector<1x4x16x8xbf16>
    %6 = vector.shape_cast %5 : vector<1x4x16x8xbf16> to vector<4x16x8xbf16>
    %c0_8 = arith.constant 0 : index
    %c0_9 = arith.constant 0 : index
    %c0_10 = arith.constant 0 : index
    %c0_11 = arith.constant 0 : index
    %7 = vector.load %arg5[%c0_8, %c0_9, %c0_10, %c0_11] : memref<1x4x16x8xbf16, #tpu.memory_space<vmem>>, vector<1x4x16x8xbf16>
    %8 = vector.shape_cast %7 : vector<1x4x16x8xbf16> to vector<4x16x8xbf16>
    "tpu.trace_start"() <{level = 10 : i32, message = "hqd,hkd->hqk"}> : () -> ()
    %cst = arith.constant dense<0.000000e+00> : vector<4x16x16xf32>
    %9 = tpu.matmul %4, %6, %cst {dimension_numbers = #tpu.dot_dimension_numbers<[2], [2], [1], [1], [0, 0, 0, 1, 1, 1], [0], [0]>} : vector<4x16x8xbf16>, vector<4x16x8xbf16>, vector<4x16x16xf32> -> vector<4x16x16xf32>
    "tpu.trace_stop"() : () -> ()
    %cst_12 = arith.constant 0.353553385 : f32
    %10 = vector.broadcast %cst_12 : f32 to vector<4x16x16xf32>
    %11 = arith.mulf %9, %10 : vector<4x16x16xf32>
    %c0_13 = arith.constant 0 : index
    %c0_14 = arith.constant 0 : index
    %c0_15 = arith.constant 0 : index
    %12 = vector.load %arg6[%c0_13, %c0_14, %c0_15] : memref<1x1x16xf32, #tpu.memory_space<vmem>>, vector<1x1x16xf32>
    %13 = vector.shape_cast %12 : vector<1x1x16xf32> to vector<1x16xf32>
    %14 = vector.shape_cast %13 : vector<1x16xf32> to vector<1x1x16xf32>
    %15 = vector.broadcast %14 : vector<1x1x16xf32> to vector<4x16x16xf32>
    %16 = arith.addf %11, %15 : vector<4x16x16xf32>
    %c0_16 = arith.constant 0 : index
    %c0_17 = arith.constant 0 : index
    %c0_18 = arith.constant 0 : index
    %17 = vector.load %arg8[%c0_16, %c0_17, %c0_18] : memref<4x16x1xf32, #tpu.memory_space<vmem>>, vector<4x16x1xf32>
    %cst_19 = arith.constant dense<0xFF800000> : vector<4x16xf32>
    %18 = vector.multi_reduction <maximumf>, %16, %cst_19 [2] : vector<4x16x16xf32> to vector<4x16xf32>
    %19 = vector.shape_cast %18 : vector<4x16xf32> to vector<4x16x1xf32>
    %20 = arith.maximumf %17, %19 : vector<4x16x1xf32>
    %21 = arith.subf %17, %20 : vector<4x16x1xf32>
    %22 = math.exp %21 : vector<4x16x1xf32>
    %23 = vector.broadcast %20 : vector<4x16x1xf32> to vector<4x16x16xf32>
    %24 = arith.subf %16, %23 : vector<4x16x16xf32>
    %25 = math.exp %24 : vector<4x16x16xf32>
    %c0_20 = arith.constant 0 : index
    %c0_21 = arith.constant 0 : index
    %c0_22 = arith.constant 0 : index
    %26 = vector.load %arg9[%c0_20, %c0_21, %c0_22] : memref<4x16x1xf32, #tpu.memory_space<vmem>>, vector<4x16x1xf32>
    %27 = arith.mulf %22, %26 : vector<4x16x1xf32>
    %cst_23 = arith.constant dense<0.000000e+00> : vector<4x16xf32>
    %28 = vector.multi_reduction <add>, %25, %cst_23 [2] : vector<4x16x16xf32> to vector<4x16xf32>
    %29 = vector.shape_cast %28 : vector<4x16xf32> to vector<4x16x1xf32>
    %30 = arith.addf %27, %29 : vector<4x16x1xf32>
    %c0_24 = arith.constant 0 : index
    %c0_25 = arith.constant 0 : index
    %c0_26 = arith.constant 0 : index
    %31 = vector.load %arg9[%c0_24, %c0_25, %c0_26] : memref<4x16x1xf32, #tpu.memory_space<vmem>>, vector<4x16x1xf32>
    tpu.vector_store %arg9[%c0_24, %c0_25, %c0_26], %30 {strides = array<i32>} : memref<4x16x1xf32, #tpu.memory_space<vmem>>, vector<4x16x1xf32>,
    %c0_27 = arith.constant 0 : index
    %c0_28 = arith.constant 0 : index
    %c0_29 = arith.constant 0 : index
    %32 = vector.load %arg10[%c0_27, %c0_28, %c0_29] : memref<4x16x8xf32, #tpu.memory_space<vmem>>, vector<4x16x8xf32>
    %33 = vector.broadcast %22 : vector<4x16x1xf32> to vector<4x16x8xf32>
    %34 = arith.mulf %33, %32 : vector<4x16x8xf32>
    %35 = arith.truncf %25 : vector<4x16x16xf32> to vector<4x16x16xbf16>
    "tpu.trace_start"() <{level = 10 : i32, message = "hqk,hkd->hqd"}> : () -> ()
    %cst_30 = arith.constant dense<0.000000e+00> : vector<4x16x8xf32>
    %36 = tpu.matmul %35, %8, %cst_30 {dimension_numbers = #tpu.dot_dimension_numbers<[2], [1], [1], [2], [0, 0, 0, 1, 1, 2], [0], [0]>} : vector<4x16x16xbf16>, vector<4x16x8xbf16>, vector<4x16x8xf32> -> vector<4x16x8xf32>
    "tpu.trace_stop"() : () -> ()
    %37 = arith.addf %34, %36 : vector<4x16x8xf32>
    %c0_31 = arith.constant 0 : index
    %c0_32 = arith.constant 0 : index
    %c0_33 = arith.constant 0 : index
    %38 = vector.load %arg10[%c0_31, %c0_32, %c0_33] : memref<4x16x8xf32, #tpu.memory_space<vmem>>, vector<4x16x8xf32>
    tpu.vector_store %arg10[%c0_31, %c0_32, %c0_33], %37 {strides = array<i32>} : memref<4x16x8xf32, #tpu.memory_space<vmem>>, vector<4x16x8xf32>,
    %c0_34 = arith.constant 0 : index
    %c0_35 = arith.constant 0 : index
    %c0_36 = arith.constant 0 : index
    %39 = vector.load %arg8[%c0_34, %c0_35, %c0_36] : memref<4x16x1xf32, #tpu.memory_space<vmem>>, vector<4x16x1xf32>
    tpu.vector_store %arg8[%c0_34, %c0_35, %c0_36], %20 {strides = array<i32>} : memref<4x16x1xf32, #tpu.memory_space<vmem>>, vector<4x16x1xf32>,
    %c0_i32_37 = arith.constant 0 : i32
    %40 = arith.cmpi eq, %arg2, %c0_i32_37 : i32
    %41 = arith.extui %40 : i1 to i32
    %c0_i32_38 = arith.constant 0 : i32
    %42 = arith.cmpi ne, %41, %c0_i32_38 : i32
    scf.if %42 {
      %c0_39 = arith.constant 0 : index
      %c0_40 = arith.constant 0 : index
      %c0_41 = arith.constant 0 : index
      %43 = vector.load %arg10[%c0_39, %c0_40, %c0_41] : memref<4x16x8xf32, #tpu.memory_space<vmem>>, vector<4x16x8xf32>
      %c0_42 = arith.constant 0 : index
      %c0_43 = arith.constant 0 : index
      %c0_44 = arith.constant 0 : index
      %44 = vector.load %arg9[%c0_42, %c0_43, %c0_44] : memref<4x16x1xf32, #tpu.memory_space<vmem>>, vector<4x16x1xf32>
      %45 = tpu.reciprocal %44 {approx = true} : vector<4x16x1xf32> -> vector<4x16x1xf32>
      %46 = vector.broadcast %45 : vector<4x16x1xf32> to vector<4x16x8xf32>
      %47 = arith.mulf %43, %46 : vector<4x16x8xf32>
      %48 = arith.truncf %47 : vector<4x16x8xf32> to vector<4x16x8xbf16>
      %c0_45 = arith.constant 0 : index
      %c0_46 = arith.constant 0 : index
      %c0_47 = arith.constant 0 : index
      %c0_48 = arith.constant 0 : index
      %49 = vector.load %arg7[%c0_45, %c0_46, %c0_47, %c0_48] : memref<1x4x16x8xbf16, #tpu.memory_space<vmem>>, vector<1x4x16x8xbf16>
      %50 = vector.shape_cast %49 : vector<1x4x16x8xbf16> to vector<4x16x8xbf16>
      %51 = vector.shape_cast %48 : vector<4x16x8xbf16> to vector<1x4x16x8xbf16>
      tpu.vector_store %arg7[%c0_45, %c0_46, %c0_47, %c0_48], %51 {strides = array<i32>} : memref<1x4x16x8xbf16, #tpu.memory_space<vmem>>, vector<1x4x16x8xbf16>,
    } else {
    }
    return
  }
  func.func @transform_0(%arg0: i32, %arg1: i32, %arg2: i32) -> (i32, i32, i32, i32) {
    %c0_i32 = arith.constant 0 : i32
    %c0_i32_0 = arith.constant 0 : i32
    %c0_i32_1 = arith.constant 0 : i32
    return %arg0, %c0_i32, %arg1, %c0_i32_0 : i32, i32, i32, i32
  }
  func.func @transform_1(%arg0: i32, %arg1: i32, %arg2: i32) -> (i32, i32, i32, i32) {
    %c0_i32 = arith.constant 0 : i32
    %c0_i32_0 = arith.constant 0 : i32
    %c0_i32_1 = arith.constant 0 : i32
    return %arg0, %c0_i32, %arg2, %c0_i32_0 : i32, i32, i32, i32
  }
  func.func @transform_2(%arg0: i32, %arg1: i32, %arg2: i32) -> (i32, i32, i32, i32) {
    %c0_i32 = arith.constant 0 : i32
    %c0_i32_0 = arith.constant 0 : i32
    %c0_i32_1 = arith.constant 0 : i32
    return %arg0, %c0_i32, %arg2, %c0_i32_0 : i32, i32, i32, i32
  }
  func.func @transform_3(%arg0: i32, %arg1: i32, %arg2: i32) -> (i32, i32, i32) {
    %c0_i32 = arith.constant 0 : i32
    %c0_i32_0 = arith.constant 0 : i32
    return %arg0, %c0_i32, %arg2 : i32, i32, i32
  }
  func.func @transform_4(%arg0: i32, %arg1: i32, %arg2: i32) -> (i32, i32, i32, i32) {
    %c0_i32 = arith.constant 0 : i32
    %c0_i32_0 = arith.constant 0 : i32
    %c0_i32_1 = arith.constant 0 : i32
    return %arg0, %c0_i32, %arg1, %c0_i32_0 : i32, i32, i32, i32
  }
}

module attributes {stable_mosaic.version = 11 : i64} {
  func.func @_layernorm_kernel(%arg0: i32, %arg1: memref<32x32xbf16, #tpu.memory_space<vmem>>, %arg2: memref<1x32xf32, #tpu.memory_space<vmem>>, %arg3: memref<1x32xf32, #tpu.memory_space<vmem>>, %arg4: memref<32x32xf32, #tpu.memory_space<vmem>>) attributes {dimension_semantics = [#tpu.dimension_semantics<parallel>], iteration_bounds = array<i64: 1>, scalar_prefetch = 0 : i64, scratch_operands = 0 : i64, tpu.core_type = #tpu.core_type<tc>, window_params = [{transform_indices = @transform_0, window_bounds = array<i64: 32, 32>}, {pipeline_mode = #tpu.pipeline_mode<synchronous>, transform_indices = @transform_1, window_bounds = array<i64: 1, 32>}, {pipeline_mode = #tpu.pipeline_mode<synchronous>, transform_indices = @transform_2, window_bounds = array<i64: 1, 32>}, {transform_indices = @transform_3, window_bounds = array<i64: 32, 32>}]} {
    %c0 = arith.constant 0 : index
    %c0_0 = arith.constant 0 : index
    %0 = vector.load %arg1[%c0, %c0_0] : memref<32x32xbf16, #tpu.memory_space<vmem>>, vector<32x32xbf16>
    %1 = arith.extf %0 : vector<32x32xbf16> to vector<32x32xf32>
    %cst = arith.constant dense<0.000000e+00> : vector<32xf32>
    %2 = vector.multi_reduction <add>, %1, %cst [1] : vector<32x32xf32> to vector<32xf32>
    %3 = vector.shape_cast %2 : vector<32xf32> to vector<32x1xf32>
    %cst_1 = arith.constant 3.200000e+01 : f32
    %4 = vector.broadcast %cst_1 : f32 to vector<32x1xf32>
    %5 = arith.divf %3, %4 : vector<32x1xf32>
    %6 = vector.broadcast %5 : vector<32x1xf32> to vector<32x32xf32>
    %7 = arith.subf %1, %6 : vector<32x32xf32>
    %8 = arith.mulf %7, %7 : vector<32x32xf32>
    %cst_2 = arith.constant dense<0.000000e+00> : vector<32xf32>
    %9 = vector.multi_reduction <add>, %8, %cst_2 [1] : vector<32x32xf32> to vector<32xf32>
    %10 = vector.shape_cast %9 : vector<32xf32> to vector<32x1xf32>
    %cst_3 = arith.constant 3.200000e+01 : f32
    %11 = vector.broadcast %cst_3 : f32 to vector<32x1xf32>
    %12 = arith.divf %10, %11 : vector<32x1xf32>
    %cst_4 = arith.constant 9.99999974E-6 : f32
    %13 = vector.broadcast %cst_4 : f32 to vector<32x1xf32>
    %14 = arith.addf %12, %13 : vector<32x1xf32>
    %15 = math.rsqrt %14 : vector<32x1xf32>
    %16 = vector.broadcast %15 : vector<32x1xf32> to vector<32x32xf32>
    %17 = arith.mulf %7, %16 : vector<32x32xf32>
    %c0_5 = arith.constant 0 : index
    %c0_6 = arith.constant 0 : index
    %18 = vector.load %arg2[%c0_5, %c0_6] : memref<1x32xf32, #tpu.memory_space<vmem>>, vector<1x32xf32>
    %19 = vector.broadcast %18 : vector<1x32xf32> to vector<32x32xf32>
    %20 = arith.mulf %17, %19 : vector<32x32xf32>
    %c0_7 = arith.constant 0 : index
    %c0_8 = arith.constant 0 : index
    %21 = vector.load %arg3[%c0_7, %c0_8] : memref<1x32xf32, #tpu.memory_space<vmem>>, vector<1x32xf32>
    %22 = vector.broadcast %21 : vector<1x32xf32> to vector<32x32xf32>
    %23 = arith.addf %20, %22 : vector<32x32xf32>
    %c0_9 = arith.constant 0 : index
    %c0_10 = arith.constant 0 : index
    %24 = vector.load %arg4[%c0_9, %c0_10] : memref<32x32xf32, #tpu.memory_space<vmem>>, vector<32x32xf32>
    tpu.vector_store %arg4[%c0_9, %c0_10], %23 {strides = array<i32>} : memref<32x32xf32, #tpu.memory_space<vmem>>, vector<32x32xf32>,
    return
  }
  func.func @transform_0(%arg0: i32) -> (i32, i32) {
    %c0_i32 = arith.constant 0 : i32
    %c0_i32_0 = arith.constant 0 : i32
    return %arg0, %c0_i32 : i32, i32
  }
  func.func @transform_1(%arg0: i32) -> (i32, i32) {
    %c0_i32 = arith.constant 0 : i32
    %c0_i32_0 = arith.constant 0 : i32
    %c0_i32_1 = arith.constant 0 : i32
    return %c0_i32, %c0_i32_0 : i32, i32
  }
  func.func @transform_2(%arg0: i32) -> (i32, i32) {
    %c0_i32 = arith.constant 0 : i32
    %c0_i32_0 = arith.constant 0 : i32
    %c0_i32_1 = arith.constant 0 : i32
    return %c0_i32, %c0_i32_0 : i32, i32
  }
  func.func @transform_3(%arg0: i32) -> (i32, i32) {
    %c0_i32 = arith.constant 0 : i32
    %c0_i32_0 = arith.constant 0 : i32
    return %arg0, %c0_i32 : i32, i32
  }
}

module attributes {stable_mosaic.version = 11 : i64} {
  func.func @_matmul_res_kernel(%arg0: i32, %arg1: i32, %arg2: memref<32x32xbf16, #tpu.memory_space<vmem>>, %arg3: memref<32x32xbf16, #tpu.memory_space<vmem>>, %arg4: memref<1x32xf32, #tpu.memory_space<vmem>>, %arg5: memref<32x32xbf16, #tpu.memory_space<vmem>>, %arg6: memref<32x32xbf16, #tpu.memory_space<vmem>>) attributes {dimension_semantics = [#tpu.dimension_semantics<parallel>, #tpu.dimension_semantics<parallel>], iteration_bounds = array<i64: 1, 1>, scalar_prefetch = 0 : i64, scratch_operands = 0 : i64, tpu.core_type = #tpu.core_type<tc>, window_params = [{transform_indices = @transform_0, window_bounds = array<i64: 32, 32>}, {transform_indices = @transform_1, window_bounds = array<i64: 32, 32>}, {transform_indices = @transform_2, window_bounds = array<i64: 1, 32>}, {transform_indices = @transform_3, window_bounds = array<i64: 32, 32>}, {transform_indices = @transform_4, window_bounds = array<i64: 32, 32>}]} {
    %c0 = arith.constant 0 : index
    %c0_0 = arith.constant 0 : index
    %0 = vector.load %arg2[%c0, %c0_0] : memref<32x32xbf16, #tpu.memory_space<vmem>>, vector<32x32xbf16>
    %c0_1 = arith.constant 0 : index
    %c0_2 = arith.constant 0 : index
    %1 = vector.load %arg3[%c0_1, %c0_2] : memref<32x32xbf16, #tpu.memory_space<vmem>>, vector<32x32xbf16>
    %cst = arith.constant dense<0.000000e+00> : vector<32x32xf32>
    %2 = tpu.matmul %0, %1, %cst {dimension_numbers = #tpu.dot_dimension_numbers<[1], [0], [0], [1], [0, 0, 1, 1], [], []>} : vector<32x32xbf16>, vector<32x32xbf16>, vector<32x32xf32> -> vector<32x32xf32>
    %c0_3 = arith.constant 0 : index
    %c0_4 = arith.constant 0 : index
    %3 = vector.load %arg4[%c0_3, %c0_4] : memref<1x32xf32, #tpu.memory_space<vmem>>, vector<1x32xf32>
    %4 = vector.broadcast %3 : vector<1x32xf32> to vector<32x32xf32>
    %5 = arith.addf %2, %4 : vector<32x32xf32>
    %c0_5 = arith.constant 0 : index
    %c0_6 = arith.constant 0 : index
    %6 = vector.load %arg5[%c0_5, %c0_6] : memref<32x32xbf16, #tpu.memory_space<vmem>>, vector<32x32xbf16>
    %7 = arith.extf %6 : vector<32x32xbf16> to vector<32x32xf32>
    %8 = arith.addf %5, %7 : vector<32x32xf32>
    %9 = arith.truncf %8 : vector<32x32xf32> to vector<32x32xbf16>
    %c0_7 = arith.constant 0 : index
    %c0_8 = arith.constant 0 : index
    %10 = vector.load %arg6[%c0_7, %c0_8] : memref<32x32xbf16, #tpu.memory_space<vmem>>, vector<32x32xbf16>
    tpu.vector_store %arg6[%c0_7, %c0_8], %9 {strides = array<i32>} : memref<32x32xbf16, #tpu.memory_space<vmem>>, vector<32x32xbf16>,
    return
  }
  func.func @transform_0(%arg0: i32, %arg1: i32) -> (i32, i32) {
    %c0_i32 = arith.constant 0 : i32
    %c0_i32_0 = arith.constant 0 : i32
    return %arg0, %c0_i32 : i32, i32
  }
  func.func @transform_1(%arg0: i32, %arg1: i32) -> (i32, i32) {
    %c0_i32 = arith.constant 0 : i32
    %c0_i32_0 = arith.constant 0 : i32
    return %c0_i32, %arg1 : i32, i32
  }
  func.func @transform_2(%arg0: i32, %arg1: i32) -> (i32, i32) {
    %c0_i32 = arith.constant 0 : i32
    %c0_i32_0 = arith.constant 0 : i32
    return %c0_i32, %arg1 : i32, i32
  }
  func.func @transform_3(%arg0: i32, %arg1: i32) -> (i32, i32) {
    %c0_i32 = arith.constant 0 : i32
    return %arg0, %arg1 : i32, i32
  }
  func.func @transform_4(%arg0: i32, %arg1: i32) -> (i32, i32) {
    %c0_i32 = arith.constant 0 : i32
    return %arg0, %arg1 : i32, i32
  }
}

module attributes {stable_mosaic.version = 11 : i64} {
  func.func @_mlp_kernel(%arg0: i32, %arg1: memref<32x32xbf16, #tpu.memory_space<vmem>>, %arg2: memref<1x32xf32, #tpu.memory_space<vmem>>, %arg3: memref<1x32xf32, #tpu.memory_space<vmem>>, %arg4: memref<32x128xbf16, #tpu.memory_space<vmem>>, %arg5: memref<1x128xf32, #tpu.memory_space<vmem>>, %arg6: memref<128x32xbf16, #tpu.memory_space<vmem>>, %arg7: memref<1x32xf32, #tpu.memory_space<vmem>>, %arg8: memref<32x32xbf16, #tpu.memory_space<vmem>>) attributes {dimension_semantics = [#tpu.dimension_semantics<parallel>], iteration_bounds = array<i64: 1>, scalar_prefetch = 0 : i64, scratch_operands = 0 : i64, tpu.core_type = #tpu.core_type<tc>, window_params = [{transform_indices = @transform_0, window_bounds = array<i64: 32, 32>}, {pipeline_mode = #tpu.pipeline_mode<synchronous>, transform_indices = @transform_1, window_bounds = array<i64: 1, 32>}, {pipeline_mode = #tpu.pipeline_mode<synchronous>, transform_indices = @transform_2, window_bounds = array<i64: 1, 32>}, {pipeline_mode = #tpu.pipeline_mode<synchronous>, transform_indices = @transform_3, window_bounds = array<i64: 32, 128>}, {pipeline_mode = #tpu.pipeline_mode<synchronous>, transform_indices = @transform_4, window_bounds = array<i64: 1, 128>}, {pipeline_mode = #tpu.pipeline_mode<synchronous>, transform_indices = @transform_5, window_bounds = array<i64: 128, 32>}, {pipeline_mode = #tpu.pipeline_mode<synchronous>, transform_indices = @transform_6, window_bounds = array<i64: 1, 32>}, {transform_indices = @transform_7, window_bounds = array<i64: 32, 32>}]} {
    %c0 = arith.constant 0 : index
    %c0_0 = arith.constant 0 : index
    %0 = vector.load %arg1[%c0, %c0_0] : memref<32x32xbf16, #tpu.memory_space<vmem>>, vector<32x32xbf16>
    %1 = arith.extf %0 : vector<32x32xbf16> to vector<32x32xf32>
    %cst = arith.constant dense<0.000000e+00> : vector<32xf32>
    %2 = vector.multi_reduction <add>, %1, %cst [1] : vector<32x32xf32> to vector<32xf32>
    %3 = vector.shape_cast %2 : vector<32xf32> to vector<32x1xf32>
    %cst_1 = arith.constant 3.200000e+01 : f32
    %4 = vector.broadcast %cst_1 : f32 to vector<32x1xf32>
    %5 = arith.divf %3, %4 : vector<32x1xf32>
    %6 = vector.broadcast %5 : vector<32x1xf32> to vector<32x32xf32>
    %7 = arith.subf %1, %6 : vector<32x32xf32>
    %8 = arith.mulf %7, %7 : vector<32x32xf32>
    %cst_2 = arith.constant dense<0.000000e+00> : vector<32xf32>
    %9 = vector.multi_reduction <add>, %8, %cst_2 [1] : vector<32x32xf32> to vector<32xf32>
    %10 = vector.shape_cast %9 : vector<32xf32> to vector<32x1xf32>
    %cst_3 = arith.constant 3.200000e+01 : f32
    %11 = vector.broadcast %cst_3 : f32 to vector<32x1xf32>
    %12 = arith.divf %10, %11 : vector<32x1xf32>
    %cst_4 = arith.constant 9.99999974E-6 : f32
    %13 = vector.broadcast %cst_4 : f32 to vector<32x1xf32>
    %14 = arith.addf %12, %13 : vector<32x1xf32>
    %15 = math.rsqrt %14 : vector<32x1xf32>
    %16 = vector.broadcast %15 : vector<32x1xf32> to vector<32x32xf32>
    %17 = arith.mulf %7, %16 : vector<32x32xf32>
    %c0_5 = arith.constant 0 : index
    %c0_6 = arith.constant 0 : index
    %18 = vector.load %arg2[%c0_5, %c0_6] : memref<1x32xf32, #tpu.memory_space<vmem>>, vector<1x32xf32>
    %19 = vector.broadcast %18 : vector<1x32xf32> to vector<32x32xf32>
    %20 = arith.mulf %17, %19 : vector<32x32xf32>
    %c0_7 = arith.constant 0 : index
    %c0_8 = arith.constant 0 : index
    %21 = vector.load %arg3[%c0_7, %c0_8] : memref<1x32xf32, #tpu.memory_space<vmem>>, vector<1x32xf32>
    %22 = vector.broadcast %21 : vector<1x32xf32> to vector<32x32xf32>
    %23 = arith.addf %20, %22 : vector<32x32xf32>
    %24 = arith.truncf %23 : vector<32x32xf32> to vector<32x32xbf16>
    %c0_9 = arith.constant 0 : index
    %c0_10 = arith.constant 0 : index
    %25 = vector.load %arg4[%c0_9, %c0_10] : memref<32x128xbf16, #tpu.memory_space<vmem>>, vector<32x128xbf16>
    %cst_11 = arith.constant dense<0.000000e+00> : vector<32x128xf32>
    %26 = tpu.matmul %24, %25, %cst_11 {dimension_numbers = #tpu.dot_dimension_numbers<[1], [0], [0], [1], [0, 0, 1, 1], [], []>} : vector<32x32xbf16>, vector<32x128xbf16>, vector<32x128xf32> -> vector<32x128xf32>
    %c0_12 = arith.constant 0 : index
    %c0_13 = arith.constant 0 : index
    %27 = vector.load %arg5[%c0_12, %c0_13] : memref<1x128xf32, #tpu.memory_space<vmem>>, vector<1x128xf32>
    %28 = vector.broadcast %27 : vector<1x128xf32> to vector<32x128xf32>
    %29 = arith.addf %26, %28 : vector<32x128xf32>
    %30 = arith.mulf %29, %29 : vector<32x128xf32>
    %31 = arith.mulf %29, %30 : vector<32x128xf32>
    %cst_14 = arith.constant 4.471500e-02 : f32
    %32 = vector.broadcast %cst_14 : f32 to vector<32x128xf32>
    %33 = arith.mulf %32, %31 : vector<32x128xf32>
    %34 = arith.addf %29, %33 : vector<32x128xf32>
    %cst_15 = arith.constant 0.797884583 : f32
    %35 = vector.broadcast %cst_15 : f32 to vector<32x128xf32>
    %36 = arith.mulf %35, %34 : vector<32x128xf32>
    %37 = math.tanh %36 : vector<32x128xf32>
    %cst_16 = arith.constant 1.000000e+00 : f32
    %38 = vector.broadcast %cst_16 : f32 to vector<32x128xf32>
    %39 = arith.addf %38, %37 : vector<32x128xf32>
    %cst_17 = arith.constant 5.000000e-01 : f32
    %40 = vector.broadcast %cst_17 : f32 to vector<32x128xf32>
    %41 = arith.mulf %40, %39 : vector<32x128xf32>
    %42 = arith.mulf %29, %41 : vector<32x128xf32>
    %43 = arith.truncf %42 : vector<32x128xf32> to vector<32x128xbf16>
    %c0_18 = arith.constant 0 : index
    %c0_19 = arith.constant 0 : index
    %44 = vector.load %arg6[%c0_18, %c0_19] : memref<128x32xbf16, #tpu.memory_space<vmem>>, vector<128x32xbf16>
    %cst_20 = arith.constant dense<0.000000e+00> : vector<32x32xf32>
    %45 = tpu.matmul %43, %44, %cst_20 {dimension_numbers = #tpu.dot_dimension_numbers<[1], [0], [0], [1], [0, 0, 1, 1], [], []>} : vector<32x128xbf16>, vector<128x32xbf16>, vector<32x32xf32> -> vector<32x32xf32>
    %c0_21 = arith.constant 0 : index
    %c0_22 = arith.constant 0 : index
    %46 = vector.load %arg7[%c0_21, %c0_22] : memref<1x32xf32, #tpu.memory_space<vmem>>, vector<1x32xf32>
    %47 = vector.broadcast %46 : vector<1x32xf32> to vector<32x32xf32>
    %48 = arith.addf %45, %47 : vector<32x32xf32>
    %49 = arith.addf %1, %48 : vector<32x32xf32>
    %50 = arith.truncf %49 : vector<32x32xf32> to vector<32x32xbf16>
    %c0_23 = arith.constant 0 : index
    %c0_24 = arith.constant 0 : index
    %51 = vector.load %arg8[%c0_23, %c0_24] : memref<32x32xbf16, #tpu.memory_space<vmem>>, vector<32x32xbf16>
    tpu.vector_store %arg8[%c0_23, %c0_24], %50 {strides = array<i32>} : memref<32x32xbf16, #tpu.memory_space<vmem>>, vector<32x32xbf16>,
    return
  }
  func.func @transform_0(%arg0: i32) -> (i32, i32) {
    %c0_i32 = arith.constant 0 : i32
    %c0_i32_0 = arith.constant 0 : i32
    return %arg0, %c0_i32 : i32, i32
  }
  func.func @transform_1(%arg0: i32) -> (i32, i32) {
    %c0_i32 = arith.constant 0 : i32
    %c0_i32_0 = arith.constant 0 : i32
    %c0_i32_1 = arith.constant 0 : i32
    return %c0_i32, %c0_i32_0 : i32, i32
  }
  func.func @transform_2(%arg0: i32) -> (i32, i32) {
    %c0_i32 = arith.constant 0 : i32
    %c0_i32_0 = arith.constant 0 : i32
    %c0_i32_1 = arith.constant 0 : i32
    return %c0_i32, %c0_i32_0 : i32, i32
  }
  func.func @transform_3(%arg0: i32) -> (i32, i32) {
    %c0_i32 = arith.constant 0 : i32
    %c0_i32_0 = arith.constant 0 : i32
    %c0_i32_1 = arith.constant 0 : i32
    return %c0_i32, %c0_i32_0 : i32, i32
  }
  func.func @transform_4(%arg0: i32) -> (i32, i32) {
    %c0_i32 = arith.constant 0 : i32
    %c0_i32_0 = arith.constant 0 : i32
    %c0_i32_1 = arith.constant 0 : i32
    return %c0_i32, %c0_i32_0 : i32, i32
  }
  func.func @transform_5(%arg0: i32) -> (i32, i32) {
    %c0_i32 = arith.constant 0 : i32
    %c0_i32_0 = arith.constant 0 : i32
    %c0_i32_1 = arith.constant 0 : i32
    return %c0_i32, %c0_i32_0 : i32, i32
  }
  func.func @transform_6(%arg0: i32) -> (i32, i32) {
    %c0_i32 = arith.constant 0 : i32
    %c0_i32_0 = arith.constant 0 : i32
    %c0_i32_1 = arith.constant 0 : i32
    return %c0_i32, %c0_i32_0 : i32, i32
  }
  func.func @transform_7(%arg0: i32) -> (i32, i32) {
    %c0_i32 = arith.constant 0 : i32
    %c0_i32_0 = arith.constant 0 : i32
    return %arg0, %c0_i32 : i32, i32
  }
}

</mosaic_0001>

<llo_original>
// kernel: perception_forward.10
$region0: #{perception_forward.10}
  #allocation0 [shape = 'u32[]', space=smem, size = 0x4, offset = 0x4, fixed_abs, tag = 'smem constant byte address 0x4 - core index']
  #allocation1 [shape = 'u32[144,128]{1,0:T(1,128)}', space=vmem, size = 0x12000, scoped, tag = 'internal scratch']
  %s0 = inlined_call_operand.vmem [shape: bf16[2,16,64], index: 0, kind: input, shape index: {}]
  %s1 = inlined_call_operand.vmem [shape: bf16[64,32], index: 1, kind: input, shape index: {}]
  %s2 = inlined_call_operand.vmem [shape: f32[1,32], index: 2, kind: input, shape index: {}]
  %s3 = inlined_call_operand.vmem [shape: f32[16,32], index: 3, kind: input, shape index: {}]
  %s4 = inlined_call_operand.vmem [shape: bf16[2,16,32], index: 4, kind: output, shape index: {}]
  %s5 = sld [smem:[#allocation0]]
  $region49: #{perception_forward.10} parent=0
    _
  %s7 = ssub.s32 1, %s5
  %s8 = scalar_select 0, %s7, %s5
  loop: start=0, step=1, limit=4
  $region2: #{perception_forward.10} parent=0 // loop_pre_header
    _
  $region3: #{perception_forward.10} parent=0 // loop_header
    %s10 = sphi 0, %s14
    %p11 = scmp.ge.s32.totalorder %s10, 4
    %s17 = sphi 0, %s29
    %s18 = sphi 0, %s25
    %s19 = sphi 0, %s17
    %s20 = sphi 0, %s18
    %s21 = sphi 0, %s19
    %s22 = sphi 0, %s20
    %s34 = sphi 0, %s36
    %s37 = sphi 0, %s34
    %s38 = sphi 0, %s37
    %s54 = sphi 0, %s38
    %s58 = sphi 0, %s58
    %s60 = sphi 0, %s58
    %s61 = sphi 0, %s60
    %s75 = sphi 0, %s61
    %s79 = sphi 0, %s79
    %s81 = sphi 0, %s79
    %s82 = sphi 0, %s81
    %s96 = sphi 0, %s82
    %s102 = sphi 0, %s104
    %s105 = sphi 0, %s102
    %s106 = sphi 0, %s105
    %s122 = sphi 0, %s106
    %s130 = sphi 0, %s132
    %s133 = sphi 0, %s130
    %s134 = sphi 0, %s133
    %s150 = sphi 0, %s134
  $region4: #{perception_forward.10} parent=0 // loop_header_branch
    %13 = sbr.rel (%p11) target = $region8
  $region5: #{perception_forward.10} parent=0 // loop_body
    %s15 = ssub.s32 %s10, 1
    %s16 = ssub.s32 %s10, 2
    %s23 = sadd.s32 1, %s18
    %p24 = scmp.ge.s32.totalorder %s23, 1
    %s25 = scalar_select %p24, 0, %s23
    %s26 = sadd.s32 1, %s17
    %s27 = scalar_select %p24, %s26, %s17
    %p28 = scmp.ge.s32.totalorder %s27, 2
    %s29 = scalar_select %p28, 0, %s27
    %s30 = ssub.s32 %s17, %s29
    %s31 = ssub.s32 %s18, %s25
    %s32 = sor.u32 %s30, %s31
    %p33 = scmp.eq.s32.totalorder %s32, 0
    %s35 = sadd.s32 %s34, 1
    %s36 = scalar_select %p33, %s34, %s35
    %p39 = pneg %p33
    %p40 = scmp.eq.s32.totalorder %s10, 1
    %p41 = por %p39, %p40
    %p42 = scmp.ne.s32.totalorder %s34, %s37
    %p43 = scmp.eq.s32.totalorder %s10, 0
    %p44 = por %p42, %p43
    %p45 = scmp.ne.s32.totalorder %s34, %s37
    %p46 = scmp.eq.s32.totalorder %s15, 1
    %p47 = por %p45, %p46
    %p48 = scmp.ne.s32.totalorder %s37, %s38
    %p49 = scmp.eq.s32.totalorder %s15, 0
    %p50 = por %p48, %p49
    %p51 = scmp.ne.s32.totalorder %s37, %s38
    %p52 = scmp.eq.s32.totalorder %s16, 1
    %p53 = por %p51, %p52
    %p55 = scmp.ne.s32.totalorder %s38, %s54
    %p56 = scmp.eq.s32.totalorder %s16, 0
    %p57 = por %p55, %p56
    %s59 = sadd.s32 %s58, 1
    %p62 = scmp.eq.s32.totalorder %s10, 1
    %p63 = scmp.ne.s32.totalorder %s58, %s60
    %p64 = scmp.eq.s32.totalorder %s10, 0
    %p65 = por %p63, %p64
    %p66 = scmp.ne.s32.totalorder %s58, %s60
    %p67 = scmp.eq.s32.totalorder %s15, 1
    %p68 = por %p66, %p67
    %p69 = scmp.ne.s32.totalorder %s60, %s61
    %p70 = scmp.eq.s32.totalorder %s15, 0
    %p71 = por %p69, %p70
    %p72 = scmp.ne.s32.totalorder %s60, %s61
    %p73 = scmp.eq.s32.totalorder %s16, 1
    %p74 = por %p72, %p73
    %p76 = scmp.ne.s32.totalorder %s61, %s75
    %p77 = scmp.eq.s32.totalorder %s16, 0
    %p78 = por %p76, %p77
    %s80 = sadd.s32 %s79, 1
    %p83 = scmp.eq.s32.totalorder %s10, 1
    %p84 = scmp.ne.s32.totalorder %s79, %s81
    %p85 = scmp.eq.s32.totalorder %s10, 0
    %p86 = por %p84, %p85
    %p87 = scmp.ne.s32.totalorder %s79, %s81
    %p88 = scmp.eq.s32.totalorder %s15, 1
    %p89 = por %p87, %p88
    %p90 = scmp.ne.s32.totalorder %s81, %s82
    %p91 = scmp.eq.s32.totalorder %s15, 0
    %p92 = por %p90, %p91
    %p93 = scmp.ne.s32.totalorder %s81, %s82
    %p94 = scmp.eq.s32.totalorder %s16, 1
    %p95 = por %p93, %p94
    %p97 = scmp.ne.s32.totalorder %s82, %s96
    %p98 = scmp.eq.s32.totalorder %s16, 0
    %p99 = por %p97, %p98
    %s100 = ssub.s32 %s18, %s25
    %p101 = scmp.eq.s32.totalorder %s100, 0
    %s103 = sadd.s32 %s102, 1
    %s104 = scalar_select %p101, %s102, %s103
    %p107 = pneg %p101
    %p108 = scmp.eq.s32.totalorder %s10, 1
    %p109 = por %p107, %p108
    %p110 = scmp.ne.s32.totalorder %s102, %s105
    %p111 = scmp.eq.s32.totalorder %s10, 0
    %p112 = por %p110, %p111
    %p113 = scmp.ne.s32.totalorder %s102, %s105
    %p114 = scmp.eq.s32.totalorder %s15, 1
    %p115 = por %p113, %p114
    %p116 = scmp.ne.s32.totalorder %s105, %s106
    %p117 = scmp.eq.s32.totalorder %s15, 0
    %p118 = por %p116, %p117
    %p119 = scmp.ne.s32.totalorder %s105, %s106
    %p120 = scmp.eq.s32.totalorder %s16, 1
    %p121 = por %p119, %p120
    %p123 = scmp.ne.s32.totalorder %s106, %s122
    %p124 = scmp.eq.s32.totalorder %s16, 0
    %p125 = por %p123, %p124
    %s126 = ssub.s32 %s17, %s29
    %s127 = ssub.s32 %s18, %s25
    %s128 = sor.u32 %s126, %s127
    %p129 = scmp.eq.s32.totalorder %s128, 0
    %s131 = sadd.s32 %s130, 1
    %s132 = scalar_select %p129, %s130, %s131
    %p135 = pneg %p129
    %p136 = scmp.eq.s32.totalorder %s10, 1
    %p137 = por %p135, %p136
    %p138 = scmp.ne.s32.totalorder %s130, %s133
    %p139 = scmp.eq.s32.totalorder %s10, 0
    %p140 = por %p138, %p139
    %p141 = scmp.ne.s32.totalorder %s130, %s133
    %p142 = scmp.eq.s32.totalorder %s15, 1
    %p143 = por %p141, %p142
    %p144 = scmp.ne.s32.totalorder %s133, %s134
    %p145 = scmp.eq.s32.totalorder %s15, 0
    %p146 = por %p144, %p145
    %p147 = scmp.ne.s32.totalorder %s133, %s134
    %p148 = scmp.eq.s32.totalorder %s16, 1
    %p149 = por %p147, %p148
    %p151 = scmp.ne.s32.totalorder %s134, %s150
    %p152 = scmp.eq.s32.totalorder %s16, 0
    %p153 = por %p151, %p152
    %p154 = scmp.le.s32.totalorder 1, %s10
    %p155 = scmp.lt.s32.totalorder %s10, 3
    %p156 = pnand %p154, %p155
    %p157 = pneg %p156
    // Predicated region
    $region9: #{perception_forward.10} parent=5 // pred_check
      _
    $region10: #{perception_forward.10} parent=5 // pred_check_branch
      %159 = sbr.rel (%p156) target = $region12
    $region11: #{perception_forward.10} parent=5 // pred_region
      %s160 = ssub.s32 %s10, 1
      // Predicated region
      $region13: #{perception_forward.10} parent=11 // pred_check
        %p161 = pneg %p71
      $region14: #{perception_forward.10} parent=11 // pred_check_branch
        %163 = sbr.rel (%p161) target = $region16
      $region15: #{perception_forward.10} parent=11 // pred_region
        _
      $region16: #{perception_forward.10} parent=11 // pred_fallthru
        _
      // Predicated region
      $region17: #{perception_forward.10} parent=11 // pred_check
        %p164 = pneg %p92
      $region18: #{perception_forward.10} parent=11 // pred_check_branch
        %166 = sbr.rel (%p164) target = $region20
      $region19: #{perception_forward.10} parent=11 // pred_region
        _
      $region20: #{perception_forward.10} parent=11 // pred_fallthru
        _
      // Predicated region
      $region21: #{perception_forward.10} parent=11 // pred_check
        %p167 = pneg %p118
      $region22: #{perception_forward.10} parent=11 // pred_check_branch
        %169 = sbr.rel (%p167) target = $region24
      $region23: #{perception_forward.10} parent=11 // pred_region
        %s170 = smul.u32 2, %s20
        %p171 = scmp.lt.s32.totalorder %s170, 1
        %s172 = scalar_select %p171, %s170, 1
        %s173 = smul.addr %s172, 8
        %s174 = scalar_lea.vmem %s3, %s173
        %s175 = smul.u32 2, %s20
      $region24: #{perception_forward.10} parent=11 // pred_fallthru
        _
    $region12: #{perception_forward.10} parent=5 // pred_fallthru
      _
    %p176 = scmp.lt.s32.totalorder %s10, 2
    // Predicated region
    $region25: #{perception_forward.10} parent=5 // pred_check
      %p177 = pneg %p176
    $region26: #{perception_forward.10} parent=5 // pred_check_branch
      %179 = sbr.rel (%p177) target = $region28
    $region27: #{perception_forward.10} parent=5 // pred_region
      // Predicated region
      $region29: #{perception_forward.10} parent=27 // pred_check
        %p180 = pneg %p44
      $region30: #{perception_forward.10} parent=27 // pred_check_branch
        %182 = sbr.rel (%p180) target = $region32
      $region31: #{perception_forward.10} parent=27 // pred_region
        %s183 = smul.u32 2, %s18
        %p184 = scmp.lt.s32.totalorder %s17, 1
        %s185 = scalar_select %p184, %s17, 1
        %p186 = scmp.lt.s32.totalorder %s183, 1
        %s187 = scalar_select %p186, %s183, 1
        %s188 = smul.addr %s185, 2
        %s189 = sadd.s32 %s187, %s188
        %s190 = smul.addr %s189, 4
        %s191 = scalar_lea.vmem %s0, %s190
        %s192 = smul.u32 2, %s18
      $region32: #{perception_forward.10} parent=27 // pred_fallthru
        _
    $region28: #{perception_forward.10} parent=5 // pred_fallthru
      _
    %p193 = scmp.le.s32.totalorder 1, %s10
    %p194 = scmp.lt.s32.totalorder %s10, 3
    %p195 = pnand %p193, %p194
    %p196 = pneg %p195
    // Predicated region
    $region33: #{perception_forward.10} parent=5 // pred_check
      _
    $region34: #{perception_forward.10} parent=5 // pred_check_branch
      %198 = sbr.rel (%p195) target = $region36
    $region35: #{perception_forward.10} parent=5 // pred_region
      %s199 = ssub.s32 %s10, 1
      %s200 = smul.u32 2, %s20
      %p201 = scmp.lt.s32.totalorder %s19, 1
      %s202 = scalar_select %p201, %s19, 1
      %p203 = scmp.lt.s32.totalorder %s200, 1
      %s204 = scalar_select %p203, %s200, 1
      %s205 = smul.addr %s202, 2
      %s206 = sadd.s32 %s204, %s205
      %s207 = smul.addr %s206, 4
      %s208 = scalar_lea.vmem %s0, %s207
      %p209 = pneg %p50
      %p210 = pneg %p47
      %p211 = pneg %p71
      %p212 = pneg %p68
      %p213 = pneg %p92
      %p214 = pneg %p89
      %s215 = smul.u32 2, %s20
      %p216 = scmp.lt.s32.totalorder %s215, 1
      %s217 = scalar_select %p216, %s215, 1
      %s218 = smul.addr %s217, 8
      %s219 = scalar_lea.vmem %s3, %s218
      %p220 = pneg %p118
      %p221 = pneg %p115
      %p222 = pneg %p146
      %p223 = pneg %p143
      %s224 = smul.u32 2, %s20
      %p225 = scmp.lt.s32.totalorder %s19, 1
      %s226 = scalar_select %p225, %s19, 1
      %p227 = scmp.lt.s32.totalorder %s224, 1
      %s228 = scalar_select %p227, %s224, 1
      %s229 = smul.addr %s226, 2
      %s230 = sadd.s32 %s228, %s229
      %s231 = smul.addr %s230, 4
      %s232 = scalar_lea.vmem %s4, %s231
      %s233 = smul.u32 2, %s20
      %p234 = scmp.lt.s32.totalorder %s19, 1
      %s235 = scalar_select %p234, %s19, 1
      %p236 = scmp.lt.s32.totalorder %s233, 1
      %s237 = scalar_select %p236, %s233, 1
      %s238 = smul.addr %s235, 2
      %s239 = sadd.s32 %s237, %s238
      %s240 = smul.addr %s239, 4
      %s241 = scalar_lea.vmem %s0, %s240
      %s242 = smul.u32 2, %s20
      %s243 = smul.u32 2, %s20
      %p244 = scmp.lt.s32.totalorder %s243, 1
      %s245 = scalar_select %p244, %s243, 1
      %s246 = smul.addr %s245, 8
      %s247 = scalar_lea.vmem %s3, %s246
      %s248 = smul.u32 2, %s20
      %s249 = smul.u32 2, %s20
      %p250 = scmp.lt.s32.totalorder %s19, 1
      %s251 = scalar_select %p250, %s19, 1
      %p252 = scmp.lt.s32.totalorder %s249, 1
      %s253 = scalar_select %p252, %s249, 1
      %s254 = smul.addr %s251, 2
      %s255 = sadd.s32 %s253, %s254
      %s256 = smul.addr %s255, 4
      %s257 = scalar_lea.vmem %s4, %s256
      %s258 = smul.u32 2, %s20
      %v260 = vld [vmem:[%s241] sm:$0xf]
      %v261 = vld [vmem:[%s241 + $0x4] sm:$0xf]
      %v262 = vld [vmem:[%s1] sm:$0xf]
      %v263 = vld [vmem:[%s1 + $0x4] sm:$0xf]
      %v264 = vld [vmem:[%s1 + $0x8] sm:$0xf]
      %v265 = vld [vmem:[%s1 + $0xc] sm:$0xf]
      %v266 = vld [vmem:[%s1 + $0x10] sm:$0xf]
      %v267 = vld [vmem:[%s1 + $0x14] sm:$0xf]
      %v268 = vld [vmem:[%s1 + $0x18] sm:$0xf]
      %v269 = vld [vmem:[%s1 + $0x1c] sm:$0xf]
      %v270 = vld [vmem:[%s2] sm:$0x1]
      %v272 = vlaneseq
      %v273 = vshrl.u32 %v272, 7
      %v274 = vsub.s32 0, %v273
      %v275 = vrot.slane %v270, %v274
      %v279 = vunpack.c.l.b16 %v260
      %v280 = vunpack.c.l.b16 %v261
      %v281 = vpack.c.b16 %v280, %v279
      %v290 = vunpack.c.l.b16 %v262
      %v291 = vunpack.c.l.b16 %v263
      %v292 = vunpack.c.l.b16 %v264
      %v293 = vunpack.c.l.b16 %v265
      %v294 = vunpack.c.l.b16 %v266
      %v295 = vunpack.c.l.b16 %v267
      %v296 = vunpack.c.l.b16 %v268
      %v297 = vunpack.c.l.b16 %v269
      %v298 = vpack.c.b16 %v291, %v290
      %v299 = vpack.c.b16 %v293, %v292
      %v300 = vpack.c.b16 %v295, %v294
      %v301 = vpack.c.b16 %v297, %v296
      %vm306 = vcmask 523264
      %v308 = vsel %vm306, %v281, 0
      %310 = vmatprep.subr.bf16.mxu0 0
      %311 = vmatpush1.bf16.msra.mxu0 0
      %312 = vmatprep.subr.bf16.mxu0 0
      %313 = vmatpush1.bf16.msra.mxu0 0
      %314 = vmatprep.subr.bf16.mxu0 0
      %315 = vmatpush1.bf16.msra.mxu0 0
      %316 = vmatprep.subr.bf16.mxu0 0
      %317 = vmatpush1.bf16.msra.mxu0 0
      %318 = vmatprep.subr.bf16.mxu0 0
      %319 = vmatpush1.bf16.msra.mxu0 %v301
      %320 = vmatprep.subr.bf16.mxu0 0
      %321 = vmatpush1.bf16.msra.mxu0 %v300
      %322 = vmatprep.subr.bf16.mxu0 0
      %323 = vmatpush1.bf16.msra.mxu0 %v299
      %324 = vmatprep.subr.bf16.mxu0 0
      %325 = vmatpush1.bf16.msra.mxu0 %v298
      %326 = vmatprep.subr.bf16.mxu0 0
      %327 = vmatpush2.bf16.msra.mxu0 0
      %328 = vmatprep.subr.bf16.mxu0 0
      %329 = vmatpush2.bf16.msra.mxu0 0
      %330 = vmatprep.subr.bf16.mxu0 0
      %331 = vmatpush2.bf16.msra.mxu0 0
      %332 = vmatprep.subr.bf16.mxu0 0
      %333 = vmatpush2.bf16.msra.mxu0 0
      %334 = vmatprep.subr.bf16.mxu0 0
      %335 = vmatpush2.bf16.msra.mxu0 0
      %336 = vmatprep.subr.bf16.mxu0 0
      %337 = vmatpush2.bf16.msra.mxu0 0
      %338 = vmatprep.subr.bf16.mxu0 0
      %339 = vmatpush2.bf16.msra.mxu0 0
      %340 = vmatprep.subr.bf16.mxu0 0
      %341 = vmatpush2.bf16.msra.mxu0 0
      %342 = vmatprep.mubr.bf16.mxu0 0
      %343 = vmatmul.mubr.bf16.gmra.mxu0 %v308
      %v344 = vpop.f32.mrf.mxu0
      %v345 = vadd.f32 %v275, %v344
      %v346 = vpop.f32.mrf.mxu0
      %v347 = vpop.f32.mrf.mxu0
      %v348 = vadd.f32 %v275, %v347
      %v349 = vpop.f32.mrf.mxu0
      %350 = vdwg.mxu0
      %v351 = vld [vmem:[%s247] sm:$0xff]
      %v352 = vld [vmem:[%s247 + $0x8] sm:$0xff]
      %v353 = vadd.f32 %v345, %v351
      %v354 = vadd.f32 %v348, %v352
      %v355 = vpack.c.bf16 %v354, %v353
      %v357 = vunpack.c.l.b16 %v355
      %v358 = vunpack.c.h.b16 %v355
      %v359 = vpack.c.b16 %v357, %v357
      %v360 = vpack.c.b16 %v358, %v358
      %vm363 = vcmask 257024
      %364 = vst.msk [vmem:[%s257] sm:$0xf] %vm363, %v359
      %365 = vst.msk [vmem:[%s257 + $0x4] sm:$0xf] %vm363, %v360
      %s366 = smul.u32 2, %s20
      %p367 = scmp.lt.s32.totalorder %s19, 1
      %s368 = scalar_select %p367, %s19, 1
      %p369 = scmp.lt.s32.totalorder %s366, 1
      %s370 = scalar_select %p369, %s366, 1
      %s371 = smul.addr %s368, 2
      %s372 = sadd.s32 %s370, %s371
      %s373 = smul.addr %s372, 4
      %s374 = scalar_lea.vmem %s4, %s373
      // Predicated region
      $region37: #{perception_forward.10} parent=35 // pred_check
        %p375 = pneg %p143
      $region38: #{perception_forward.10} parent=35 // pred_check_branch
        %377 = sbr.rel (%p375) target = $region40
      $region39: #{perception_forward.10} parent=35 // pred_region
        %s378 = smul.u32 2, %s20
      $region40: #{perception_forward.10} parent=35 // pred_fallthru
        _
    $region36: #{perception_forward.10} parent=5 // pred_fallthru
      _
    %p379 = scmp.le.s32.totalorder 2, %s10
    // Predicated region
    $region41: #{perception_forward.10} parent=5 // pred_check
      %p380 = pneg %p379
    $region42: #{perception_forward.10} parent=5 // pred_check_branch
      %382 = sbr.rel (%p380) target = $region44
    $region43: #{perception_forward.10} parent=5 // pred_region
      %s383 = ssub.s32 %s10, 2
      // Predicated region
      $region45: #{perception_forward.10} parent=43 // pred_check
        %p384 = pneg %p149
      $region46: #{perception_forward.10} parent=43 // pred_check_branch
        %386 = sbr.rel (%p384) target = $region48
      $region47: #{perception_forward.10} parent=43 // pred_region
        %s387 = smul.u32 2, %s22
        %p388 = scmp.lt.s32.totalorder %s21, 1
        %s389 = scalar_select %p388, %s21, 1
        %p390 = scmp.lt.s32.totalorder %s387, 1
        %s391 = scalar_select %p390, %s387, 1
        %s392 = smul.addr %s389, 2
        %s393 = sadd.s32 %s391, %s392
        %s394 = smul.addr %s393, 4
        %s395 = scalar_lea.vmem %s4, %s394
      $region48: #{perception_forward.10} parent=43 // pred_fallthru
        _
    $region44: #{perception_forward.10} parent=5 // pred_fallthru
      _
  $region6: #{perception_forward.10} parent=0 // loop_footer
    %s14 = sadd.s32 1, %s10
  $region7: #{perception_forward.10} parent=0 // loop_footer_branch
    %9 = sbr.rel target = $region3
  $region8: #{perception_forward.10} parent=0 // loop_exit
    _

// kernel: perception_forward.11
$region0: #{perception_forward.11}
  #allocation0 [shape = 'u32[]', space=smem, size = 0x4, offset = 0x4, fixed_abs, tag = 'smem constant byte address 0x4 - core index']
  #allocation1 [shape = 'u32[144,128]{1,0:T(1,128)}', space=vmem, size = 0x12000, scoped, tag = 'internal scratch']
  %s0 = inlined_call_operand.vmem [shape: bf16[32,32], index: 0, kind: input, shape index: {}]
  %s1 = inlined_call_operand.vmem [shape: f32[1,32], index: 1, kind: input, shape index: {}]
  %s2 = inlined_call_operand.vmem [shape: f32[1,32], index: 2, kind: input, shape index: {}]
  %s3 = inlined_call_operand.vmem [shape: bf16[32,96], index: 3, kind: input, shape index: {}]
  %s4 = inlined_call_operand.vmem [shape: f32[1,96], index: 4, kind: input, shape index: {}]
  %s5 = inlined_call_operand.vmem [shape: bf16[32,96], index: 5, kind: output, shape index: {}]
  %s6 = sld [smem:[#allocation0]]
  $region30: #{perception_forward.11} parent=0
    _
  %s8 = ssub.s32 1, %s6
  %s9 = scalar_select 0, %s8, %s6
  // Predicated region
  $region2: #{perception_forward.11} parent=0 // pred_check
    _
  $region3: #{perception_forward.11} parent=0 // pred_check_branch
    %11 = sbr.rel (0) target = $region5
  $region4: #{perception_forward.11} parent=0 // pred_region
    _
  $region5: #{perception_forward.11} parent=0 // pred_fallthru
    _
  // Predicated region
  $region6: #{perception_forward.11} parent=0 // pred_check
    _
  $region7: #{perception_forward.11} parent=0 // pred_check_branch
    %13 = sbr.rel (0) target = $region9
  $region8: #{perception_forward.11} parent=0 // pred_region
    _
  $region9: #{perception_forward.11} parent=0 // pred_fallthru
    _
  // Predicated region
  $region10: #{perception_forward.11} parent=0 // pred_check
    _
  $region11: #{perception_forward.11} parent=0 // pred_check_branch
    %15 = sbr.rel (0) target = $region13
  $region12: #{perception_forward.11} parent=0 // pred_region
    _
  $region13: #{perception_forward.11} parent=0 // pred_fallthru
    _
  // Predicated region
  $region14: #{perception_forward.11} parent=0 // pred_check
    _
  $region15: #{perception_forward.11} parent=0 // pred_check_branch
    %17 = sbr.rel (0) target = $region17
  $region16: #{perception_forward.11} parent=0 // pred_region
    _
  $region17: #{perception_forward.11} parent=0 // pred_fallthru
    _
  // Predicated region
  $region18: #{perception_forward.11} parent=0 // pred_check
    _
  $region19: #{perception_forward.11} parent=0 // pred_check_branch
    %19 = sbr.rel (0) target = $region21
  $region20: #{perception_forward.11} parent=0 // pred_region
    _
  $region21: #{perception_forward.11} parent=0 // pred_fallthru
    _
  %v21 = vld [vmem:[%s0] sm:$0xf]
  %v22 = vld [vmem:[%s0 + $0x4] sm:$0xf]
  %v23 = vld [vmem:[%s0 + $0x8] sm:$0xf]
  %v24 = vld [vmem:[%s0 + $0xc] sm:$0xf]
  %v25 = vunpack.c.l.bf16 %v21
  %v26 = vunpack.c.l.bf16 %v22
  %v27 = vunpack.c.l.bf16 %v23
  %v28 = vunpack.c.l.bf16 %v24
  %vm29 = vcmask 261120
  %v30 = vsel %vm29, %v25, 0.0
  %31 = vadd.xlane.f32.xlu0 %v30
  %v32 = vpop.xlane.xlu0 %31
  %v33 = vsel %vm29, %v26, 0.0
  %34 = vadd.xlane.f32.xlu0 %v33
  %v35 = vpop.xlane.xlu0 %34
  %v36 = vsel %vm29, %v27, 0.0
  %37 = vadd.xlane.f32.xlu0 %v36
  %v38 = vpop.xlane.xlu0 %37
  %v39 = vsel %vm29, %v28, 0.0
  %40 = vadd.xlane.f32.xlu0 %v39
  %v41 = vpop.xlane.xlu0 %40
  %v42 = vrcp.pop 32.0
  %v43 = vmul.f32 %v32, %v42
  %v44 = vmul.f32 %v35, %v42
  %v45 = vmul.f32 %v38, %v42
  %v46 = vmul.f32 %v41, %v42
  %v47 = vsub.f32 %v25, %v43
  %v48 = vsub.f32 %v26, %v44
  %v49 = vsub.f32 %v27, %v45
  %v50 = vsub.f32 %v28, %v46
  %v51 = vmul.f32 %v47, %v47
  %v52 = vmul.f32 %v48, %v48
  %v53 = vmul.f32 %v49, %v49
  %v54 = vmul.f32 %v50, %v50
  %v55 = vsel %vm29, %v51, 0.0
  %56 = vadd.xlane.f32.xlu0 %v55
  %v57 = vpop.xlane.xlu0 %56
  %v58 = vsel %vm29, %v52, 0.0
  %59 = vadd.xlane.f32.xlu0 %v58
  %v60 = vpop.xlane.xlu0 %59
  %v61 = vsel %vm29, %v53, 0.0
  %62 = vadd.xlane.f32.xlu0 %v61
  %v63 = vpop.xlane.xlu0 %62
  %v64 = vsel %vm29, %v54, 0.0
  %65 = vadd.xlane.f32.xlu0 %v64
  %v66 = vpop.xlane.xlu0 %65
  %v67 = vmul.f32 %v57, %v42
  %v68 = vmul.f32 %v60, %v42
  %v69 = vmul.f32 %v63, %v42
  %v70 = vmul.f32 %v66, %v42
  %v71 = vadd.f32 %v67, 1e-05
  %v72 = vadd.f32 %v68, 1e-05
  %v73 = vadd.f32 %v69, 1e-05
  %v74 = vadd.f32 %v70, 1e-05
  %v75 = vrsqrt.pop %v71
  %v76 = vrsqrt.pop %v72
  %v77 = vrsqrt.pop %v73
  %v78 = vrsqrt.pop %v74
  %v79 = vmul.f32 %v47, %v75
  %v80 = vmul.f32 %v48, %v76
  %v81 = vmul.f32 %v49, %v77
  %v82 = vmul.f32 %v50, %v78
  %v83 = vld [vmem:[%s1] sm:$0x1]
  %v85 = vlaneseq
  %v86 = vshrl.u32 %v85, 7
  %v87 = vsub.s32 0, %v86
  %v88 = vrot.slane %v83, %v87
  %v90 = vmul.f32 %v79, %v88
  %v91 = vmul.f32 %v80, %v88
  %v92 = vmul.f32 %v81, %v88
  %v93 = vmul.f32 %v82, %v88
  %v94 = vld [vmem:[%s2] sm:$0x1]
  %v96 = vlaneseq
  %v97 = vshrl.u32 %v96, 7
  %v98 = vsub.s32 0, %v97
  %v99 = vrot.slane %v94, %v98
  %v101 = vadd.f32 %v90, %v99
  %v102 = vadd.f32 %v91, %v99
  %v103 = vadd.f32 %v92, %v99
  %v104 = vadd.f32 %v93, %v99
  %v105 = vpack.c.bf16 %v102, %v101
  %v106 = vpack.c.bf16 %v104, %v103
  %v107 = vld [vmem:[%s3] sm:$0xf]
  %v108 = vld [vmem:[%s3 + $0x4] sm:$0xf]
  %v109 = vld [vmem:[%s3 + $0x8] sm:$0xf]
  %v110 = vld [vmem:[%s3 + $0xc] sm:$0xf]
  %v111 = vld [vmem:[%s4] sm:$0x1]
  %v113 = vlaneseq
  %v114 = vshrl.u32 %v113, 7
  %v115 = vsub.s32 0, %v114
  %v116 = vrot.slane %v111, %v115
  %v122 = vunpack.c.l.b16 %v107
  %v123 = vunpack.c.l.b16 %v108
  %v124 = vunpack.c.l.b16 %v109
  %v125 = vunpack.c.l.b16 %v110
  %v126 = vpack.c.b16 %v123, %v122
  %v127 = vpack.c.b16 %v125, %v124
  %v131 = vsel %vm29, %v105, 0
  %v134 = vsel %vm29, %v106, 0
  %136 = vmatprep.subr.bf16.mxu0 0
  %137 = vmatpush1.bf16.msra.mxu0 0
  %138 = vmatprep.subr.bf16.mxu0 0
  %139 = vmatpush1.bf16.msra.mxu0 0
  %140 = vmatprep.subr.bf16.mxu0 0
  %141 = vmatpush1.bf16.msra.mxu0 0
  %142 = vmatprep.subr.bf16.mxu0 0
  %143 = vmatpush1.bf16.msra.mxu0 0
  %144 = vmatprep.subr.bf16.mxu0 0
  %145 = vmatpush1.bf16.msra.mxu0 0
  %146 = vmatprep.subr.bf16.mxu0 0
  %147 = vmatpush1.bf16.msra.mxu0 0
  %148 = vmatprep.subr.bf16.mxu0 0
  %149 = vmatpush1.bf16.msra.mxu0 %v127
  %150 = vmatprep.subr.bf16.mxu0 0
  %151 = vmatpush1.bf16.msra.mxu0 %v126
  %152 = vmatprep.subr.bf16.mxu0 0
  %153 = vmatpush2.bf16.msra.mxu0 0
  %154 = vmatprep.subr.bf16.mxu0 0
  %155 = vmatpush2.bf16.msra.mxu0 0
  %156 = vmatprep.subr.bf16.mxu0 0
  %157 = vmatpush2.bf16.msra.mxu0 0
  %158 = vmatprep.subr.bf16.mxu0 0
  %159 = vmatpush2.bf16.msra.mxu0 0
  %160 = vmatprep.subr.bf16.mxu0 0
  %161 = vmatpush2.bf16.msra.mxu0 0
  %162 = vmatprep.subr.bf16.mxu0 0
  %163 = vmatpush2.bf16.msra.mxu0 0
  %164 = vmatprep.subr.bf16.mxu0 0
  %165 = vmatpush2.bf16.msra.mxu0 0
  %166 = vmatprep.subr.bf16.mxu0 0
  %167 = vmatpush2.bf16.msra.mxu0 0
  %168 = vmatprep.mubr.bf16.mxu0 0
  %169 = vmatmul.mubr.bf16.gmra.mxu0 %v131
  %v170 = vpop.f32.mrf.mxu0
  %v171 = vadd.f32 %v116, %v170
  %v172 = vpop.f32.mrf.mxu0
  %v173 = vpop.f32.mrf.mxu0
  %v174 = vadd.f32 %v116, %v173
  %v175 = vpop.f32.mrf.mxu0
  %176 = vmatprep.mubr.bf16.mxu0 0
  %177 = vmatmul.mubr.bf16.gmra.mxu0 %v134
  %v178 = vpop.f32.mrf.mxu0
  %v179 = vadd.f32 %v116, %v178
  %v180 = vpop.f32.mrf.mxu0
  %v181 = vpop.f32.mrf.mxu0
  %v182 = vadd.f32 %v116, %v181
  %v183 = vpop.f32.mrf.mxu0
  %184 = vdwg.mxu0
  %v185 = vpack.c.bf16 %v174, %v171
  %v186 = vpack.c.bf16 %v182, %v179
  %v189 = vunpack.c.l.b16 %v185
  %v190 = vunpack.c.h.b16 %v185
  %v191 = vunpack.c.l.b16 %v186
  %v192 = vunpack.c.h.b16 %v186
  %v193 = vpack.c.b16 %v189, %v189
  %v194 = vpack.c.b16 %v190, %v190
  %v195 = vpack.c.b16 %v191, %v191
  %v196 = vpack.c.b16 %v192, %v192
  %vm201 = vcmask 781312
  %202 = vst.msk [vmem:[%s5] sm:$0xf] %vm201, %v193
  %203 = vst.msk [vmem:[%s5 + $0x4] sm:$0xf] %vm201, %v194
  %204 = vst.msk [vmem:[%s5 + $0x8] sm:$0xf] %vm201, %v195
  %205 = vst.msk [vmem:[%s5 + $0xc] sm:$0xf] %vm201, %v196
  // Predicated region
  $region22: #{perception_forward.11} parent=0 // pred_check
    _
  $region23: #{perception_forward.11} parent=0 // pred_check_branch
    %207 = sbr.rel (0) target = $region25
  $region24: #{perception_forward.11} parent=0 // pred_region
    _
  $region25: #{perception_forward.11} parent=0 // pred_fallthru
    _
  // Predicated region
  $region26: #{perception_forward.11} parent=0 // pred_check
    _
  $region27: #{perception_forward.11} parent=0 // pred_check_branch
    %209 = sbr.rel (0) target = $region29
  $region28: #{perception_forward.11} parent=0 // pred_region
    _
  $region29: #{perception_forward.11} parent=0 // pred_fallthru
    _

// kernel: perception_forward.19
$region0: #{perception_forward.19}
  #allocation0 [shape = 'u32[]', space=smem, size = 0x4, offset = 0x4, fixed_abs, tag = 'smem constant byte address 0x4 - core index']
  #allocation1 [shape = 'u32[144,128]{1,0:T(1,128)}', space=vmem, size = 0x12000, scoped, tag = 'internal scratch']
  %s0 = inlined_call_operand.vmem [shape: bf16[32,32], index: 0, kind: input, shape index: {}]
  %s1 = inlined_call_operand.vmem [shape: f32[1,32], index: 1, kind: input, shape index: {}]
  %s2 = inlined_call_operand.vmem [shape: f32[1,32], index: 2, kind: input, shape index: {}]
  %s3 = inlined_call_operand.hbm [shape: f32[32,32], index: 3, kind: output, shape index: {}]
  %s4 = sld [smem:[#allocation0]]
  $region22: #{perception_forward.19} parent=0
    _
  %s6 = ssub.s32 1, %s4
  %s7 = scalar_select 0, %s6, %s4
  $region1: #{perception_forward.19} parent=0
    #allocation2 [shape = 'u8[16384]{0}', space=vmem, size = 0x4000, scoped, tag = 'output window, operand 0, single buffered']
    #allocation3 [shape = 's32[1]{0}', space=sflag, size = 0x4, scoped, tag = 'scoped memory for perception_forward.19']
    %8 = vsyncpa [#allocation3], 0
    // Predicated region
    $region2: #{perception_forward.19} parent=1 // pred_check
      _
    $region3: #{perception_forward.19} parent=1 // pred_check_branch
      %10 = sbr.rel (0) target = $region5
    $region4: #{perception_forward.19} parent=1 // pred_region
      _
    $region5: #{perception_forward.19} parent=1 // pred_fallthru
      _
    // Predicated region
    $region6: #{perception_forward.19} parent=1 // pred_check
      _
    $region7: #{perception_forward.19} parent=1 // pred_check_branch
      %12 = sbr.rel (0) target = $region9
    $region8: #{perception_forward.19} parent=1 // pred_region
      _
    $region9: #{perception_forward.19} parent=1 // pred_fallthru
      _
    // Predicated region
    $region10: #{perception_forward.19} parent=1 // pred_check
      _
    $region11: #{perception_forward.19} parent=1 // pred_check_branch
      %14 = sbr.rel (0) target = $region13
    $region12: #{perception_forward.19} parent=1 // pred_region
      _
    $region13: #{perception_forward.19} parent=1 // pred_fallthru
      _
    %v15 = vld [vmem:[%s0] sm:$0xf]
    %v16 = vld [vmem:[%s0 + $0x4] sm:$0xf]
    %v17 = vld [vmem:[%s0 + $0x8] sm:$0xf]
    %v18 = vld [vmem:[%s0 + $0xc] sm:$0xf]
    %v19 = vunpack.c.l.bf16 %v15
    %v20 = vunpack.c.l.bf16 %v16
    %v21 = vunpack.c.l.bf16 %v17
    %v22 = vunpack.c.l.bf16 %v18
    %vm23 = vcmask 261120
    %v24 = vsel %vm23, %v19, 0.0
    %25 = vadd.xlane.f32.xlu0 %v24
    %v26 = vpop.xlane.xlu0 %25
    %v27 = vsel %vm23, %v20, 0.0
    %28 = vadd.xlane.f32.xlu0 %v27
    %v29 = vpop.xlane.xlu0 %28
    %v30 = vsel %vm23, %v21, 0.0
    %31 = vadd.xlane.f32.xlu0 %v30
    %v32 = vpop.xlane.xlu0 %31
    %v33 = vsel %vm23, %v22, 0.0
    %34 = vadd.xlane.f32.xlu0 %v33
    %v35 = vpop.xlane.xlu0 %34
    %v36 = vrcp.pop 32.0
    %v37 = vmul.f32 %v26, %v36
    %v38 = vmul.f32 %v29, %v36
    %v39 = vmul.f32 %v32, %v36
    %v40 = vmul.f32 %v35, %v36
    %v41 = vsub.f32 %v19, %v37
    %v42 = vsub.f32 %v20, %v38
    %v43 = vsub.f32 %v21, %v39
    %v44 = vsub.f32 %v22, %v40
    %v45 = vmul.f32 %v41, %v41
    %v46 = vmul.f32 %v42, %v42
    %v47 = vmul.f32 %v43, %v43
    %v48 = vmul.f32 %v44, %v44
    %v49 = vsel %vm23, %v45, 0.0
    %50 = vadd.xlane.f32.xlu0 %v49
    %v51 = vpop.xlane.xlu0 %50
    %v52 = vsel %vm23, %v46, 0.0
    %53 = vadd.xlane.f32.xlu0 %v52
    %v54 = vpop.xlane.xlu0 %53
    %v55 = vsel %vm23, %v47, 0.0
    %56 = vadd.xlane.f32.xlu0 %v55
    %v57 = vpop.xlane.xlu0 %56
    %v58 = vsel %vm23, %v48, 0.0
    %59 = vadd.xlane.f32.xlu0 %v58
    %v60 = vpop.xlane.xlu0 %59
    %v61 = vmul.f32 %v51, %v36
    %v62 = vmul.f32 %v54, %v36
    %v63 = vmul.f32 %v57, %v36
    %v64 = vmul.f32 %v60, %v36
    %v65 = vadd.f32 %v61, 1e-05
    %v66 = vadd.f32 %v62, 1e-05
    %v67 = vadd.f32 %v63, 1e-05
    %v68 = vadd.f32 %v64, 1e-05
    %v69 = vrsqrt.pop %v65
    %v70 = vrsqrt.pop %v66
    %v71 = vrsqrt.pop %v67
    %v72 = vrsqrt.pop %v68
    %v73 = vmul.f32 %v41, %v69
    %v74 = vmul.f32 %v42, %v70
    %v75 = vmul.f32 %v43, %v71
    %v76 = vmul.f32 %v44, %v72
    %v77 = vld [vmem:[%s1] sm:$0x1]
    %v79 = vlaneseq
    %v80 = vshrl.u32 %v79, 7
    %v81 = vsub.s32 0, %v80
    %v82 = vrot.slane %v77, %v81
    %v84 = vmul.f32 %v73, %v82
    %v85 = vmul.f32 %v74, %v82
    %v86 = vmul.f32 %v75, %v82
    %v87 = vmul.f32 %v76, %v82
    %v88 = vld [vmem:[%s2] sm:$0x1]
    %v90 = vlaneseq
    %v91 = vshrl.u32 %v90, 7
    %v92 = vsub.s32 0, %v91
    %v93 = vrot.slane %v88, %v92
    %v95 = vadd.f32 %v84, %v93
    %v96 = vadd.f32 %v85, %v93
    %v97 = vadd.f32 %v86, %v93
    %v98 = vadd.f32 %v87, %v93
    %99 = vst.msk [vmem:[#allocation2] sm:$0xff] %vm23, %v95
    %100 = vst.msk [vmem:[#allocation2 + $0x8] sm:$0xff] %vm23, %v96
    %101 = vst.msk [vmem:[#allocation2 + $0x10] sm:$0xff] %vm23, %v97
    %102 = vst.msk [vmem:[#allocation2 + $0x18] sm:$0xff] %vm23, %v98
    // Predicated region
    $region14: #{perception_forward.19} parent=1 // pred_check
      _
    $region15: #{perception_forward.19} parent=1 // pred_check_branch
      %104 = sbr.rel (0) target = $region17
    $region16: #{perception_forward.19} parent=1 // pred_region
      %s106 = ssub.s32 512, 512
      %107 = vsyncadd [#allocation3], %s106
      %s108 = sshll.u32 [#allocation2], 4
      %s109 = int_to_ptr.vmem [resolvable:$true] %s108
      %114 = dma.vmem_to_hbm [thread:$0]  %s109, 512, %s3, [#allocation3], 128, 128, 8
    $region17: #{perception_forward.19} parent=1 // pred_fallthru
      _
    // Predicated region
    $region18: #{perception_forward.19} parent=1 // pred_check
      _
    $region19: #{perception_forward.19} parent=1 // pred_check_branch
      %116 = sbr.rel (0) target = $region21
    $region20: #{perception_forward.19} parent=1 // pred_region
      %117 = dma.done [#allocation3], 512
    $region21: #{perception_forward.19} parent=1 // pred_fallthru
      _
    %118 = vsyncpa [#allocation3], 1

// kernel: perception_forward.13
$region0: #{perception_forward.13}
  #allocation0 [shape = 'u32[]', space=smem, size = 0x4, offset = 0x4, fixed_abs, tag = 'smem constant byte address 0x4 - core index']
  #allocation1 [shape = 'u32[144,128]{1,0:T(1,128)}', space=vmem, size = 0x12000, scoped, tag = 'internal scratch']
  %s0 = inlined_call_operand.vmem [shape: bf16[32,32], index: 0, kind: input, shape index: {}]
  %s1 = inlined_call_operand.vmem [shape: bf16[32,32], index: 1, kind: input, shape index: {}]
  %s2 = inlined_call_operand.vmem [shape: f32[1,32], index: 2, kind: input, shape index: {}]
  %s3 = inlined_call_operand.vmem [shape: bf16[32,32], index: 3, kind: input, shape index: {}]
  %s4 = inlined_call_operand.vmem [shape: bf16[32,32], index: 4, kind: output, shape index: {}]
  %s5 = sld [smem:[#allocation0]]
  $region26: #{perception_forward.13} parent=0
    _
  %s7 = ssub.s32 1, %s5
  %s8 = scalar_select 0, %s7, %s5
  // Predicated region
  $region2: #{perception_forward.13} parent=0 // pred_check
    _
  $region3: #{perception_forward.13} parent=0 // pred_check_branch
    %10 = sbr.rel (0) target = $region5
  $region4: #{perception_forward.13} parent=0 // pred_region
    _
  $region5: #{perception_forward.13} parent=0 // pred_fallthru
    _
  // Predicated region
  $region6: #{perception_forward.13} parent=0 // pred_check
    _
  $region7: #{perception_forward.13} parent=0 // pred_check_branch
    %12 = sbr.rel (0) target = $region9
  $region8: #{perception_forward.13} parent=0 // pred_region
    _
  $region9: #{perception_forward.13} parent=0 // pred_fallthru
    _
  // Predicated region
  $region10: #{perception_forward.13} parent=0 // pred_check
    _
  $region11: #{perception_forward.13} parent=0 // pred_check_branch
    %14 = sbr.rel (0) target = $region13
  $region12: #{perception_forward.13} parent=0 // pred_region
    _
  $region13: #{perception_forward.13} parent=0 // pred_fallthru
    _
  // Predicated region
  $region14: #{perception_forward.13} parent=0 // pred_check
    _
  $region15: #{perception_forward.13} parent=0 // pred_check_branch
    %16 = sbr.rel (0) target = $region17
  $region16: #{perception_forward.13} parent=0 // pred_region
    _
  $region17: #{perception_forward.13} parent=0 // pred_fallthru
    _
  %v18 = vld [vmem:[%s0] sm:$0xf]
  %v19 = vld [vmem:[%s0 + $0x4] sm:$0xf]
  %v20 = vld [vmem:[%s0 + $0x8] sm:$0xf]
  %v21 = vld [vmem:[%s0 + $0xc] sm:$0xf]
  %v22 = vld [vmem:[%s1] sm:$0xf]
  %v23 = vld [vmem:[%s1 + $0x4] sm:$0xf]
  %v24 = vld [vmem:[%s1 + $0x8] sm:$0xf]
  %v25 = vld [vmem:[%s1 + $0xc] sm:$0xf]
  %v26 = vld [vmem:[%s2] sm:$0x1]
  %v28 = vlaneseq
  %v29 = vshrl.u32 %v28, 7
  %v30 = vsub.s32 0, %v29
  %v31 = vrot.slane %v26, %v30
  %v37 = vunpack.c.l.b16 %v18
  %v38 = vunpack.c.l.b16 %v19
  %v39 = vunpack.c.l.b16 %v20
  %v40 = vunpack.c.l.b16 %v21
  %v41 = vpack.c.b16 %v38, %v37
  %v42 = vpack.c.b16 %v40, %v39
  %v47 = vunpack.c.l.b16 %v22
  %v48 = vunpack.c.l.b16 %v23
  %v49 = vunpack.c.l.b16 %v24
  %v50 = vunpack.c.l.b16 %v25
  %v51 = vpack.c.b16 %v48, %v47
  %v52 = vpack.c.b16 %v50, %v49
  %vm55 = vcmask 261120
  %v57 = vsel %vm55, %v41, 0
  %v60 = vsel %vm55, %v42, 0
  %62 = vmatprep.subr.bf16.mxu0 0
  %63 = vmatpush1.bf16.msra.mxu0 0
  %64 = vmatprep.subr.bf16.mxu0 0
  %65 = vmatpush1.bf16.msra.mxu0 0
  %66 = vmatprep.subr.bf16.mxu0 0
  %67 = vmatpush1.bf16.msra.mxu0 0
  %68 = vmatprep.subr.bf16.mxu0 0
  %69 = vmatpush1.bf16.msra.mxu0 0
  %70 = vmatprep.subr.bf16.mxu0 0
  %71 = vmatpush1.bf16.msra.mxu0 0
  %72 = vmatprep.subr.bf16.mxu0 0
  %73 = vmatpush1.bf16.msra.mxu0 0
  %74 = vmatprep.subr.bf16.mxu0 0
  %75 = vmatpush1.bf16.msra.mxu0 %v52
  %76 = vmatprep.subr.bf16.mxu0 0
  %77 = vmatpush1.bf16.msra.mxu0 %v51
  %78 = vmatprep.subr.bf16.mxu0 0
  %79 = vmatpush2.bf16.msra.mxu0 0
  %80 = vmatprep.subr.bf16.mxu0 0
  %81 = vmatpush2.bf16.msra.mxu0 0
  %82 = vmatprep.subr.bf16.mxu0 0
  %83 = vmatpush2.bf16.msra.mxu0 0
  %84 = vmatprep.subr.bf16.mxu0 0
  %85 = vmatpush2.bf16.msra.mxu0 0
  %86 = vmatprep.subr.bf16.mxu0 0
  %87 = vmatpush2.bf16.msra.mxu0 0
  %88 = vmatprep.subr.bf16.mxu0 0
  %89 = vmatpush2.bf16.msra.mxu0 0
  %90 = vmatprep.subr.bf16.mxu0 0
  %91 = vmatpush2.bf16.msra.mxu0 0
  %92 = vmatprep.subr.bf16.mxu0 0
  %93 = vmatpush2.bf16.msra.mxu0 0
  %94 = vmatprep.mubr.bf16.mxu0 0
  %95 = vmatmul.mubr.bf16.gmra.mxu0 %v57
  %v96 = vpop.f32.mrf.mxu0
  %v97 = vadd.f32 %v31, %v96
  %v98 = vpop.f32.mrf.mxu0
  %v99 = vpop.f32.mrf.mxu0
  %v100 = vadd.f32 %v31, %v99
  %v101 = vpop.f32.mrf.mxu0
  %102 = vmatprep.mubr.bf16.mxu0 0
  %103 = vmatmul.mubr.bf16.gmra.mxu0 %v60
  %v104 = vpop.f32.mrf.mxu0
  %v105 = vadd.f32 %v31, %v104
  %v106 = vpop.f32.mrf.mxu0
  %v107 = vpop.f32.mrf.mxu0
  %v108 = vadd.f32 %v31, %v107
  %v109 = vpop.f32.mrf.mxu0
  %110 = vdwg.mxu0
  %v111 = vld [vmem:[%s3] sm:$0xf]
  %v112 = vld [vmem:[%s3 + $0x4] sm:$0xf]
  %v113 = vld [vmem:[%s3 + $0x8] sm:$0xf]
  %v114 = vld [vmem:[%s3 + $0xc] sm:$0xf]
  %v115 = vunpack.c.l.bf16 %v111
  %v116 = vunpack.c.l.bf16 %v112
  %v117 = vunpack.c.l.bf16 %v113
  %v118 = vunpack.c.l.bf16 %v114
  %v119 = vadd.f32 %v97, %v115
  %v120 = vadd.f32 %v100, %v116
  %v121 = vadd.f32 %v105, %v117
  %v122 = vadd.f32 %v108, %v118
  %v123 = vpack.c.bf16 %v120, %v119
  %v124 = vpack.c.bf16 %v122, %v121
  %v127 = vunpack.c.l.b16 %v123
  %v128 = vunpack.c.h.b16 %v123
  %v129 = vunpack.c.l.b16 %v124
  %v130 = vunpack.c.h.b16 %v124
  %v131 = vpack.c.b16 %v127, %v127
  %v132 = vpack.c.b16 %v128, %v128
  %v133 = vpack.c.b16 %v129, %v129
  %v134 = vpack.c.b16 %v130, %v130
  %vm139 = vcmask 257024
  %140 = vst.msk [vmem:[%s4] sm:$0xf] %vm139, %v131
  %141 = vst.msk [vmem:[%s4 + $0x4] sm:$0xf] %vm139, %v132
  %142 = vst.msk [vmem:[%s4 + $0x8] sm:$0xf] %vm139, %v133
  %143 = vst.msk [vmem:[%s4 + $0xc] sm:$0xf] %vm139, %v134
  // Predicated region
  $region18: #{perception_forward.13} parent=0 // pred_check
    _
  $region19: #{perception_forward.13} parent=0 // pred_check_branch
    %145 = sbr.rel (0) target = $region21
  $region20: #{perception_forward.13} parent=0 // pred_region
    _
  $region21: #{perception_forward.13} parent=0 // pred_fallthru
    _
  // Predicated region
  $region22: #{perception_forward.13} parent=0 // pred_check
    _
  $region23: #{perception_forward.13} parent=0 // pred_check_branch
    %147 = sbr.rel (0) target = $region25
  $region24: #{perception_forward.13} parent=0 // pred_region
    _
  $region25: #{perception_forward.13} parent=0 // pred_fallthru
    _

// kernel: perception_forward.14
$region0: #{perception_forward.14}
  #allocation0 [shape = 'u32[]', space=smem, size = 0x4, offset = 0x4, fixed_abs, tag = 'smem constant byte address 0x4 - core index']
  #allocation1 [shape = 'u32[144,128]{1,0:T(1,128)}', space=vmem, size = 0x12000, scoped, tag = 'internal scratch']
  %s0 = inlined_call_operand.vmem [shape: bf16[32,32], index: 0, kind: input, shape index: {}]
  %s1 = inlined_call_operand.vmem [shape: f32[1,32], index: 1, kind: input, shape index: {}]
  %s2 = inlined_call_operand.vmem [shape: f32[1,32], index: 2, kind: input, shape index: {}]
  %s3 = inlined_call_operand.vmem [shape: bf16[32,128], index: 3, kind: input, shape index: {}]
  %s4 = inlined_call_operand.vmem [shape: f32[1,128], index: 4, kind: input, shape index: {}]
  %s5 = inlined_call_operand.vmem [shape: bf16[128,32], index: 5, kind: input, shape index: {}]
  %s6 = inlined_call_operand.vmem [shape: f32[1,32], index: 6, kind: input, shape index: {}]
  %s7 = inlined_call_operand.vmem [shape: bf16[32,32], index: 7, kind: output, shape index: {}]
  %s8 = sld [smem:[#allocation0]]
  $region38: #{perception_forward.14} parent=0
    _
  %s10 = ssub.s32 1, %s8
  %s11 = scalar_select 0, %s10, %s8
  // Predicated region
  $region2: #{perception_forward.14} parent=0 // pred_check
    _
  $region3: #{perception_forward.14} parent=0 // pred_check_branch
    %13 = sbr.rel (0) target = $region5
  $region4: #{perception_forward.14} parent=0 // pred_region
    _
  $region5: #{perception_forward.14} parent=0 // pred_fallthru
    _
  // Predicated region
  $region6: #{perception_forward.14} parent=0 // pred_check
    _
  $region7: #{perception_forward.14} parent=0 // pred_check_branch
    %15 = sbr.rel (0) target = $region9
  $region8: #{perception_forward.14} parent=0 // pred_region
    _
  $region9: #{perception_forward.14} parent=0 // pred_fallthru
    _
  // Predicated region
  $region10: #{perception_forward.14} parent=0 // pred_check
    _
  $region11: #{perception_forward.14} parent=0 // pred_check_branch
    %17 = sbr.rel (0) target = $region13
  $region12: #{perception_forward.14} parent=0 // pred_region
    _
  $region13: #{perception_forward.14} parent=0 // pred_fallthru
    _
  // Predicated region
  $region14: #{perception_forward.14} parent=0 // pred_check
    _
  $region15: #{perception_forward.14} parent=0 // pred_check_branch
    %19 = sbr.rel (0) target = $region17
  $region16: #{perception_forward.14} parent=0 // pred_region
    _
  $region17: #{perception_forward.14} parent=0 // pred_fallthru
    _
  // Predicated region
  $region18: #{perception_forward.14} parent=0 // pred_check
    _
  $region19: #{perception_forward.14} parent=0 // pred_check_branch
    %21 = sbr.rel (0) target = $region21
  $region20: #{perception_forward.14} parent=0 // pred_region
    _
  $region21: #{perception_forward.14} parent=0 // pred_fallthru
    _
  // Predicated region
  $region22: #{perception_forward.14} parent=0 // pred_check
    _
  $region23: #{perception_forward.14} parent=0 // pred_check_branch
    %23 = sbr.rel (0) target = $region25
  $region24: #{perception_forward.14} parent=0 // pred_region
    _
  $region25: #{perception_forward.14} parent=0 // pred_fallthru
    _
  // Predicated region
  $region26: #{perception_forward.14} parent=0 // pred_check
    _
  $region27: #{perception_forward.14} parent=0 // pred_check_branch
    %25 = sbr.rel (0) target = $region29
  $region28: #{perception_forward.14} parent=0 // pred_region
    _
  $region29: #{perception_forward.14} parent=0 // pred_fallthru
    _
  %v27 = vld [vmem:[%s0] sm:$0xf]
  %v28 = vld [vmem:[%s0 + $0x4] sm:$0xf]
  %v29 = vld [vmem:[%s0 + $0x8] sm:$0xf]
  %v30 = vld [vmem:[%s0 + $0xc] sm:$0xf]
  %v31 = vunpack.c.l.bf16 %v27
  %v32 = vunpack.c.l.bf16 %v28
  %v33 = vunpack.c.l.bf16 %v29
  %v34 = vunpack.c.l.bf16 %v30
  %vm35 = vcmask 261120
  %v36 = vsel %vm35, %v31, 0.0
  %37 = vadd.xlane.f32.xlu0 %v36
  %v38 = vpop.xlane.xlu0 %37
  %v39 = vsel %vm35, %v32, 0.0
  %40 = vadd.xlane.f32.xlu0 %v39
  %v41 = vpop.xlane.xlu0 %40
  %v42 = vsel %vm35, %v33, 0.0
  %43 = vadd.xlane.f32.xlu0 %v42
  %v44 = vpop.xlane.xlu0 %43
  %v45 = vsel %vm35, %v34, 0.0
  %46 = vadd.xlane.f32.xlu0 %v45
  %v47 = vpop.xlane.xlu0 %46
  %v48 = vrcp.pop 32.0
  %v49 = vmul.f32 %v38, %v48
  %v50 = vmul.f32 %v41, %v48
  %v51 = vmul.f32 %v44, %v48
  %v52 = vmul.f32 %v47, %v48
  %v53 = vsub.f32 %v31, %v49
  %v54 = vsub.f32 %v32, %v50
  %v55 = vsub.f32 %v33, %v51
  %v56 = vsub.f32 %v34, %v52
  %v57 = vmul.f32 %v53, %v53
  %v58 = vmul.f32 %v54, %v54
  %v59 = vmul.f32 %v55, %v55
  %v60 = vmul.f32 %v56, %v56
  %v61 = vsel %vm35, %v57, 0.0
  %62 = vadd.xlane.f32.xlu0 %v61
  %v63 = vpop.xlane.xlu0 %62
  %v64 = vsel %vm35, %v58, 0.0
  %65 = vadd.xlane.f32.xlu0 %v64
  %v66 = vpop.xlane.xlu0 %65
  %v67 = vsel %vm35, %v59, 0.0
  %68 = vadd.xlane.f32.xlu0 %v67
  %v69 = vpop.xlane.xlu0 %68
  %v70 = vsel %vm35, %v60, 0.0
  %71 = vadd.xlane.f32.xlu0 %v70
  %v72 = vpop.xlane.xlu0 %71
  %v73 = vmul.f32 %v63, %v48
  %v74 = vmul.f32 %v66, %v48
  %v75 = vmul.f32 %v69, %v48
  %v76 = vmul.f32 %v72, %v48
  %v77 = vadd.f32 %v73, 1e-05
  %v78 = vadd.f32 %v74, 1e-05
  %v79 = vadd.f32 %v75, 1e-05
  %v80 = vadd.f32 %v76, 1e-05
  %v81 = vrsqrt.pop %v77
  %v82 = vrsqrt.pop %v78
  %v83 = vrsqrt.pop %v79
  %v84 = vrsqrt.pop %v80
  %v85 = vmul.f32 %v53, %v81
  %v86 = vmul.f32 %v54, %v82
  %v87 = vmul.f32 %v55, %v83
  %v88 = vmul.f32 %v56, %v84
  %v89 = vld [vmem:[%s1] sm:$0x1]
  %v91 = vlaneseq
  %v92 = vshrl.u32 %v91, 7
  %v93 = vsub.s32 0, %v92
  %v94 = vrot.slane %v89, %v93
  %v96 = vmul.f32 %v85, %v94
  %v97 = vmul.f32 %v86, %v94
  %v98 = vmul.f32 %v87, %v94
  %v99 = vmul.f32 %v88, %v94
  %v100 = vld [vmem:[%s2] sm:$0x1]
  %v102 = vlaneseq
  %v103 = vshrl.u32 %v102, 7
  %v104 = vsub.s32 0, %v103
  %v105 = vrot.slane %v100, %v104
  %v107 = vadd.f32 %v96, %v105
  %v108 = vadd.f32 %v97, %v105
  %v109 = vadd.f32 %v98, %v105
  %v110 = vadd.f32 %v99, %v105
  %v111 = vpack.c.bf16 %v108, %v107
  %v112 = vpack.c.bf16 %v110, %v109
  %v113 = vld [vmem:[%s3] sm:$0xf]
  %v114 = vld [vmem:[%s3 + $0x4] sm:$0xf]
  %v115 = vld [vmem:[%s3 + $0x8] sm:$0xf]
  %v116 = vld [vmem:[%s3 + $0xc] sm:$0xf]
  %v117 = vld [vmem:[%s4] sm:$0x1]
  %v119 = vlaneseq
  %v120 = vshrl.u32 %v119, 7
  %v121 = vsub.s32 0, %v120
  %v122 = vrot.slane %v117, %v121
  %v128 = vunpack.c.l.b16 %v113
  %v129 = vunpack.c.l.b16 %v114
  %v130 = vunpack.c.l.b16 %v115
  %v131 = vunpack.c.l.b16 %v116
  %v132 = vpack.c.b16 %v129, %v128
  %v133 = vpack.c.b16 %v131, %v130
  %v137 = vsel %vm35, %v111, 0
  %v140 = vsel %vm35, %v112, 0
  %142 = vmatprep.subr.bf16.mxu0 0
  %143 = vmatpush1.bf16.msra.mxu0 0
  %144 = vmatprep.subr.bf16.mxu0 0
  %145 = vmatpush1.bf16.msra.mxu0 0
  %146 = vmatprep.subr.bf16.mxu0 0
  %147 = vmatpush1.bf16.msra.mxu0 0
  %148 = vmatprep.subr.bf16.mxu0 0
  %149 = vmatpush1.bf16.msra.mxu0 0
  %150 = vmatprep.subr.bf16.mxu0 0
  %151 = vmatpush1.bf16.msra.mxu0 0
  %152 = vmatprep.subr.bf16.mxu0 0
  %153 = vmatpush1.bf16.msra.mxu0 0
  %154 = vmatprep.subr.bf16.mxu0 0
  %155 = vmatpush1.bf16.msra.mxu0 %v133
  %156 = vmatprep.subr.bf16.mxu0 0
  %157 = vmatpush1.bf16.msra.mxu0 %v132
  %158 = vmatprep.subr.bf16.mxu0 0
  %159 = vmatpush2.bf16.msra.mxu0 0
  %160 = vmatprep.subr.bf16.mxu0 0
  %161 = vmatpush2.bf16.msra.mxu0 0
  %162 = vmatprep.subr.bf16.mxu0 0
  %163 = vmatpush2.bf16.msra.mxu0 0
  %164 = vmatprep.subr.bf16.mxu0 0
  %165 = vmatpush2.bf16.msra.mxu0 0
  %166 = vmatprep.subr.bf16.mxu0 0
  %167 = vmatpush2.bf16.msra.mxu0 0
  %168 = vmatprep.subr.bf16.mxu0 0
  %169 = vmatpush2.bf16.msra.mxu0 0
  %170 = vmatprep.subr.bf16.mxu0 0
  %171 = vmatpush2.bf16.msra.mxu0 0
  %172 = vmatprep.subr.bf16.mxu0 0
  %173 = vmatpush2.bf16.msra.mxu0 0
  %174 = vmatprep.mubr.bf16.mxu0 0
  %175 = vmatmul.mubr.bf16.gmra.mxu0 %v137
  %v176 = vpop.f32.mrf.mxu0
  %v177 = vadd.f32 %v122, %v176
  %v178 = vpop.f32.mrf.mxu0
  %v179 = vpop.f32.mrf.mxu0
  %v180 = vadd.f32 %v122, %v179
  %v181 = vpop.f32.mrf.mxu0
  %182 = vmatprep.mubr.bf16.mxu0 0
  %183 = vmatmul.mubr.bf16.gmra.mxu0 %v140
  %v184 = vpop.f32.mrf.mxu0
  %v185 = vadd.f32 %v122, %v184
  %v186 = vpop.f32.mrf.mxu0
  %v187 = vpop.f32.mrf.mxu0
  %v188 = vadd.f32 %v122, %v187
  %v189 = vpop.f32.mrf.mxu0
  %190 = vdwg.mxu0
  %v191 = vmul.f32 %v177, %v177
  %v192 = vmul.f32 %v180, %v180
  %v193 = vmul.f32 %v185, %v185
  %v194 = vmul.f32 %v188, %v188
  %v195 = vmul.f32 %v177, %v191
  %v196 = vmul.f32 %v180, %v192
  %v197 = vmul.f32 %v185, %v193
  %v198 = vmul.f32 %v188, %v194
  %v199 = vmul.f32 %v195, 0.044715
  %v200 = vmul.f32 %v196, 0.044715
  %v201 = vmul.f32 %v197, 0.044715
  %v202 = vmul.f32 %v198, 0.044715
  %v203 = vadd.f32 %v177, %v199
  %v204 = vadd.f32 %v180, %v200
  %v205 = vadd.f32 %v185, %v201
  %v206 = vadd.f32 %v188, %v202
  %v207 = vmul.f32 %v203, 0.7978846
  %v208 = vmul.f32 %v204, 0.7978846
  %v209 = vmul.f32 %v205, 0.7978846
  %v210 = vmul.f32 %v206, 0.7978846
  %v211 = vtanh.pop %v207
  %v212 = vtanh.pop %v208
  %v213 = vtanh.pop %v209
  %v214 = vtanh.pop %v210
  %v215 = vadd.f32 %v211, 1.0
  %v216 = vadd.f32 %v212, 1.0
  %v217 = vadd.f32 %v213, 1.0
  %v218 = vadd.f32 %v214, 1.0
  %v219 = vmul.f32 %v215, 0.5
  %v220 = vmul.f32 %v216, 0.5
  %v221 = vmul.f32 %v217, 0.5
  %v222 = vmul.f32 %v218, 0.5
  %v223 = vmul.f32 %v177, %v219
  %v224 = vmul.f32 %v180, %v220
  %v225 = vmul.f32 %v185, %v221
  %v226 = vmul.f32 %v188, %v222
  %v227 = vpack.c.bf16 %v224, %v223
  %v228 = vpack.c.bf16 %v226, %v225
  %v229 = vld [vmem:[%s5] sm:$0xf]
  %v230 = vld [vmem:[%s5 + $0x4] sm:$0xf]
  %v231 = vld [vmem:[%s5 + $0x8] sm:$0xf]
  %v232 = vld [vmem:[%s5 + $0xc] sm:$0xf]
  %v233 = vld [vmem:[%s5 + $0x10] sm:$0xf]
  %v234 = vld [vmem:[%s5 + $0x14] sm:$0xf]
  %v235 = vld [vmem:[%s5 + $0x18] sm:$0xf]
  %v236 = vld [vmem:[%s5 + $0x1c] sm:$0xf]
  %v237 = vld [vmem:[%s5 + $0x20] sm:$0xf]
  %v238 = vld [vmem:[%s5 + $0x24] sm:$0xf]
  %v239 = vld [vmem:[%s5 + $0x28] sm:$0xf]
  %v240 = vld [vmem:[%s5 + $0x2c] sm:$0xf]
  %v241 = vld [vmem:[%s5 + $0x30] sm:$0xf]
  %v242 = vld [vmem:[%s5 + $0x34] sm:$0xf]
  %v243 = vld [vmem:[%s5 + $0x38] sm:$0xf]
  %v244 = vld [vmem:[%s5 + $0x3c] sm:$0xf]
  %v245 = vld [vmem:[%s6] sm:$0x1]
  %v247 = vlaneseq
  %v248 = vshrl.u32 %v247, 7
  %v249 = vsub.s32 0, %v248
  %v250 = vrot.slane %v245, %v249
  %v268 = vunpack.c.l.b16 %v229
  %v269 = vunpack.c.l.b16 %v230
  %v270 = vunpack.c.l.b16 %v231
  %v271 = vunpack.c.l.b16 %v232
  %v272 = vunpack.c.l.b16 %v233
  %v273 = vunpack.c.l.b16 %v234
  %v274 = vunpack.c.l.b16 %v235
  %v275 = vunpack.c.l.b16 %v236
  %v276 = vunpack.c.l.b16 %v237
  %v277 = vunpack.c.l.b16 %v238
  %v278 = vunpack.c.l.b16 %v239
  %v279 = vunpack.c.l.b16 %v240
  %v280 = vunpack.c.l.b16 %v241
  %v281 = vunpack.c.l.b16 %v242
  %v282 = vunpack.c.l.b16 %v243
  %v283 = vunpack.c.l.b16 %v244
  %v284 = vpack.c.b16 %v269, %v268
  %v285 = vpack.c.b16 %v271, %v270
  %v286 = vpack.c.b16 %v273, %v272
  %v287 = vpack.c.b16 %v275, %v274
  %v288 = vpack.c.b16 %v277, %v276
  %v289 = vpack.c.b16 %v279, %v278
  %v290 = vpack.c.b16 %v281, %v280
  %v291 = vpack.c.b16 %v283, %v282
  %300 = vmatprep.subr.bf16.mxu0 0
  %301 = vmatpush1.bf16.msra.mxu0 %v291
  %302 = vmatprep.subr.bf16.mxu0 0
  %303 = vmatpush1.bf16.msra.mxu0 %v290
  %304 = vmatprep.subr.bf16.mxu0 0
  %305 = vmatpush1.bf16.msra.mxu0 %v289
  %306 = vmatprep.subr.bf16.mxu0 0
  %307 = vmatpush1.bf16.msra.mxu0 %v288
  %308 = vmatprep.subr.bf16.mxu0 0
  %309 = vmatpush1.bf16.msra.mxu0 %v287
  %310 = vmatprep.subr.bf16.mxu0 0
  %311 = vmatpush1.bf16.msra.mxu0 %v286
  %312 = vmatprep.subr.bf16.mxu0 0
  %313 = vmatpush1.bf16.msra.mxu0 %v285
  %314 = vmatprep.subr.bf16.mxu0 0
  %315 = vmatpush1.bf16.msra.mxu0 %v284
  %316 = vmatprep.subr.bf16.mxu0 0
  %317 = vmatpush2.bf16.msra.mxu0 0
  %318 = vmatprep.subr.bf16.mxu0 0
  %319 = vmatpush2.bf16.msra.mxu0 0
  %320 = vmatprep.subr.bf16.mxu0 0
  %321 = vmatpush2.bf16.msra.mxu0 0
  %322 = vmatprep.subr.bf16.mxu0 0
  %323 = vmatpush2.bf16.msra.mxu0 0
  %324 = vmatprep.subr.bf16.mxu0 0
  %325 = vmatpush2.bf16.msra.mxu0 0
  %326 = vmatprep.subr.bf16.mxu0 0
  %327 = vmatpush2.bf16.msra.mxu0 0
  %328 = vmatprep.subr.bf16.mxu0 0
  %329 = vmatpush2.bf16.msra.mxu0 0
  %330 = vmatprep.subr.bf16.mxu0 0
  %331 = vmatpush2.bf16.msra.mxu0 0
  %332 = vmatprep.mubr.bf16.mxu0 0
  %333 = vmatmul.mubr.bf16.gmra.mxu0 %v227
  %v334 = vpop.f32.mrf.mxu0
  %v335 = vadd.f32 %v250, %v334
  %v336 = vpop.f32.mrf.mxu0
  %v337 = vpop.f32.mrf.mxu0
  %v338 = vadd.f32 %v250, %v337
  %v339 = vpop.f32.mrf.mxu0
  %340 = vmatprep.mubr.bf16.mxu0 0
  %341 = vmatmul.mubr.bf16.gmra.mxu0 %v228
  %v342 = vpop.f32.mrf.mxu0
  %v343 = vadd.f32 %v250, %v342
  %v344 = vpop.f32.mrf.mxu0
  %v345 = vpop.f32.mrf.mxu0
  %v346 = vadd.f32 %v250, %v345
  %v347 = vpop.f32.mrf.mxu0
  %348 = vdwg.mxu0
  %v349 = vadd.f32 %v31, %v335
  %v350 = vadd.f32 %v32, %v338
  %v351 = vadd.f32 %v33, %v343
  %v352 = vadd.f32 %v34, %v346
  %v353 = vpack.c.bf16 %v350, %v349
  %v354 = vpack.c.bf16 %v352, %v351
  %v357 = vunpack.c.l.b16 %v353
  %v358 = vunpack.c.h.b16 %v353
  %v359 = vunpack.c.l.b16 %v354
  %v360 = vunpack.c.h.b16 %v354
  %v361 = vpack.c.b16 %v357, %v357
  %v362 = vpack.c.b16 %v358, %v358
  %v363 = vpack.c.b16 %v359, %v359
  %v364 = vpack.c.b16 %v360, %v360
  %vm369 = vcmask 257024
  %370 = vst.msk [vmem:[%s7] sm:$0xf] %vm369, %v361
  %371 = vst.msk [vmem:[%s7 + $0x4] sm:$0xf] %vm369, %v362
  %372 = vst.msk [vmem:[%s7 + $0x8] sm:$0xf] %vm369, %v363
  %373 = vst.msk [vmem:[%s7 + $0xc] sm:$0xf] %vm369, %v364
  // Predicated region
  $region30: #{perception_forward.14} parent=0 // pred_check
    _
  $region31: #{perception_forward.14} parent=0 // pred_check_branch
    %375 = sbr.rel (0) target = $region33
  $region32: #{perception_forward.14} parent=0 // pred_region
    _
  $region33: #{perception_forward.14} parent=0 // pred_fallthru
    _
  // Predicated region
  $region34: #{perception_forward.14} parent=0 // pred_check
    _
  $region35: #{perception_forward.14} parent=0 // pred_check_branch
    %377 = sbr.rel (0) target = $region37
  $region36: #{perception_forward.14} parent=0 // pred_region
    _
  $region37: #{perception_forward.14} parent=0 // pred_fallthru
    _

// kernel: perception_forward.12
$region0: #{perception_forward.12}
  #allocation0 [shape = 'u32[]', space=smem, size = 0x4, offset = 0x4, fixed_abs, tag = 'smem constant byte address 0x4 - core index']
  #allocation1 [shape = 'u32[144,128]{1,0:T(1,128)}', space=vmem, size = 0x12000, scoped, tag = 'internal scratch']
  #allocation2 [shape = 'f32[4,16,1]{2,1,0:T(8,128)}', space=vmem, size = 0x8000, scoped, tag = 'scratch operand']
  #allocation3 [shape = 'f32[4,16,1]{2,1,0:T(8,128)}', space=vmem, size = 0x8000, scoped, tag = 'scratch operand']
  #allocation4 [shape = 'f32[4,16,8]{2,1,0:T(8,128)}', space=vmem, size = 0x8000, scoped, tag = 'scratch operand']
  %s0 = inlined_call_operand.vmem [shape: bf16[2,4,16,8], index: 0, kind: input, shape index: {}]
  %s1 = inlined_call_operand.vmem [shape: bf16[2,4,16,8], index: 1, kind: input, shape index: {}]
  %s2 = inlined_call_operand.vmem [shape: bf16[2,4,16,8], index: 2, kind: input, shape index: {}]
  %s3 = inlined_call_operand.vmem [shape: f32[2,1,16], index: 3, kind: input, shape index: {}]
  %s4 = inlined_call_operand.vmem [shape: bf16[2,4,16,8], index: 4, kind: output, shape index: {}]
  %s5 = sld [smem:[#allocation0]]
  $region57: #{perception_forward.12} parent=0
    _
  %s7 = ssub.s32 1, %s5
  %s8 = scalar_select 0, %s7, %s5
  loop: start=0, step=1, limit=4
  $region2: #{perception_forward.12} parent=0 // loop_pre_header
    _
  $region3: #{perception_forward.12} parent=0 // loop_header
    %s10 = sphi 0, %s14
    %p11 = scmp.ge.s32.totalorder %s10, 4
    %s17 = sphi 0, %s36
    %s18 = sphi 0, %s32
    %s19 = sphi 0, %s28
    %s20 = sphi 0, %s17
    %s21 = sphi 0, %s18
    %s22 = sphi 0, %s19
    %s23 = sphi 0, %s20
    %s24 = sphi 0, %s21
    %s25 = sphi 0, %s22
    %s41 = sphi 0, %s43
    %s44 = sphi 0, %s41
    %s45 = sphi 0, %s44
    %s61 = sphi 0, %s45
    %s69 = sphi 0, %s71
    %s72 = sphi 0, %s69
    %s73 = sphi 0, %s72
    %s89 = sphi 0, %s73
    %s97 = sphi 0, %s99
    %s100 = sphi 0, %s97
    %s101 = sphi 0, %s100
    %s117 = sphi 0, %s101
    %s125 = sphi 0, %s127
    %s128 = sphi 0, %s125
    %s129 = sphi 0, %s128
    %s145 = sphi 0, %s129
    %s153 = sphi 0, %s155
    %s156 = sphi 0, %s153
    %s157 = sphi 0, %s156
    %s173 = sphi 0, %s157
  $region4: #{perception_forward.12} parent=0 // loop_header_branch
    %13 = sbr.rel (%p11) target = $region8
  $region5: #{perception_forward.12} parent=0 // loop_body
    %s15 = ssub.s32 %s10, 1
    %s16 = ssub.s32 %s10, 2
    %s26 = sadd.s32 1, %s19
    %p27 = scmp.ge.s32.totalorder %s26, 1
    %s28 = scalar_select %p27, 0, %s26
    %s29 = sadd.s32 1, %s18
    %s30 = scalar_select %p27, %s29, %s18
    %p31 = scmp.ge.s32.totalorder %s30, 1
    %s32 = scalar_select %p31, 0, %s30
    %s33 = sadd.s32 1, %s17
    %s34 = scalar_select %p31, %s33, %s17
    %p35 = scmp.ge.s32.totalorder %s34, 2
    %s36 = scalar_select %p35, 0, %s34
    %s37 = ssub.s32 %s17, %s36
    %s38 = ssub.s32 %s18, %s32
    %s39 = sor.u32 %s37, %s38
    %p40 = scmp.eq.s32.totalorder %s39, 0
    %s42 = sadd.s32 %s41, 1
    %s43 = scalar_select %p40, %s41, %s42
    %p46 = pneg %p40
    %p47 = scmp.eq.s32.totalorder %s10, 1
    %p48 = por %p46, %p47
    %p49 = scmp.ne.s32.totalorder %s41, %s44
    %p50 = scmp.eq.s32.totalorder %s10, 0
    %p51 = por %p49, %p50
    %p52 = scmp.ne.s32.totalorder %s41, %s44
    %p53 = scmp.eq.s32.totalorder %s15, 1
    %p54 = por %p52, %p53
    %p55 = scmp.ne.s32.totalorder %s44, %s45
    %p56 = scmp.eq.s32.totalorder %s15, 0
    %p57 = por %p55, %p56
    %p58 = scmp.ne.s32.totalorder %s44, %s45
    %p59 = scmp.eq.s32.totalorder %s16, 1
    %p60 = por %p58, %p59
    %p62 = scmp.ne.s32.totalorder %s45, %s61
    %p63 = scmp.eq.s32.totalorder %s16, 0
    %p64 = por %p62, %p63
    %s65 = ssub.s32 %s17, %s36
    %s66 = ssub.s32 %s19, %s28
    %s67 = sor.u32 %s65, %s66
    %p68 = scmp.eq.s32.totalorder %s67, 0
    %s70 = sadd.s32 %s69, 1
    %s71 = scalar_select %p68, %s69, %s70
    %p74 = pneg %p68
    %p75 = scmp.eq.s32.totalorder %s10, 1
    %p76 = por %p74, %p75
    %p77 = scmp.ne.s32.totalorder %s69, %s72
    %p78 = scmp.eq.s32.totalorder %s10, 0
    %p79 = por %p77, %p78
    %p80 = scmp.ne.s32.totalorder %s69, %s72
    %p81 = scmp.eq.s32.totalorder %s15, 1
    %p82 = por %p80, %p81
    %p83 = scmp.ne.s32.totalorder %s72, %s73
    %p84 = scmp.eq.s32.totalorder %s15, 0
    %p85 = por %p83, %p84
    %p86 = scmp.ne.s32.totalorder %s72, %s73
    %p87 = scmp.eq.s32.totalorder %s16, 1
    %p88 = por %p86, %p87
    %p90 = scmp.ne.s32.totalorder %s73, %s89
    %p91 = scmp.eq.s32.totalorder %s16, 0
    %p92 = por %p90, %p91
    %s93 = ssub.s32 %s17, %s36
    %s94 = ssub.s32 %s19, %s28
    %s95 = sor.u32 %s93, %s94
    %p96 = scmp.eq.s32.totalorder %s95, 0
    %s98 = sadd.s32 %s97, 1
    %s99 = scalar_select %p96, %s97, %s98
    %p102 = pneg %p96
    %p103 = scmp.eq.s32.totalorder %s10, 1
    %p104 = por %p102, %p103
    %p105 = scmp.ne.s32.totalorder %s97, %s100
    %p106 = scmp.eq.s32.totalorder %s10, 0
    %p107 = por %p105, %p106
    %p108 = scmp.ne.s32.totalorder %s97, %s100
    %p109 = scmp.eq.s32.totalorder %s15, 1
    %p110 = por %p108, %p109
    %p111 = scmp.ne.s32.totalorder %s100, %s101
    %p112 = scmp.eq.s32.totalorder %s15, 0
    %p113 = por %p111, %p112
    %p114 = scmp.ne.s32.totalorder %s100, %s101
    %p115 = scmp.eq.s32.totalorder %s16, 1
    %p116 = por %p114, %p115
    %p118 = scmp.ne.s32.totalorder %s101, %s117
    %p119 = scmp.eq.s32.totalorder %s16, 0
    %p120 = por %p118, %p119
    %s121 = ssub.s32 %s17, %s36
    %s122 = ssub.s32 %s19, %s28
    %s123 = sor.u32 %s121, %s122
    %p124 = scmp.eq.s32.totalorder %s123, 0
    %s126 = sadd.s32 %s125, 1
    %s127 = scalar_select %p124, %s125, %s126
    %p130 = pneg %p124
    %p131 = scmp.eq.s32.totalorder %s10, 1
    %p132 = por %p130, %p131
    %p133 = scmp.ne.s32.totalorder %s125, %s128
    %p134 = scmp.eq.s32.totalorder %s10, 0
    %p135 = por %p133, %p134
    %p136 = scmp.ne.s32.totalorder %s125, %s128
    %p137 = scmp.eq.s32.totalorder %s15, 1
    %p138 = por %p136, %p137
    %p139 = scmp.ne.s32.totalorder %s128, %s129
    %p140 = scmp.eq.s32.totalorder %s15, 0
    %p141 = por %p139, %p140
    %p142 = scmp.ne.s32.totalorder %s128, %s129
    %p143 = scmp.eq.s32.totalorder %s16, 1
    %p144 = por %p142, %p143
    %p146 = scmp.ne.s32.totalorder %s129, %s145
    %p147 = scmp.eq.s32.totalorder %s16, 0
    %p148 = por %p146, %p147
    %s149 = ssub.s32 %s17, %s36
    %s150 = ssub.s32 %s18, %s32
    %s151 = sor.u32 %s149, %s150
    %p152 = scmp.eq.s32.totalorder %s151, 0
    %s154 = sadd.s32 %s153, 1
    %s155 = scalar_select %p152, %s153, %s154
    %p158 = pneg %p152
    %p159 = scmp.eq.s32.totalorder %s10, 1
    %p160 = por %p158, %p159
    %p161 = scmp.ne.s32.totalorder %s153, %s156
    %p162 = scmp.eq.s32.totalorder %s10, 0
    %p163 = por %p161, %p162
    %p164 = scmp.ne.s32.totalorder %s153, %s156
    %p165 = scmp.eq.s32.totalorder %s15, 1
    %p166 = por %p164, %p165
    %p167 = scmp.ne.s32.totalorder %s156, %s157
    %p168 = scmp.eq.s32.totalorder %s15, 0
    %p169 = por %p167, %p168
    %p170 = scmp.ne.s32.totalorder %s156, %s157
    %p171 = scmp.eq.s32.totalorder %s16, 1
    %p172 = por %p170, %p171
    %p174 = scmp.ne.s32.totalorder %s157, %s173
    %p175 = scmp.eq.s32.totalorder %s16, 0
    %p176 = por %p174, %p175
    %p177 = scmp.le.s32.totalorder 1, %s10
    %p178 = scmp.lt.s32.totalorder %s10, 3
    %p179 = pnand %p177, %p178
    %p180 = pneg %p179
    // Predicated region
    $region9: #{perception_forward.12} parent=5 // pred_check
      _
    $region10: #{perception_forward.12} parent=5 // pred_check_branch
      %182 = sbr.rel (%p179) target = $region12
    $region11: #{perception_forward.12} parent=5 // pred_region
      %s183 = ssub.s32 %s10, 1
    $region12: #{perception_forward.12} parent=5 // pred_fallthru
      _
    %p184 = scmp.lt.s32.totalorder %s10, 2
    // Predicated region
    $region13: #{perception_forward.12} parent=5 // pred_check
      %p185 = pneg %p184
    $region14: #{perception_forward.12} parent=5 // pred_check_branch
      %187 = sbr.rel (%p185) target = $region16
    $region15: #{perception_forward.12} parent=5 // pred_region
      // Predicated region
      $region17: #{perception_forward.12} parent=15 // pred_check
        %p188 = pneg %p51
      $region18: #{perception_forward.12} parent=15 // pred_check_branch
        %190 = sbr.rel (%p188) target = $region20
      $region19: #{perception_forward.12} parent=15 // pred_region
        %s191 = smul.u32 2, %s18
        %p192 = scmp.lt.s32.totalorder %s17, 1
        %s193 = scalar_select %p192, %s17, 1
        %p194 = scmp.lt.s32.totalorder %s191, 1
        %s195 = scalar_select %p194, %s191, 1
        %s196 = smul.addr %s193, 8
        %s197 = sadd.s32 %s195, %s196
        %s198 = smul.addr %s197, 4
        %s199 = scalar_lea.vmem %s0, %s198
        %s200 = smul.u32 2, %s18
      $region20: #{perception_forward.12} parent=15 // pred_fallthru
        _
      // Predicated region
      $region21: #{perception_forward.12} parent=15 // pred_check
        %p201 = pneg %p79
      $region22: #{perception_forward.12} parent=15 // pred_check_branch
        %203 = sbr.rel (%p201) target = $region24
      $region23: #{perception_forward.12} parent=15 // pred_region
        %s204 = smul.u32 2, %s19
        %p205 = scmp.lt.s32.totalorder %s17, 1
        %s206 = scalar_select %p205, %s17, 1
        %p207 = scmp.lt.s32.totalorder %s204, 1
        %s208 = scalar_select %p207, %s204, 1
        %s209 = smul.addr %s206, 8
        %s210 = sadd.s32 %s208, %s209
        %s211 = smul.addr %s210, 4
        %s212 = scalar_lea.vmem %s1, %s211
        %s213 = smul.u32 2, %s19
      $region24: #{perception_forward.12} parent=15 // pred_fallthru
        _
      // Predicated region
      $region25: #{perception_forward.12} parent=15 // pred_check
        %p214 = pneg %p107
      $region26: #{perception_forward.12} parent=15 // pred_check_branch
        %216 = sbr.rel (%p214) target = $region28
      $region27: #{perception_forward.12} parent=15 // pred_region
        %s217 = smul.u32 2, %s19
        %p218 = scmp.lt.s32.totalorder %s17, 1
        %s219 = scalar_select %p218, %s17, 1
        %p220 = scmp.lt.s32.totalorder %s217, 1
        %s221 = scalar_select %p220, %s217, 1
        %s222 = smul.addr %s219, 8
        %s223 = sadd.s32 %s221, %s222
        %s224 = smul.addr %s223, 4
        %s225 = scalar_lea.vmem %s2, %s224
        %s226 = smul.u32 2, %s19
      $region28: #{perception_forward.12} parent=15 // pred_fallthru
        _
      // Predicated region
      $region29: #{perception_forward.12} parent=15 // pred_check
        %p227 = pneg %p135
      $region30: #{perception_forward.12} parent=15 // pred_check_branch
        %229 = sbr.rel (%p227) target = $region32
      $region31: #{perception_forward.12} parent=15 // pred_region
        %p230 = scmp.lt.s32.totalorder %s17, 1
        %s231 = scalar_select %p230, %s17, 1
        %p232 = scmp.lt.s32.totalorder %s19, 0
        %s233 = scalar_select %p232, %s19, 0
        %s234 = sadd.s32 %s233, %s231
        %s235 = scalar_lea.vmem %s3, %s234
      $region32: #{perception_forward.12} parent=15 // pred_fallthru
        _
    $region16: #{perception_forward.12} parent=5 // pred_fallthru
      _
    %p236 = scmp.le.s32.totalorder 1, %s10
    %p237 = scmp.lt.s32.totalorder %s10, 3
    %p238 = pnand %p236, %p237
    %p239 = pneg %p238
    // Predicated region
    $region33: #{perception_forward.12} parent=5 // pred_check
      _
    $region34: #{perception_forward.12} parent=5 // pred_check_branch
      %241 = sbr.rel (%p238) target = $region36
    $region35: #{perception_forward.12} parent=5 // pred_region
      %s242 = ssub.s32 %s10, 1
      %s243 = smul.u32 2, %s21
      %p244 = scmp.lt.s32.totalorder %s20, 1
      %s245 = scalar_select %p244, %s20, 1
      %p246 = scmp.lt.s32.totalorder %s243, 1
      %s247 = scalar_select %p246, %s243, 1
      %s248 = smul.addr %s245, 8
      %s249 = sadd.s32 %s247, %s248
      %s250 = smul.addr %s249, 4
      %s251 = scalar_lea.vmem %s0, %s250
      %p252 = pneg %p57
      %p253 = pneg %p54
      %s254 = smul.u32 2, %s22
      %p255 = scmp.lt.s32.totalorder %s20, 1
      %s256 = scalar_select %p255, %s20, 1
      %p257 = scmp.lt.s32.totalorder %s254, 1
      %s258 = scalar_select %p257, %s254, 1
      %s259 = smul.addr %s256, 8
      %s260 = sadd.s32 %s258, %s259
      %s261 = smul.addr %s260, 4
      %s262 = scalar_lea.vmem %s1, %s261
      %p263 = pneg %p85
      %p264 = pneg %p82
      %s265 = smul.u32 2, %s22
      %p266 = scmp.lt.s32.totalorder %s20, 1
      %s267 = scalar_select %p266, %s20, 1
      %p268 = scmp.lt.s32.totalorder %s265, 1
      %s269 = scalar_select %p268, %s265, 1
      %s270 = smul.addr %s267, 8
      %s271 = sadd.s32 %s269, %s270
      %s272 = smul.addr %s271, 4
      %s273 = scalar_lea.vmem %s2, %s272
      %p274 = pneg %p113
      %p275 = pneg %p110
      %p276 = scmp.lt.s32.totalorder %s20, 1
      %s277 = scalar_select %p276, %s20, 1
      %p278 = scmp.lt.s32.totalorder %s22, 0
      %s279 = scalar_select %p278, %s22, 0
      %s280 = sadd.s32 %s279, %s277
      %s281 = scalar_lea.vmem %s3, %s280
      %p282 = pneg %p141
      %p283 = pneg %p138
      %p284 = pneg %p169
      %p285 = pneg %p166
      %s286 = smul.u32 2, %s21
      %p287 = scmp.lt.s32.totalorder %s20, 1
      %s288 = scalar_select %p287, %s20, 1
      %p289 = scmp.lt.s32.totalorder %s286, 1
      %s290 = scalar_select %p289, %s286, 1
      %s291 = smul.addr %s288, 8
      %s292 = sadd.s32 %s290, %s291
      %s293 = smul.addr %s292, 4
      %s294 = scalar_lea.vmem %s4, %s293
      %s295 = smul.u32 2, %s21
      %p296 = scmp.lt.s32.totalorder %s20, 1
      %s297 = scalar_select %p296, %s20, 1
      %p298 = scmp.lt.s32.totalorder %s295, 1
      %s299 = scalar_select %p298, %s295, 1
      %s300 = smul.addr %s297, 8
      %s301 = sadd.s32 %s299, %s300
      %s302 = smul.addr %s301, 4
      %s303 = scalar_lea.vmem %s0, %s302
      %s304 = smul.u32 2, %s21
      %s305 = smul.u32 2, %s22
      %p306 = scmp.lt.s32.totalorder %s20, 1
      %s307 = scalar_select %p306, %s20, 1
      %p308 = scmp.lt.s32.totalorder %s305, 1
      %s309 = scalar_select %p308, %s305, 1
      %s310 = smul.addr %s307, 8
      %s311 = sadd.s32 %s309, %s310
      %s312 = smul.addr %s311, 4
      %s313 = scalar_lea.vmem %s1, %s312
      %s314 = smul.u32 2, %s22
      %s315 = smul.u32 2, %s22
      %p316 = scmp.lt.s32.totalorder %s20, 1
      %s317 = scalar_select %p316, %s20, 1
      %p318 = scmp.lt.s32.totalorder %s315, 1
      %s319 = scalar_select %p318, %s315, 1
      %s320 = smul.addr %s317, 8
      %s321 = sadd.s32 %s319, %s320
      %s322 = smul.addr %s321, 4
      %s323 = scalar_lea.vmem %s2, %s322
      %s324 = smul.u32 2, %s22
      %p325 = scmp.lt.s32.totalorder %s20, 1
      %s326 = scalar_select %p325, %s20, 1
      %p327 = scmp.lt.s32.totalorder %s22, 0
      %s328 = scalar_select %p327, %s22, 0
      %s329 = sadd.s32 %s328, %s326
      %s330 = scalar_lea.vmem %s3, %s329
      %s331 = smul.u32 2, %s21
      %p332 = scmp.lt.s32.totalorder %s20, 1
      %s333 = scalar_select %p332, %s20, 1
      %p334 = scmp.lt.s32.totalorder %s331, 1
      %s335 = scalar_select %p334, %s331, 1
      %s336 = smul.addr %s333, 8
      %s337 = sadd.s32 %s335, %s336
      %s338 = smul.addr %s337, 4
      %s339 = scalar_lea.vmem %s4, %s338
      %s340 = smul.u32 2, %s21
      %p342 = scmp.eq.s32.totalorder %s22, 0
      // Predicated region
      $region37: #{perception_forward.12} parent=35 // pred_check
        %p343 = pneg %p342
      $region38: #{perception_forward.12} parent=35 // pred_check_branch
        %345 = sbr.rel (%p343) target = $region40
      $region39: #{perception_forward.12} parent=35 // pred_region
        %vm346 = vcmask 7168
        %347 = vst.msk [vmem:[#allocation2] sm:$0xff] %vm346, -1e+30
        %348 = vst.msk [vmem:[#allocation2 + $0x8] sm:$0xff] %vm346, -1e+30
        %349 = vst.msk [vmem:[#allocation2 + $0x10] sm:$0xff] %vm346, -1e+30
        %350 = vst.msk [vmem:[#allocation2 + $0x18] sm:$0xff] %vm346, -1e+30
        %351 = vst.msk [vmem:[#allocation2 + $0x20] sm:$0xff] %vm346, -1e+30
        %352 = vst.msk [vmem:[#allocation2 + $0x28] sm:$0xff] %vm346, -1e+30
        %353 = vst.msk [vmem:[#allocation2 + $0x30] sm:$0xff] %vm346, -1e+30
        %354 = vst.msk [vmem:[#allocation2 + $0x38] sm:$0xff] %vm346, -1e+30
        %355 = vst.msk [vmem:[#allocation3] sm:$0xff] %vm346, 0.0
        %356 = vst.msk [vmem:[#allocation3 + $0x8] sm:$0xff] %vm346, 0.0
        %357 = vst.msk [vmem:[#allocation3 + $0x10] sm:$0xff] %vm346, 0.0
        %358 = vst.msk [vmem:[#allocation3 + $0x18] sm:$0xff] %vm346, 0.0
        %359 = vst.msk [vmem:[#allocation3 + $0x20] sm:$0xff] %vm346, 0.0
        %360 = vst.msk [vmem:[#allocation3 + $0x28] sm:$0xff] %vm346, 0.0
        %361 = vst.msk [vmem:[#allocation3 + $0x30] sm:$0xff] %vm346, 0.0
        %362 = vst.msk [vmem:[#allocation3 + $0x38] sm:$0xff] %vm346, 0.0
        %vm363 = vcmask 64512
        %364 = vst.msk [vmem:[#allocation4] sm:$0xff] %vm363, 0.0
        %365 = vst.msk [vmem:[#allocation4 + $0x8] sm:$0xff] %vm363, 0.0
        %366 = vst.msk [vmem:[#allocation4 + $0x10] sm:$0xff] %vm363, 0.0
        %367 = vst.msk [vmem:[#allocation4 + $0x18] sm:$0xff] %vm363, 0.0
        %368 = vst.msk [vmem:[#allocation4 + $0x20] sm:$0xff] %vm363, 0.0
        %369 = vst.msk [vmem:[#allocation4 + $0x28] sm:$0xff] %vm363, 0.0
        %370 = vst.msk [vmem:[#allocation4 + $0x30] sm:$0xff] %vm363, 0.0
        %371 = vst.msk [vmem:[#allocation4 + $0x38] sm:$0xff] %vm363, 0.0
      $region40: #{perception_forward.12} parent=35 // pred_fallthru
        _
      %v372 = vld [vmem:[%s303] sm:$0xf]
      %v373 = vld [vmem:[%s303 + $0x4] sm:$0xf]
      %v374 = vld [vmem:[%s303 + $0x8] sm:$0xf]
      %v375 = vld [vmem:[%s303 + $0xc] sm:$0xf]
      %v376 = vld [vmem:[%s303 + $0x10] sm:$0xf]
      %v377 = vld [vmem:[%s303 + $0x14] sm:$0xf]
      %v378 = vld [vmem:[%s303 + $0x18] sm:$0xf]
      %v379 = vld [vmem:[%s303 + $0x1c] sm:$0xf]
      %v380 = vld [vmem:[%s313] sm:$0xf]
      %v381 = vld [vmem:[%s313 + $0x4] sm:$0xf]
      %v382 = vld [vmem:[%s313 + $0x8] sm:$0xf]
      %v383 = vld [vmem:[%s313 + $0xc] sm:$0xf]
      %v384 = vld [vmem:[%s313 + $0x10] sm:$0xf]
      %v385 = vld [vmem:[%s313 + $0x14] sm:$0xf]
      %v386 = vld [vmem:[%s313 + $0x18] sm:$0xf]
      %v387 = vld [vmem:[%s313 + $0x1c] sm:$0xf]
      %v388 = vld [vmem:[%s323] sm:$0xf]
      %v389 = vld [vmem:[%s323 + $0x4] sm:$0xf]
      %v390 = vld [vmem:[%s323 + $0x8] sm:$0xf]
      %v391 = vld [vmem:[%s323 + $0xc] sm:$0xf]
      %v392 = vld [vmem:[%s323 + $0x10] sm:$0xf]
      %v393 = vld [vmem:[%s323 + $0x14] sm:$0xf]
      %v394 = vld [vmem:[%s323 + $0x18] sm:$0xf]
      %v395 = vld [vmem:[%s323 + $0x1c] sm:$0xf]
      %v398 = vunpack.c.l.b16 %v372
      %v399 = vunpack.c.l.b16 %v373
      %v400 = vpack.c.b16 %v399, %v398
      %v403 = vunpack.c.l.b16 %v380
      %v404 = vunpack.c.l.b16 %v381
      %v405 = vpack.c.b16 %v404, %v403
      %vm406 = vcmask 64512
      %v408 = vsel %vm406, %v400, 0
      %v411 = vsel %vm406, %v405, 0
      %413 = vmatprep.subr.bf16.mxu0 0
      %414 = vmatpush1.bf16.xpose.msra.mxu0 0
      %415 = vmatprep.subr.bf16.mxu0 0
      %416 = vmatpush1.bf16.xpose.msra.mxu0 0
      %417 = vmatprep.subr.bf16.mxu0 0
      %418 = vmatpush1.bf16.xpose.msra.mxu0 0
      %419 = vmatprep.subr.bf16.mxu0 0
      %420 = vmatpush1.bf16.xpose.msra.mxu0 0
      %421 = vmatprep.subr.bf16.mxu0 0
      %422 = vmatpush1.bf16.xpose.msra.mxu0 0
      %423 = vmatprep.subr.bf16.mxu0 0
      %424 = vmatpush1.bf16.xpose.msra.mxu0 0
      %425 = vmatprep.subr.bf16.mxu0 0
      %426 = vmatpush1.bf16.xpose.msra.mxu0 0
      %427 = vmatprep.subr.bf16.mxu0 0
      %428 = vmatpush1.bf16.xpose.msra.mxu0 %v411
      %429 = vmatprep.subr.bf16.mxu0 0
      %430 = vmatpush2.bf16.xpose.msra.mxu0 0
      %431 = vmatprep.subr.bf16.mxu0 0
      %432 = vmatpush2.bf16.xpose.msra.mxu0 0
      %433 = vmatprep.subr.bf16.mxu0 0
      %434 = vmatpush2.bf16.xpose.msra.mxu0 0
      %435 = vmatprep.subr.bf16.mxu0 0
      %436 = vmatpush2.bf16.xpose.msra.mxu0 0
      %437 = vmatprep.subr.bf16.mxu0 0
      %438 = vmatpush2.bf16.xpose.msra.mxu0 0
      %439 = vmatprep.subr.bf16.mxu0 0
      %440 = vmatpush2.bf16.xpose.msra.mxu0 0
      %441 = vmatprep.subr.bf16.mxu0 0
      %442 = vmatpush2.bf16.xpose.msra.mxu0 0
      %443 = vmatprep.subr.bf16.mxu0 0
      %444 = vmatpush2.bf16.xpose.msra.mxu0 0
      %445 = vmatprep.mubr.bf16.mxu0 0
      %446 = vmatmul.mubr.bf16.gmra.mxu0 %v408
      %v447 = vpop.f32.mrf.mxu0
      %v448 = vadd.f32 0.0, %v447
      %v449 = vpop.f32.mrf.mxu0
      %v450 = vpop.f32.mrf.mxu0
      %v451 = vadd.f32 0.0, %v450
      %v452 = vpop.f32.mrf.mxu0
      %453 = vdwg.mxu0
      %v456 = vunpack.c.l.b16 %v374
      %v457 = vunpack.c.l.b16 %v375
      %v458 = vpack.c.b16 %v457, %v456
      %v461 = vunpack.c.l.b16 %v382
      %v462 = vunpack.c.l.b16 %v383
      %v463 = vpack.c.b16 %v462, %v461
      %v465 = vsel %vm406, %v458, 0
      %v468 = vsel %vm406, %v463, 0
      %470 = vmatprep.subr.bf16.mxu0 0
      %471 = vmatpush1.bf16.xpose.msra.mxu0 0
      %472 = vmatprep.subr.bf16.mxu0 0
      %473 = vmatpush1.bf16.xpose.msra.mxu0 0
      %474 = vmatprep.subr.bf16.mxu0 0
      %475 = vmatpush1.bf16.xpose.msra.mxu0 0
      %476 = vmatprep.subr.bf16.mxu0 0
      %477 = vmatpush1.bf16.xpose.msra.mxu0 0
      %478 = vmatprep.subr.bf16.mxu0 0
      %479 = vmatpush1.bf16.xpose.msra.mxu0 0
      %480 = vmatprep.subr.bf16.mxu0 0
      %481 = vmatpush1.bf16.xpose.msra.mxu0 0
      %482 = vmatprep.subr.bf16.mxu0 0
      %483 = vmatpush1.bf16.xpose.msra.mxu0 0
      %484 = vmatprep.subr.bf16.mxu0 0
      %485 = vmatpush1.bf16.xpose.msra.mxu0 %v468
      %486 = vmatprep.subr.bf16.mxu0 0
      %487 = vmatpush2.bf16.xpose.msra.mxu0 0
      %488 = vmatprep.subr.bf16.mxu0 0
      %489 = vmatpush2.bf16.xpose.msra.mxu0 0
      %490 = vmatprep.subr.bf16.mxu0 0
      %491 = vmatpush2.bf16.xpose.msra.mxu0 0
      %492 = vmatprep.subr.bf16.mxu0 0
      %493 = vmatpush2.bf16.xpose.msra.mxu0 0
      %494 = vmatprep.subr.bf16.mxu0 0
      %495 = vmatpush2.bf16.xpose.msra.mxu0 0
      %496 = vmatprep.subr.bf16.mxu0 0
      %497 = vmatpush2.bf16.xpose.msra.mxu0 0
      %498 = vmatprep.subr.bf16.mxu0 0
      %499 = vmatpush2.bf16.xpose.msra.mxu0 0
      %500 = vmatprep.subr.bf16.mxu0 0
      %501 = vmatpush2.bf16.xpose.msra.mxu0 0
      %502 = vmatprep.mubr.bf16.mxu0 0
      %503 = vmatmul.mubr.bf16.gmra.mxu0 %v465
      %v504 = vpop.f32.mrf.mxu0
      %v505 = vadd.f32 0.0, %v504
      %v506 = vpop.f32.mrf.mxu0
      %v507 = vpop.f32.mrf.mxu0
      %v508 = vadd.f32 0.0, %v507
      %v509 = vpop.f32.mrf.mxu0
      %510 = vdwg.mxu0
      %v513 = vunpack.c.l.b16 %v376
      %v514 = vunpack.c.l.b16 %v377
      %v515 = vpack.c.b16 %v514, %v513
      %v518 = vunpack.c.l.b16 %v384
      %v519 = vunpack.c.l.b16 %v385
      %v520 = vpack.c.b16 %v519, %v518
      %v522 = vsel %vm406, %v515, 0
      %v525 = vsel %vm406, %v520, 0
      %527 = vmatprep.subr.bf16.mxu0 0
      %528 = vmatpush1.bf16.xpose.msra.mxu0 0
      %529 = vmatprep.subr.bf16.mxu0 0
      %530 = vmatpush1.bf16.xpose.msra.mxu0 0
      %531 = vmatprep.subr.bf16.mxu0 0
      %532 = vmatpush1.bf16.xpose.msra.mxu0 0
      %533 = vmatprep.subr.bf16.mxu0 0
      %534 = vmatpush1.bf16.xpose.msra.mxu0 0
      %535 = vmatprep.subr.bf16.mxu0 0
      %536 = vmatpush1.bf16.xpose.msra.mxu0 0
      %537 = vmatprep.subr.bf16.mxu0 0
      %538 = vmatpush1.bf16.xpose.msra.mxu0 0
      %539 = vmatprep.subr.bf16.mxu0 0
      %540 = vmatpush1.bf16.xpose.msra.mxu0 0
      %541 = vmatprep.subr.bf16.mxu0 0
      %542 = vmatpush1.bf16.xpose.msra.mxu0 %v525
      %543 = vmatprep.subr.bf16.mxu0 0
      %544 = vmatpush2.bf16.xpose.msra.mxu0 0
      %545 = vmatprep.subr.bf16.mxu0 0
      %546 = vmatpush2.bf16.xpose.msra.mxu0 0
      %547 = vmatprep.subr.bf16.mxu0 0
      %548 = vmatpush2.bf16.xpose.msra.mxu0 0
      %549 = vmatprep.subr.bf16.mxu0 0
      %550 = vmatpush2.bf16.xpose.msra.mxu0 0
      %551 = vmatprep.subr.bf16.mxu0 0
      %552 = vmatpush2.bf16.xpose.msra.mxu0 0
      %553 = vmatprep.subr.bf16.mxu0 0
      %554 = vmatpush2.bf16.xpose.msra.mxu0 0
      %555 = vmatprep.subr.bf16.mxu0 0
      %556 = vmatpush2.bf16.xpose.msra.mxu0 0
      %557 = vmatprep.subr.bf16.mxu0 0
      %558 = vmatpush2.bf16.xpose.msra.mxu0 0
      %559 = vmatprep.mubr.bf16.mxu0 0
      %560 = vmatmul.mubr.bf16.gmra.mxu0 %v522
      %v561 = vpop.f32.mrf.mxu0
      %v562 = vadd.f32 0.0, %v561
      %v563 = vpop.f32.mrf.mxu0
      %v564 = vpop.f32.mrf.mxu0
      %v565 = vadd.f32 0.0, %v564
      %v566 = vpop.f32.mrf.mxu0
      %567 = vdwg.mxu0
      %v570 = vunpack.c.l.b16 %v378
      %v571 = vunpack.c.l.b16 %v379
      %v572 = vpack.c.b16 %v571, %v570
      %v575 = vunpack.c.l.b16 %v386
      %v576 = vunpack.c.l.b16 %v387
      %v577 = vpack.c.b16 %v576, %v575
      %v579 = vsel %vm406, %v572, 0
      %v582 = vsel %vm406, %v577, 0
      %584 = vmatprep.subr.bf16.mxu0 0
      %585 = vmatpush1.bf16.xpose.msra.mxu0 0
      %586 = vmatprep.subr.bf16.mxu0 0
      %587 = vmatpush1.bf16.xpose.msra.mxu0 0
      %588 = vmatprep.subr.bf16.mxu0 0
      %589 = vmatpush1.bf16.xpose.msra.mxu0 0
      %590 = vmatprep.subr.bf16.mxu0 0
      %591 = vmatpush1.bf16.xpose.msra.mxu0 0
      %592 = vmatprep.subr.bf16.mxu0 0
      %593 = vmatpush1.bf16.xpose.msra.mxu0 0
      %594 = vmatprep.subr.bf16.mxu0 0
      %595 = vmatpush1.bf16.xpose.msra.mxu0 0
      %596 = vmatprep.subr.bf16.mxu0 0
      %597 = vmatpush1.bf16.xpose.msra.mxu0 0
      %598 = vmatprep.subr.bf16.mxu0 0
      %599 = vmatpush1.bf16.xpose.msra.mxu0 %v582
      %600 = vmatprep.subr.bf16.mxu0 0
      %601 = vmatpush2.bf16.xpose.msra.mxu0 0
      %602 = vmatprep.subr.bf16.mxu0 0
      %603 = vmatpush2.bf16.xpose.msra.mxu0 0
      %604 = vmatprep.subr.bf16.mxu0 0
      %605 = vmatpush2.bf16.xpose.msra.mxu0 0
      %606 = vmatprep.subr.bf16.mxu0 0
      %607 = vmatpush2.bf16.xpose.msra.mxu0 0
      %608 = vmatprep.subr.bf16.mxu0 0
      %609 = vmatpush2.bf16.xpose.msra.mxu0 0
      %610 = vmatprep.subr.bf16.mxu0 0
      %611 = vmatpush2.bf16.xpose.msra.mxu0 0
      %612 = vmatprep.subr.bf16.mxu0 0
      %613 = vmatpush2.bf16.xpose.msra.mxu0 0
      %614 = vmatprep.subr.bf16.mxu0 0
      %615 = vmatpush2.bf16.xpose.msra.mxu0 0
      %616 = vmatprep.mubr.bf16.mxu0 0
      %617 = vmatmul.mubr.bf16.gmra.mxu0 %v579
      %v618 = vpop.f32.mrf.mxu0
      %v619 = vadd.f32 0.0, %v618
      %v620 = vpop.f32.mrf.mxu0
      %v621 = vpop.f32.mrf.mxu0
      %v622 = vadd.f32 0.0, %v621
      %v623 = vpop.f32.mrf.mxu0
      %624 = vdwg.mxu0
      %v625 = vmul.f32 %v448, 0.35355338
      %v626 = vmul.f32 %v451, 0.35355338
      %v627 = vmul.f32 %v505, 0.35355338
      %v628 = vmul.f32 %v508, 0.35355338
      %v629 = vmul.f32 %v562, 0.35355338
      %v630 = vmul.f32 %v565, 0.35355338
      %v631 = vmul.f32 %v619, 0.35355338
      %v632 = vmul.f32 %v622, 0.35355338
      %v633 = vld [vmem:[%s330] sm:$0x1]
      %v635 = vlaneseq
      %v636 = vshrl.u32 %v635, 7
      %v637 = vsub.s32 0, %v636
      %v638 = vrot.slane %v633, %v637
      %v640 = vadd.f32 %v625, %v638
      %v641 = vadd.f32 %v626, %v638
      %v642 = vadd.f32 %v627, %v638
      %v643 = vadd.f32 %v628, %v638
      %v644 = vadd.f32 %v629, %v638
      %v645 = vadd.f32 %v630, %v638
      %v646 = vadd.f32 %v631, %v638
      %v647 = vadd.f32 %v632, %v638
      %v648 = vld [vmem:[#allocation2] sm:$0xff]
      %v649 = vld [vmem:[#allocation2 + $0x8] sm:$0xff]
      %v650 = vld [vmem:[#allocation2 + $0x10] sm:$0xff]
      %v651 = vld [vmem:[#allocation2 + $0x18] sm:$0xff]
      %v652 = vld [vmem:[#allocation2 + $0x20] sm:$0xff]
      %v653 = vld [vmem:[#allocation2 + $0x28] sm:$0xff]
      %v654 = vld [vmem:[#allocation2 + $0x30] sm:$0xff]
      %v655 = vld [vmem:[#allocation2 + $0x38] sm:$0xff]
      %vm656 = vcmask 130048
      %v657 = vsel %vm656, %v640, -inf
      %658 = vmax.xlane.f32.xlu0 %v657
      %v659 = vpop.xlane.xlu0 %658
      %v660 = vsel %vm656, %v641, -inf
      %661 = vmax.xlane.f32.xlu0 %v660
      %v662 = vpop.xlane.xlu0 %661
      %v663 = vsel %vm656, %v642, -inf
      %664 = vmax.xlane.f32.xlu0 %v663
      %v665 = vpop.xlane.xlu0 %664
      %v666 = vsel %vm656, %v643, -inf
      %667 = vmax.xlane.f32.xlu0 %v666
      %v668 = vpop.xlane.xlu0 %667
      %v669 = vsel %vm656, %v644, -inf
      %670 = vmax.xlane.f32.xlu0 %v669
      %v671 = vpop.xlane.xlu0 %670
      %v672 = vsel %vm656, %v645, -inf
      %673 = vmax.xlane.f32.xlu0 %v672
      %v674 = vpop.xlane.xlu0 %673
      %v675 = vsel %vm656, %v646, -inf
      %676 = vmax.xlane.f32.xlu0 %v675
      %v677 = vpop.xlane.xlu0 %676
      %v678 = vsel %vm656, %v647, -inf
      %679 = vmax.xlane.f32.xlu0 %v678
      %v680 = vpop.xlane.xlu0 %679
      %v681 = vmax.f32 %v648, %v659
      %v682 = vmax.f32 %v649, %v662
      %v683 = vmax.f32 %v650, %v665
      %v684 = vmax.f32 %v651, %v668
      %v685 = vmax.f32 %v652, %v671
      %v686 = vmax.f32 %v653, %v674
      %v687 = vmax.f32 %v654, %v677
      %v688 = vmax.f32 %v655, %v680
      %v689 = vsub.f32 %v648, %v681
      %v690 = vsub.f32 %v649, %v682
      %v691 = vsub.f32 %v650, %v683
      %v692 = vsub.f32 %v651, %v684
      %v693 = vsub.f32 %v652, %v685
      %v694 = vsub.f32 %v653, %v686
      %v695 = vsub.f32 %v654, %v687
      %v696 = vsub.f32 %v655, %v688
      %v697 = vmul.f32 %v689, 1.442695
      %v698 = vpow.pop %v697
      %v699 = vmul.f32 %v690, 1.442695
      %v700 = vpow.pop %v699
      %v701 = vmul.f32 %v691, 1.442695
      %v702 = vpow.pop %v701
      %v703 = vmul.f32 %v692, 1.442695
      %v704 = vpow.pop %v703
      %v705 = vmul.f32 %v693, 1.442695
      %v706 = vpow.pop %v705
      %v707 = vmul.f32 %v694, 1.442695
      %v708 = vpow.pop %v707
      %v709 = vmul.f32 %v695, 1.442695
      %v710 = vpow.pop %v709
      %v711 = vmul.f32 %v696, 1.442695
      %v712 = vpow.pop %v711
      %714 = vset.pattern.permute.xlu0 0
      %715 = vperm.xlu0 %714, %v681
      %v716 = vpop.permute.xlu0 %715
      %719 = vset.pattern.permute.xlu0 0
      %720 = vperm.xlu0 %719, %v682
      %v721 = vpop.permute.xlu0 %720
      %724 = vset.pattern.permute.xlu0 0
      %725 = vperm.xlu0 %724, %v683
      %v726 = vpop.permute.xlu0 %725
      %729 = vset.pattern.permute.xlu0 0
      %730 = vperm.xlu0 %729, %v684
      %v731 = vpop.permute.xlu0 %730
      %734 = vset.pattern.permute.xlu0 0
      %735 = vperm.xlu0 %734, %v685
      %v736 = vpop.permute.xlu0 %735
      %739 = vset.pattern.permute.xlu0 0
      %740 = vperm.xlu0 %739, %v686
      %v741 = vpop.permute.xlu0 %740
      %744 = vset.pattern.permute.xlu0 0
      %745 = vperm.xlu0 %744, %v687
      %v746 = vpop.permute.xlu0 %745
      %749 = vset.pattern.permute.xlu0 0
      %750 = vperm.xlu0 %749, %v688
      %v751 = vpop.permute.xlu0 %750
      %v753 = vsub.f32 %v640, %v716
      %v754 = vsub.f32 %v641, %v721
      %v755 = vsub.f32 %v642, %v726
      %v756 = vsub.f32 %v643, %v731
      %v757 = vsub.f32 %v644, %v736
      %v758 = vsub.f32 %v645, %v741
      %v759 = vsub.f32 %v646, %v746
      %v760 = vsub.f32 %v647, %v751
      %v761 = vmul.f32 %v753, 1.442695
      %v762 = vpow.pop %v761
      %v763 = vmul.f32 %v754, 1.442695
      %v764 = vpow.pop %v763
      %v765 = vmul.f32 %v755, 1.442695
      %v766 = vpow.pop %v765
      %v767 = vmul.f32 %v756, 1.442695
      %v768 = vpow.pop %v767
      %v769 = vmul.f32 %v757, 1.442695
      %v770 = vpow.pop %v769
      %v771 = vmul.f32 %v758, 1.442695
      %v772 = vpow.pop %v771
      %v773 = vmul.f32 %v759, 1.442695
      %v774 = vpow.pop %v773
      %v775 = vmul.f32 %v760, 1.442695
      %v776 = vpow.pop %v775
      %v777 = vld [vmem:[#allocation3] sm:$0xff]
      %v778 = vld [vmem:[#allocation3 + $0x8] sm:$0xff]
      %v779 = vld [vmem:[#allocation3 + $0x10] sm:$0xff]
      %v780 = vld [vmem:[#allocation3 + $0x18] sm:$0xff]
      %v781 = vld [vmem:[#allocation3 + $0x20] sm:$0xff]
      %v782 = vld [vmem:[#allocation3 + $0x28] sm:$0xff]
      %v783 = vld [vmem:[#allocation3 + $0x30] sm:$0xff]
      %v784 = vld [vmem:[#allocation3 + $0x38] sm:$0xff]
      %v785 = vmul.f32 %v698, %v777
      %v786 = vmul.f32 %v700, %v778
      %v787 = vmul.f32 %v702, %v779
      %v788 = vmul.f32 %v704, %v780
      %v789 = vmul.f32 %v706, %v781
      %v790 = vmul.f32 %v708, %v782
      %v791 = vmul.f32 %v710, %v783
      %v792 = vmul.f32 %v712, %v784
      %v793 = vsel %vm656, %v762, 0.0
      %794 = vadd.xlane.f32.xlu0 %v793
      %v795 = vpop.xlane.xlu0 %794
      %v796 = vsel %vm656, %v764, 0.0
      %797 = vadd.xlane.f32.xlu0 %v796
      %v798 = vpop.xlane.xlu0 %797
      %v799 = vsel %vm656, %v766, 0.0
      %800 = vadd.xlane.f32.xlu0 %v799
      %v801 = vpop.xlane.xlu0 %800
      %v802 = vsel %vm656, %v768, 0.0
      %803 = vadd.xlane.f32.xlu0 %v802
      %v804 = vpop.xlane.xlu0 %803
      %v805 = vsel %vm656, %v770, 0.0
      %806 = vadd.xlane.f32.xlu0 %v805
      %v807 = vpop.xlane.xlu0 %806
      %v808 = vsel %vm656, %v772, 0.0
      %809 = vadd.xlane.f32.xlu0 %v808
      %v810 = vpop.xlane.xlu0 %809
      %v811 = vsel %vm656, %v774, 0.0
      %812 = vadd.xlane.f32.xlu0 %v811
      %v813 = vpop.xlane.xlu0 %812
      %v814 = vsel %vm656, %v776, 0.0
      %815 = vadd.xlane.f32.xlu0 %v814
      %v816 = vpop.xlane.xlu0 %815
      %v817 = vadd.f32 %v785, %v795
      %v818 = vadd.f32 %v786, %v798
      %v819 = vadd.f32 %v787, %v801
      %v820 = vadd.f32 %v788, %v804
      %v821 = vadd.f32 %v789, %v807
      %v822 = vadd.f32 %v790, %v810
      %v823 = vadd.f32 %v791, %v813
      %v824 = vadd.f32 %v792, %v816
      %vm825 = vcmask 7168
      %826 = vst.msk [vmem:[#allocation3] sm:$0xff] %vm825, %v817
      %827 = vst.msk [vmem:[#allocation3 + $0x8] sm:$0xff] %vm825, %v818
      %828 = vst.msk [vmem:[#allocation3 + $0x10] sm:$0xff] %vm825, %v819
      %829 = vst.msk [vmem:[#allocation3 + $0x18] sm:$0xff] %vm825, %v820
      %830 = vst.msk [vmem:[#allocation3 + $0x20] sm:$0xff] %vm825, %v821
      %831 = vst.msk [vmem:[#allocation3 + $0x28] sm:$0xff] %vm825, %v822
      %832 = vst.msk [vmem:[#allocation3 + $0x30] sm:$0xff] %vm825, %v823
      %833 = vst.msk [vmem:[#allocation3 + $0x38] sm:$0xff] %vm825, %v824
      %v834 = vld [vmem:[#allocation4] sm:$0xff]
      %v835 = vld [vmem:[#allocation4 + $0x8] sm:$0xff]
      %v836 = vld [vmem:[#allocation4 + $0x10] sm:$0xff]
      %v837 = vld [vmem:[#allocation4 + $0x18] sm:$0xff]
      %v838 = vld [vmem:[#allocation4 + $0x20] sm:$0xff]
      %v839 = vld [vmem:[#allocation4 + $0x28] sm:$0xff]
      %v840 = vld [vmem:[#allocation4 + $0x30] sm:$0xff]
      %v841 = vld [vmem:[#allocation4 + $0x38] sm:$0xff]
      %843 = vset.pattern.permute.xlu0 0
      %844 = vperm.xlu0 %843, %v698
      %v845 = vpop.permute.xlu0 %844
      %848 = vset.pattern.permute.xlu0 0
      %849 = vperm.xlu0 %848, %v700
      %v850 = vpop.permute.xlu0 %849
      %853 = vset.pattern.permute.xlu0 0
      %854 = vperm.xlu0 %853, %v702
      %v855 = vpop.permute.xlu0 %854
      %858 = vset.pattern.permute.xlu0 0
      %859 = vperm.xlu0 %858, %v704
      %v860 = vpop.permute.xlu0 %859
      %863 = vset.pattern.permute.xlu0 0
      %864 = vperm.xlu0 %863, %v706
      %v865 = vpop.permute.xlu0 %864
      %868 = vset.pattern.permute.xlu0 0
      %869 = vperm.xlu0 %868, %v708
      %v870 = vpop.permute.xlu0 %869
      %873 = vset.pattern.permute.xlu0 0
      %874 = vperm.xlu0 %873, %v710
      %v875 = vpop.permute.xlu0 %874
      %878 = vset.pattern.permute.xlu0 0
      %879 = vperm.xlu0 %878, %v712
      %v880 = vpop.permute.xlu0 %879
      %v882 = vmul.f32 %v845, %v834
      %v883 = vmul.f32 %v850, %v835
      %v884 = vmul.f32 %v855, %v836
      %v885 = vmul.f32 %v860, %v837
      %v886 = vmul.f32 %v865, %v838
      %v887 = vmul.f32 %v870, %v839
      %v888 = vmul.f32 %v875, %v840
      %v889 = vmul.f32 %v880, %v841
      %v890 = vpack.c.bf16 %v764, %v762
      %v891 = vpack.c.bf16 %v768, %v766
      %v892 = vpack.c.bf16 %v772, %v770
      %v893 = vpack.c.bf16 %v776, %v774
      %v896 = vunpack.c.l.b16 %v388
      %v897 = vunpack.c.l.b16 %v389
      %v898 = vpack.c.b16 %v897, %v896
      %v901 = vsel %vm656, %v890, 0
      %903 = vmatprep.subr.bf16.mxu0 0
      %904 = vmatpush1.bf16.msra.mxu0 0
      %905 = vmatprep.subr.bf16.mxu0 0
      %906 = vmatpush1.bf16.msra.mxu0 0
      %907 = vmatprep.subr.bf16.mxu0 0
      %908 = vmatpush1.bf16.msra.mxu0 0
      %909 = vmatprep.subr.bf16.mxu0 0
      %910 = vmatpush1.bf16.msra.mxu0 0
      %911 = vmatprep.subr.bf16.mxu0 0
      %912 = vmatpush1.bf16.msra.mxu0 0
      %913 = vmatprep.subr.bf16.mxu0 0
      %914 = vmatpush1.bf16.msra.mxu0 0
      %915 = vmatprep.subr.bf16.mxu0 0
      %916 = vmatpush1.bf16.msra.mxu0 0
      %917 = vmatprep.subr.bf16.mxu0 0
      %918 = vmatpush1.bf16.msra.mxu0 %v898
      %919 = vmatprep.subr.bf16.mxu0 0
      %920 = vmatpush2.bf16.msra.mxu0 0
      %921 = vmatprep.subr.bf16.mxu0 0
      %922 = vmatpush2.bf16.msra.mxu0 0
      %923 = vmatprep.subr.bf16.mxu0 0
      %924 = vmatpush2.bf16.msra.mxu0 0
      %925 = vmatprep.subr.bf16.mxu0 0
      %926 = vmatpush2.bf16.msra.mxu0 0
      %927 = vmatprep.subr.bf16.mxu0 0
      %928 = vmatpush2.bf16.msra.mxu0 0
      %929 = vmatprep.subr.bf16.mxu0 0
      %930 = vmatpush2.bf16.msra.mxu0 0
      %931 = vmatprep.subr.bf16.mxu0 0
      %932 = vmatpush2.bf16.msra.mxu0 0
      %933 = vmatprep.subr.bf16.mxu0 0
      %934 = vmatpush2.bf16.msra.mxu0 0
      %935 = vmatprep.mubr.bf16.mxu0 0
      %936 = vmatmul.mubr.bf16.gmra.mxu0 %v901
      %v937 = vpop.f32.mrf.mxu0
      %v938 = vadd.f32 0.0, %v937
      %v939 = vpop.f32.mrf.mxu0
      %v940 = vpop.f32.mrf.mxu0
      %v941 = vadd.f32 0.0, %v940
      %v942 = vpop.f32.mrf.mxu0
      %943 = vdwg.mxu0
      %v946 = vunpack.c.l.b16 %v390
      %v947 = vunpack.c.l.b16 %v391
      %v948 = vpack.c.b16 %v947, %v946
      %v951 = vsel %vm656, %v891, 0
      %953 = vmatprep.subr.bf16.mxu0 0
      %954 = vmatpush1.bf16.msra.mxu0 0
      %955 = vmatprep.subr.bf16.mxu0 0
      %956 = vmatpush1.bf16.msra.mxu0 0
      %957 = vmatprep.subr.bf16.mxu0 0
      %958 = vmatpush1.bf16.msra.mxu0 0
      %959 = vmatprep.subr.bf16.mxu0 0
      %960 = vmatpush1.bf16.msra.mxu0 0
      %961 = vmatprep.subr.bf16.mxu0 0
      %962 = vmatpush1.bf16.msra.mxu0 0
      %963 = vmatprep.subr.bf16.mxu0 0
      %964 = vmatpush1.bf16.msra.mxu0 0
      %965 = vmatprep.subr.bf16.mxu0 0
      %966 = vmatpush1.bf16.msra.mxu0 0
      %967 = vmatprep.subr.bf16.mxu0 0
      %968 = vmatpush1.bf16.msra.mxu0 %v948
      %969 = vmatprep.subr.bf16.mxu0 0
      %970 = vmatpush2.bf16.msra.mxu0 0
      %971 = vmatprep.subr.bf16.mxu0 0
      %972 = vmatpush2.bf16.msra.mxu0 0
      %973 = vmatprep.subr.bf16.mxu0 0
      %974 = vmatpush2.bf16.msra.mxu0 0
      %975 = vmatprep.subr.bf16.mxu0 0
      %976 = vmatpush2.bf16.msra.mxu0 0
      %977 = vmatprep.subr.bf16.mxu0 0
      %978 = vmatpush2.bf16.msra.mxu0 0
      %979 = vmatprep.subr.bf16.mxu0 0
      %980 = vmatpush2.bf16.msra.mxu0 0
      %981 = vmatprep.subr.bf16.mxu0 0
      %982 = vmatpush2.bf16.msra.mxu0 0
      %983 = vmatprep.subr.bf16.mxu0 0
      %984 = vmatpush2.bf16.msra.mxu0 0
      %985 = vmatprep.mubr.bf16.mxu0 0
      %986 = vmatmul.mubr.bf16.gmra.mxu0 %v951
      %v987 = vpop.f32.mrf.mxu0
      %v988 = vadd.f32 0.0, %v987
      %v989 = vpop.f32.mrf.mxu0
      %v990 = vpop.f32.mrf.mxu0
      %v991 = vadd.f32 0.0, %v990
      %v992 = vpop.f32.mrf.mxu0
      %993 = vdwg.mxu0
      %v996 = vunpack.c.l.b16 %v392
      %v997 = vunpack.c.l.b16 %v393
      %v998 = vpack.c.b16 %v997, %v996
      %v1001 = vsel %vm656, %v892, 0
      %1003 = vmatprep.subr.bf16.mxu0 0
      %1004 = vmatpush1.bf16.msra.mxu0 0
      %1005 = vmatprep.subr.bf16.mxu0 0
      %1006 = vmatpush1.bf16.msra.mxu0 0
      %1007 = vmatprep.subr.bf16.mxu0 0
      %1008 = vmatpush1.bf16.msra.mxu0 0
      %1009 = vmatprep.subr.bf16.mxu0 0
      %1010 = vmatpush1.bf16.msra.mxu0 0
      %1011 = vmatprep.subr.bf16.mxu0 0
      %1012 = vmatpush1.bf16.msra.mxu0 0
      %1013 = vmatprep.subr.bf16.mxu0 0
      %1014 = vmatpush1.bf16.msra.mxu0 0
      %1015 = vmatprep.subr.bf16.mxu0 0
      %1016 = vmatpush1.bf16.msra.mxu0 0
      %1017 = vmatprep.subr.bf16.mxu0 0
      %1018 = vmatpush1.bf16.msra.mxu0 %v998
      %1019 = vmatprep.subr.bf16.mxu0 0
      %1020 = vmatpush2.bf16.msra.mxu0 0
      %1021 = vmatprep.subr.bf16.mxu0 0
      %1022 = vmatpush2.bf16.msra.mxu0 0
      %1023 = vmatprep.subr.bf16.mxu0 0
      %1024 = vmatpush2.bf16.msra.mxu0 0
      %1025 = vmatprep.subr.bf16.mxu0 0
      %1026 = vmatpush2.bf16.msra.mxu0 0
      %1027 = vmatprep.subr.bf16.mxu0 0
      %1028 = vmatpush2.bf16.msra.mxu0 0
      %1029 = vmatprep.subr.bf16.mxu0 0
      %1030 = vmatpush2.bf16.msra.mxu0 0
      %1031 = vmatprep.subr.bf16.mxu0 0
      %1032 = vmatpush2.bf16.msra.mxu0 0
      %1033 = vmatprep.subr.bf16.mxu0 0
      %1034 = vmatpush2.bf16.msra.mxu0 0
      %1035 = vmatprep.mubr.bf16.mxu0 0
      %1036 = vmatmul.mubr.bf16.gmra.mxu0 %v1001
      %v1037 = vpop.f32.mrf.mxu0
      %v1038 = vadd.f32 0.0, %v1037
      %v1039 = vpop.f32.mrf.mxu0
      %v1040 = vpop.f32.mrf.mxu0
      %v1041 = vadd.f32 0.0, %v1040
      %v1042 = vpop.f32.mrf.mxu0
      %1043 = vdwg.mxu0
      %v1046 = vunpack.c.l.b16 %v394
      %v1047 = vunpack.c.l.b16 %v395
      %v1048 = vpack.c.b16 %v1047, %v1046
      %v1051 = vsel %vm656, %v893, 0
      %1053 = vmatprep.subr.bf16.mxu0 0
      %1054 = vmatpush1.bf16.msra.mxu0 0
      %1055 = vmatprep.subr.bf16.mxu0 0
      %1056 = vmatpush1.bf16.msra.mxu0 0
      %1057 = vmatprep.subr.bf16.mxu0 0
      %1058 = vmatpush1.bf16.msra.mxu0 0
      %1059 = vmatprep.subr.bf16.mxu0 0
      %1060 = vmatpush1.bf16.msra.mxu0 0
      %1061 = vmatprep.subr.bf16.mxu0 0
      %1062 = vmatpush1.bf16.msra.mxu0 0
      %1063 = vmatprep.subr.bf16.mxu0 0
      %1064 = vmatpush1.bf16.msra.mxu0 0
      %1065 = vmatprep.subr.bf16.mxu0 0
      %1066 = vmatpush1.bf16.msra.mxu0 0
      %1067 = vmatprep.subr.bf16.mxu0 0
      %1068 = vmatpush1.bf16.msra.mxu0 %v1048
      %1069 = vmatprep.subr.bf16.mxu0 0
      %1070 = vmatpush2.bf16.msra.mxu0 0
      %1071 = vmatprep.subr.bf16.mxu0 0
      %1072 = vmatpush2.bf16.msra.mxu0 0
      %1073 = vmatprep.subr.bf16.mxu0 0
      %1074 = vmatpush2.bf16.msra.mxu0 0
      %1075 = vmatprep.subr.bf16.mxu0 0
      %1076 = vmatpush2.bf16.msra.mxu0 0
      %1077 = vmatprep.subr.bf16.mxu0 0
      %1078 = vmatpush2.bf16.msra.mxu0 0
      %1079 = vmatprep.subr.bf16.mxu0 0
      %1080 = vmatpush2.bf16.msra.mxu0 0
      %1081 = vmatprep.subr.bf16.mxu0 0
      %1082 = vmatpush2.bf16.msra.mxu0 0
      %1083 = vmatprep.subr.bf16.mxu0 0
      %1084 = vmatpush2.bf16.msra.mxu0 0
      %1085 = vmatprep.mubr.bf16.mxu0 0
      %1086 = vmatmul.mubr.bf16.gmra.mxu0 %v1051
      %v1087 = vpop.f32.mrf.mxu0
      %v1088 = vadd.f32 0.0, %v1087
      %v1089 = vpop.f32.mrf.mxu0
      %v1090 = vpop.f32.mrf.mxu0
      %v1091 = vadd.f32 0.0, %v1090
      %v1092 = vpop.f32.mrf.mxu0
      %1093 = vdwg.mxu0
      %v1094 = vadd.f32 %v882, %v938
      %v1095 = vadd.f32 %v883, %v941
      %v1096 = vadd.f32 %v884, %v988
      %v1097 = vadd.f32 %v885, %v991
      %v1098 = vadd.f32 %v886, %v1038
      %v1099 = vadd.f32 %v887, %v1041
      %v1100 = vadd.f32 %v888, %v1088
      %v1101 = vadd.f32 %v889, %v1091
      %1102 = vst.msk [vmem:[#allocation4] sm:$0xff] %vm406, %v1094
      %1103 = vst.msk [vmem:[#allocation4 + $0x8] sm:$0xff] %vm406, %v1095
      %1104 = vst.msk [vmem:[#allocation4 + $0x10] sm:$0xff] %vm406, %v1096
      %1105 = vst.msk [vmem:[#allocation4 + $0x18] sm:$0xff] %vm406, %v1097
      %1106 = vst.msk [vmem:[#allocation4 + $0x20] sm:$0xff] %vm406, %v1098
      %1107 = vst.msk [vmem:[#allocation4 + $0x28] sm:$0xff] %vm406, %v1099
      %1108 = vst.msk [vmem:[#allocation4 + $0x30] sm:$0xff] %vm406, %v1100
      %1109 = vst.msk [vmem:[#allocation4 + $0x38] sm:$0xff] %vm406, %v1101
      %1110 = vst.msk [vmem:[#allocation2] sm:$0xff] %vm825, %v681
      %1111 = vst.msk [vmem:[#allocation2 + $0x8] sm:$0xff] %vm825, %v682
      %1112 = vst.msk [vmem:[#allocation2 + $0x10] sm:$0xff] %vm825, %v683
      %1113 = vst.msk [vmem:[#allocation2 + $0x18] sm:$0xff] %vm825, %v684
      %1114 = vst.msk [vmem:[#allocation2 + $0x20] sm:$0xff] %vm825, %v685
      %1115 = vst.msk [vmem:[#allocation2 + $0x28] sm:$0xff] %vm825, %v686
      %1116 = vst.msk [vmem:[#allocation2 + $0x30] sm:$0xff] %vm825, %v687
      %1117 = vst.msk [vmem:[#allocation2 + $0x38] sm:$0xff] %vm825, %v688
      // Predicated region
      $region41: #{perception_forward.12} parent=35 // pred_check
        %p1118 = pneg %p342
      $region42: #{perception_forward.12} parent=35 // pred_check_branch
        %1120 = sbr.rel (%p1118) target = $region44
      $region43: #{perception_forward.12} parent=35 // pred_region
        %v1121 = vld [vmem:[#allocation4] sm:$0xff]
        %v1122 = vld [vmem:[#allocation4 + $0x8] sm:$0xff]
        %v1123 = vld [vmem:[#allocation4 + $0x10] sm:$0xff]
        %v1124 = vld [vmem:[#allocation4 + $0x18] sm:$0xff]
        %v1125 = vld [vmem:[#allocation4 + $0x20] sm:$0xff]
        %v1126 = vld [vmem:[#allocation4 + $0x28] sm:$0xff]
        %v1127 = vld [vmem:[#allocation4 + $0x30] sm:$0xff]
        %v1128 = vld [vmem:[#allocation4 + $0x38] sm:$0xff]
        %v1129 = vld [vmem:[#allocation3] sm:$0xff]
        %v1130 = vld [vmem:[#allocation3 + $0x8] sm:$0xff]
        %v1131 = vld [vmem:[#allocation3 + $0x10] sm:$0xff]
        %v1132 = vld [vmem:[#allocation3 + $0x18] sm:$0xff]
        %v1133 = vld [vmem:[#allocation3 + $0x20] sm:$0xff]
        %v1134 = vld [vmem:[#allocation3 + $0x28] sm:$0xff]
        %v1135 = vld [vmem:[#allocation3 + $0x30] sm:$0xff]
        %v1136 = vld [vmem:[#allocation3 + $0x38] sm:$0xff]
        %v1137 = vrcp.pop %v1129
        %v1138 = vrcp.pop %v1130
        %v1139 = vrcp.pop %v1131
        %v1140 = vrcp.pop %v1132
        %v1141 = vrcp.pop %v1133
        %v1142 = vrcp.pop %v1134
        %v1143 = vrcp.pop %v1135
        %v1144 = vrcp.pop %v1136
        %1146 = vset.pattern.permute.xlu0 0
        %1147 = vperm.xlu0 %1146, %v1137
        %v1148 = vpop.permute.xlu0 %1147
        %1151 = vset.pattern.permute.xlu0 0
        %1152 = vperm.xlu0 %1151, %v1138
        %v1153 = vpop.permute.xlu0 %1152
        %1156 = vset.pattern.permute.xlu0 0
        %1157 = vperm.xlu0 %1156, %v1139
        %v1158 = vpop.permute.xlu0 %1157
        %1161 = vset.pattern.permute.xlu0 0
        %1162 = vperm.xlu0 %1161, %v1140
        %v1163 = vpop.permute.xlu0 %1162
        %1166 = vset.pattern.permute.xlu0 0
        %1167 = vperm.xlu0 %1166, %v1141
        %v1168 = vpop.permute.xlu0 %1167
        %1171 = vset.pattern.permute.xlu0 0
        %1172 = vperm.xlu0 %1171, %v1142
        %v1173 = vpop.permute.xlu0 %1172
        %1176 = vset.pattern.permute.xlu0 0
        %1177 = vperm.xlu0 %1176, %v1143
        %v1178 = vpop.permute.xlu0 %1177
        %1181 = vset.pattern.permute.xlu0 0
        %1182 = vperm.xlu0 %1181, %v1144
        %v1183 = vpop.permute.xlu0 %1182
        %v1185 = vmul.f32 %v1121, %v1148
        %v1186 = vmul.f32 %v1122, %v1153
        %v1187 = vmul.f32 %v1123, %v1158
        %v1188 = vmul.f32 %v1124, %v1163
        %v1189 = vmul.f32 %v1125, %v1168
        %v1190 = vmul.f32 %v1126, %v1173
        %v1191 = vmul.f32 %v1127, %v1178
        %v1192 = vmul.f32 %v1128, %v1183
        %v1193 = vpack.c.bf16 %v1186, %v1185
        %v1194 = vpack.c.bf16 %v1188, %v1187
        %v1195 = vpack.c.bf16 %v1190, %v1189
        %v1196 = vpack.c.bf16 %v1192, %v1191
        %v1201 = vunpack.c.l.b16 %v1193
        %v1202 = vunpack.c.h.b16 %v1193
        %v1203 = vunpack.c.l.b16 %v1194
        %v1204 = vunpack.c.h.b16 %v1194
        %v1205 = vunpack.c.l.b16 %v1195
        %v1206 = vunpack.c.h.b16 %v1195
        %v1207 = vunpack.c.l.b16 %v1196
        %v1208 = vunpack.c.h.b16 %v1196
        %v1209 = vpack.c.b16 %v1201, %v1201
        %v1210 = vpack.c.b16 %v1202, %v1202
        %v1211 = vpack.c.b16 %v1203, %v1203
        %v1212 = vpack.c.b16 %v1204, %v1204
        %v1213 = vpack.c.b16 %v1205, %v1205
        %v1214 = vpack.c.b16 %v1206, %v1206
        %v1215 = vpack.c.b16 %v1207, %v1207
        %v1216 = vpack.c.b16 %v1208, %v1208
        %vm1225 = vcmask 60416
        %1226 = vst.msk [vmem:[%s339] sm:$0xf] %vm1225, %v1209
        %1227 = vst.msk [vmem:[%s339 + $0x4] sm:$0xf] %vm1225, %v1210
        %1228 = vst.msk [vmem:[%s339 + $0x8] sm:$0xf] %vm1225, %v1211
        %1229 = vst.msk [vmem:[%s339 + $0xc] sm:$0xf] %vm1225, %v1212
        %1230 = vst.msk [vmem:[%s339 + $0x10] sm:$0xf] %vm1225, %v1213
        %1231 = vst.msk [vmem:[%s339 + $0x14] sm:$0xf] %vm1225, %v1214
        %1232 = vst.msk [vmem:[%s339 + $0x18] sm:$0xf] %vm1225, %v1215
        %1233 = vst.msk [vmem:[%s339 + $0x1c] sm:$0xf] %vm1225, %v1216
      $region44: #{perception_forward.12} parent=35 // pred_fallthru
        _
      %s1234 = smul.u32 2, %s21
      %p1235 = scmp.lt.s32.totalorder %s20, 1
      %s1236 = scalar_select %p1235, %s20, 1
      %p1237 = scmp.lt.s32.totalorder %s1234, 1
      %s1238 = scalar_select %p1237, %s1234, 1
      %s1239 = smul.addr %s1236, 8
      %s1240 = sadd.s32 %s1238, %s1239
      %s1241 = smul.addr %s1240, 4
      %s1242 = scalar_lea.vmem %s4, %s1241
      // Predicated region
      $region45: #{perception_forward.12} parent=35 // pred_check
        %p1243 = pneg %p166
      $region46: #{perception_forward.12} parent=35 // pred_check_branch
        %1245 = sbr.rel (%p1243) target = $region48
      $region47: #{perception_forward.12} parent=35 // pred_region
        %s1246 = smul.u32 2, %s21
      $region48: #{perception_forward.12} parent=35 // pred_fallthru
        _
    $region36: #{perception_forward.12} parent=5 // pred_fallthru
      _
    %p1247 = scmp.le.s32.totalorder 2, %s10
    // Predicated region
    $region49: #{perception_forward.12} parent=5 // pred_check
      %p1248 = pneg %p1247
    $region50: #{perception_forward.12} parent=5 // pred_check_branch
      %1250 = sbr.rel (%p1248) target = $region52
    $region51: #{perception_forward.12} parent=5 // pred_region
      %s1251 = ssub.s32 %s10, 2
      // Predicated region
      $region53: #{perception_forward.12} parent=51 // pred_check
        %p1252 = pneg %p172
      $region54: #{perception_forward.12} parent=51 // pred_check_branch
        %1254 = sbr.rel (%p1252) target = $region56
      $region55: #{perception_forward.12} parent=51 // pred_region
        %s1255 = smul.u32 2, %s24
        %p1256 = scmp.lt.s32.totalorder %s23, 1
        %s1257 = scalar_select %p1256, %s23, 1
        %p1258 = scmp.lt.s32.totalorder %s1255, 1
        %s1259 = scalar_select %p1258, %s1255, 1
        %s1260 = smul.addr %s1257, 8
        %s1261 = sadd.s32 %s1259, %s1260
        %s1262 = smul.addr %s1261, 4
        %s1263 = scalar_lea.vmem %s4, %s1262
      $region56: #{perception_forward.12} parent=51 // pred_fallthru
        _
    $region52: #{perception_forward.12} parent=5 // pred_fallthru
      _
  $region6: #{perception_forward.12} parent=0 // loop_footer
    %s14 = sadd.s32 1, %s10
  $region7: #{perception_forward.12} parent=0 // loop_footer_branch
    %9 = sbr.rel target = $region3
  $region8: #{perception_forward.12} parent=0 // loop_exit
    _

</llo_original>
